<compile_context>
chip_gen: v5e
topology: v5e:2x2
jax: 0.10.0
libtpu: 0.0.40
codegen_flags: <defaults>
</compile_context>

<pallas_src>
import math

import jax
import jax.numpy as jnp
from jax import lax
from jax.experimental import pallas as pl
from jax.experimental.pallas import tpu as pltpu


# ----------------------------- helpers -----------------------------

def _pick_tile(dim, target, align):
    """Largest tile <= target that divides `dim` and is a multiple of `align`.
    Falls back to the full dimension (always a legal BlockSpec block)."""
    if dim <= target:
        return dim
    t = (target // align) * align
    while t >= align:
        if dim % t == 0:
            return t
        t -= align
    return dim


def _layernorm(z, gamma, beta, eps):
    mean = jnp.mean(z, axis=-1, keepdims=True)
    var = jnp.mean((z - mean) ** 2, axis=-1, keepdims=True)
    return gamma * ((z - mean) * lax.rsqrt(var + eps)) + beta


def _mha_heads_to_out(get_head, num_heads, Dh, wout_ref, S, D, scale, mask):
    """Per-head scaled-dot-product attention with the output projection folded in
    per head:  out = sum_h softmax(q_h k_h^T * scale + mask) v_h @ W_out[h*Dh:(h+1)*Dh].
    Avoids materializing/concatenating the per-head values."""
    acc = jnp.zeros((S, D), jnp.float32)
    for h in range(num_heads):
        qh, kh, vh = get_head(h)                       # f32 (S, Dh) slices
        qh = qh.astype(jnp.bfloat16)
        kh = kh.astype(jnp.bfloat16)
        vh = vh.astype(jnp.bfloat16)
        # q @ k^T without materializing a transposed tile.
        s = lax.dot_general(qh, kh, (((1,), (1,)), ((), ())),
                            preferred_element_type=jnp.float32) * scale
        if mask is not None:
            s = s + mask
        s = s - jnp.max(s, axis=-1, keepdims=True)
        p = jnp.exp(s)
        p = p / jnp.sum(p, axis=-1, keepdims=True)     # exact normalization
        vals = jnp.dot(p.astype(jnp.bfloat16), vh,
                       preferred_element_type=jnp.float32)
        w_slice = wout_ref[h * Dh:(h + 1) * Dh, :]     # bf16 (Dh, D), static slice
        acc = acc + jnp.dot(vals.astype(jnp.bfloat16), w_slice,
                            preferred_element_type=jnp.float32)
    return acc


# ----------------------------- fused block kernels -----------------------------

def _self_attention_block(y, mask, w_qkv, b_qkv, w_out, b_out, gamma, beta,
                          *, num_heads, eps=1e-5):
    """y -> LayerNorm(MultiHeadAttention(y, mask) + y), one kernel, grid over batch."""
    B, S, D = y.shape
    Dh = D // num_heads
    scale = 1.0 / math.sqrt(Dh)
    has_mask = mask is not None

    w_qkv = w_qkv.astype(jnp.bfloat16)
    w_out = w_out.astype(jnp.bfloat16)

    def kernel(*refs):
        if has_mask:
            (y_ref, m_ref, wqkv_ref, bqkv_ref, wout_ref, bout_ref,
             g_ref, bt_ref, o_ref) = refs
            m = m_ref[...]
        else:
            (y_ref, wqkv_ref, bqkv_ref, wout_ref, bout_ref,
             g_ref, bt_ref, o_ref) = refs
            m = None
        y_f32 = y_ref[...].astype(jnp.float32)
        qkv = jnp.dot(y_f32.astype(jnp.bfloat16), wqkv_ref[...],
                      preferred_element_type=jnp.float32) + bqkv_ref[...]

        # PyTorch layout: reshape(B, S, H, 3*Dh) -> per head h columns [q_h | k_h | v_h].
        def get_head(h):
            base = 3 * Dh * h
            return (qkv[:, base:base + Dh],
                    qkv[:, base + Dh:base + 2 * Dh],
                    qkv[:, base + 2 * Dh:base + 3 * Dh])

        attn = _mha_heads_to_out(get_head, num_heads, Dh, wout_ref, S, D, scale, m)
        z = attn + bout_ref[...] + y_f32               # residual (dropout = identity)
        o_ref[...] = _layernorm(z, g_ref[...], bt_ref[...], eps).astype(o_ref.dtype)

    in_specs = [pl.BlockSpec((pl.Squeezed(), S, D), lambda b: (b, 0, 0))]
    args = [y]
    if has_mask:
        in_specs.append(pl.BlockSpec((S, S), lambda b: (0, 0)))
        args.append(mask)
    in_specs += [
        pl.BlockSpec((D, 3 * D), lambda b: (0, 0)),
        pl.BlockSpec((1, 3 * D), lambda b: (0, 0)),
        pl.BlockSpec((D, D), lambda b: (0, 0)),
        pl.BlockSpec((1, D), lambda b: (0, 0)),
        pl.BlockSpec((1, D), lambda b: (0, 0)),
        pl.BlockSpec((1, D), lambda b: (0, 0)),
    ]
    args += [w_qkv, b_qkv.reshape(1, 3 * D), w_out, b_out.reshape(1, D),
             gamma.reshape(1, D), beta.reshape(1, D)]

    return pl.pallas_call(
        kernel,
        out_shape=jax.ShapeDtypeStruct((B, S, D), y.dtype),
        grid=(B,),
        in_specs=in_specs,
        out_specs=pl.BlockSpec((pl.Squeezed(), S, D), lambda b: (b, 0, 0)),
        compiler_params=pltpu.CompilerParams(dimension_semantics=("parallel",)),
    )(*args)


def _cross_attention_block(x, y, mask, w_kv, b_kv, w_q, b_q, w_out, b_out,
                           gamma, beta, *, num_heads, eps=1e-5):
    """(x, y) -> LayerNorm(MultiHeadCrossAttention(x, y, mask)), one kernel per batch.
    Note: matches the reference module, which applies NO residual before norm2."""
    B, S, D = y.shape
    Dh = D // num_heads
    scale = 1.0 / math.sqrt(Dh)
    has_mask = mask is not None

    w_kv = w_kv.astype(jnp.bfloat16)
    w_q = w_q.astype(jnp.bfloat16)
    w_out = w_out.astype(jnp.bfloat16)

    def kernel(*refs):
        if has_mask:
            (x_ref, y_ref, m_ref, wkv_ref, bkv_ref, wq_ref, bq_ref,
             wout_ref, bout_ref, g_ref, bt_ref, o_ref) = refs
            m = m_ref[...]
        else:
            (x_ref, y_ref, wkv_ref, bkv_ref, wq_ref, bq_ref,
             wout_ref, bout_ref, g_ref, bt_ref, o_ref) = refs
            m = None
        kv = jnp.dot(x_ref[...].astype(jnp.bfloat16), wkv_ref[...],
                     preferred_element_type=jnp.float32) + bkv_ref[...]
        q = jnp.dot(y_ref[...].astype(jnp.bfloat16), wq_ref[...],
                    preferred_element_type=jnp.float32) + bq_ref[...]

        # PyTorch layout: kv reshape(B, S, H, 2*Dh) -> per head h columns [k_h | v_h].
        def get_head(h):
            return (q[:, h * Dh:(h + 1) * Dh],
                    kv[:, 2 * Dh * h:2 * Dh * h + Dh],
                    kv[:, 2 * Dh * h + Dh:2 * Dh * (h + 1)])

        attn = _mha_heads_to_out(get_head, num_heads, Dh, wout_ref, S, D, scale, m)
        z = attn + bout_ref[...]                       # no residual before norm2
        o_ref[...] = _layernorm(z, g_ref[...], bt_ref[...], eps).astype(o_ref.dtype)

    in_specs = [
        pl.BlockSpec((pl.Squeezed(), S, D), lambda b: (b, 0, 0)),
        pl.BlockSpec((pl.Squeezed(), S, D), lambda b: (b, 0, 0)),
    ]
    args = [x, y]
    if has_mask:
        in_specs.append(pl.BlockSpec((S, S), lambda b: (0, 0)))
        args.append(mask)
    in_specs += [
        pl.BlockSpec((D, 2 * D), lambda b: (0, 0)),
        pl.BlockSpec((1, 2 * D), lambda b: (0, 0)),
        pl.BlockSpec((D, D), lambda b: (0, 0)),
        pl.BlockSpec((1, D), lambda b: (0, 0)),
        pl.BlockSpec((D, D), lambda b: (0, 0)),
        pl.BlockSpec((1, D), lambda b: (0, 0)),
        pl.BlockSpec((1, D), lambda b: (0, 0)),
        pl.BlockSpec((1, D), lambda b: (0, 0)),
    ]
    args += [w_kv, b_kv.reshape(1, 2 * D), w_q, b_q.reshape(1, D),
             w_out, b_out.reshape(1, D), gamma.reshape(1, D), beta.reshape(1, D)]

    return pl.pallas_call(
        kernel,
        out_shape=jax.ShapeDtypeStruct((B, S, D), y.dtype),
        grid=(B,),
        in_specs=in_specs,
        out_specs=pl.BlockSpec((pl.Squeezed(), S, D), lambda b: (b, 0, 0)),
        compiler_params=pltpu.CompilerParams(dimension_semantics=("parallel",)),
    )(*args)


def _ffn_block(x, residual, w1, b1, w2, b2, gamma, beta, *, eps=1e-5,
               tm_target=512, th_target=256):
    """LayerNorm(relu(x @ w1 + b1) @ w2 + b2 + residual), fused.
    The (tm, th) hidden activation never leaves VMEM; the hidden axis is the
    reduction grid axis; residual add + LayerNorm are folded into the finalize
    (legal because the output block spans the full d_model width)."""
    M, K = x.shape
    Hd = w1.shape[1]
    N = w2.shape[1]
    tm = _pick_tile(M, tm_target, 8)
    th = _pick_tile(Hd, th_target, 128)
    grid = (M // tm, Hd // th)

    w1 = w1.astype(jnp.bfloat16)
    w2 = w2.astype(jnp.bfloat16)

    def kernel(x_ref, r_ref, w1_ref, b1_ref, w2_ref, b2_ref, g_ref, bt_ref,
               o_ref, acc_ref):
        @pl.when(pl.program_id(1) == 0)
        def _():
            acc_ref[...] = jnp.zeros_like(acc_ref)

        h = jnp.dot(x_ref[...].astype(jnp.bfloat16), w1_ref[...],
                    preferred_element_type=jnp.float32) + b1_ref[...]
        h = jnp.maximum(h, 0.0)
        acc_ref[...] += jnp.dot(h.astype(jnp.bfloat16), w2_ref[...],
                                preferred_element_type=jnp.float32)

        @pl.when(pl.program_id(1) == pl.num_programs(1) - 1)
        def _():
            z = acc_ref[...] + b2_ref[...] + r_ref[...].astype(jnp.float32)
            o_ref[...] = _layernorm(z, g_ref[...], bt_ref[...], eps).astype(o_ref.dtype)

    return pl.pallas_call(
        kernel,
        out_shape=jax.ShapeDtypeStruct((M, N), x.dtype),
        grid=grid,
        in_specs=[
            pl.BlockSpec((tm, K), lambda i, k: (i, 0)),
            pl.BlockSpec((tm, N), lambda i, k: (i, 0)),
            pl.BlockSpec((K, th), lambda i, k: (0, k)),
            pl.BlockSpec((1, th), lambda i, k: (0, k)),
            pl.BlockSpec((th, N), lambda i, k: (k, 0)),
            pl.BlockSpec((1, N), lambda i, k: (0, 0)),
            pl.BlockSpec((1, N), lambda i, k: (0, 0)),
            pl.BlockSpec((1, N), lambda i, k: (0, 0)),
        ],
        out_specs=pl.BlockSpec((tm, N), lambda i, k: (i, 0)),
        scratch_shapes=[pltpu.VMEM((tm, N), jnp.float32)],
        compiler_params=pltpu.CompilerParams(
            dimension_semantics=("parallel", "arbitrary")),
    )(x, residual, w1, b1.reshape(1, Hd), w2, b2.reshape(1, N),
      gamma.reshape(1, N), beta.reshape(1, N))


# ----------------------------- module glue (thin JAX wrapper) -----------------------------

def decoder_layer(x, y, self_attention_mask, cross_attention_mask, params, num_heads):
    # TODO(synk): nn.Dropout reproduced as identity (eval mode); training-mode
    # dropout is stochastic and not deterministic to replicate.
    B, S, D = y.shape
    p = params

    # --- self-attention block: y = LN1(self_attn(y) + y) ---
    y_ln1 = _self_attention_block(
        y, self_attention_mask,
        p["attn"]["w_qkv"], p["attn"]["b_qkv"],
        p["attn"]["w_out"], p["attn"]["b_out"],
        p["norm1"]["gamma"], p["norm1"]["beta"],
        num_heads=num_heads)

    # --- cross-attention block: y = LN2(cross_attn(x, y))  (no residual, matches ref) ---
    y_ln2 = _cross_attention_block(
        x, y_ln1, cross_attention_mask,
        p["cross"]["w_kv"], p["cross"]["b_kv"],
        p["cross"]["w_q"], p["cross"]["b_q"],
        p["cross"]["w_out"], p["cross"]["b_out"],
        p["norm2"]["gamma"], p["norm2"]["beta"],
        num_heads=num_heads)

    # --- FFN block: y = LN3(ffn(y) + y_ln1) ---
    M = B * S
    out = _ffn_block(
        y_ln2.reshape(M, D), y_ln1.reshape(M, D),
        p["ffn"]["w1"], p["ffn"]["b1"], p["ffn"]["w2"], p["ffn"]["b2"],
        p["norm3"]["gamma"], p["norm3"]["beta"])
    return out.reshape(B, S, D)


# ----------------------------- pure-JAX reference for verification -----------------------------
# The reference applies the same bf16-at-MXU-inputs policy as the kernels so the
# comparison isolates kernel logic rather than bf16 rounding.

def _ref_decoder_layer(x, y, self_mask, cross_mask, params, H):
    bf16 = jnp.bfloat16

    def mm(a, w):
        return jnp.dot(a.astype(bf16), w.astype(bf16),
                       preferred_element_type=jnp.float32)

    def linear(a, w, b):
        return mm(a, w) + b

    def ln(a, p, eps=1e-5):
        mean = a.mean(-1, keepdims=True)
        var = ((a - mean) ** 2).mean(-1, keepdims=True)
        return p["gamma"] * ((a - mean) * lax.rsqrt(var + eps)) + p["beta"]

    B, S, D = y.shape
    Dh = D // H
    scale = 1.0 / math.sqrt(Dh)

    def attn_core(q, k, v, mask):
        s = jnp.einsum("bhqd,bhkd->bhqk", q.astype(bf16), k.astype(bf16),
                       preferred_element_type=jnp.float32) * scale
        if mask is not None:
            s = s + mask
        s = s - s.max(-1, keepdims=True)
        p = jnp.exp(s)
        p = p / p.sum(-1, keepdims=True)
        return jnp.einsum("bhqk,bhkd->bhqd", p.astype(bf16), v.astype(bf16),
                          preferred_element_type=jnp.float32)

    def self_attn(yy, p, mask):
        qkv = linear(yy, p["w_qkv"], p["b_qkv"]).reshape(B, S, H, 3 * Dh).transpose(0, 2, 1, 3)
        q, k, v = jnp.split(qkv, 3, axis=-1)
        o = attn_core(q, k, v, mask).transpose(0, 2, 1, 3).reshape(B, S, D)
        return linear(o, p["w_out"], p["b_out"])

    def cross_attn(xx, yy, p, mask):
        kv = linear(xx, p["w_kv"], p["b_kv"]).reshape(B, S, H, 2 * Dh).transpose(0, 2, 1, 3)
        q = linear(yy, p["w_q"], p["b_q"]).reshape(B, S, H, Dh).transpose(0, 2, 1, 3)
        k, v = jnp.split(kv, 2, axis=-1)
        o = attn_core(q, k, v, mask).transpose(0, 2, 1, 3).reshape(B, S, D)
        return linear(o, p["w_out"], p["b_out"])

    def ffn(yy, p):
        h = jnp.maximum(linear(yy, p["w1"], p["b1"]), 0.0)
        return linear(h, p["w2"], p["b2"])

    r = y
    y = ln(self_attn(y, params["attn"], self_mask) + r, params["norm1"])
    r = y
    y = ln(cross_attn(x, y, params["cross"], cross_mask), params["norm2"])
    y = ln(ffn(y, params["ffn"]) + r, params["norm3"])
    return y


# ----------------------------- parameter init -----------------------------

def init_params(key, D, H, hidden):
    keys = jax.random.split(key, 14)
    s = 0.05

    def w(k, shape):
        return jax.random.normal(k, shape, jnp.float32) * s

    return {
        "attn": {"w_qkv": w(keys[0], (D, 3 * D)), "b_qkv": w(keys[1], (3 * D,)),
                 "w_out": w(keys[2], (D, D)), "b_out": w(keys[3], (D,))},
        "cross": {"w_kv": w(keys[4], (D, 2 * D)), "b_kv": w(keys[5], (2 * D,)),
                  "w_q": w(keys[6], (D, D)), "b_q": w(keys[7], (D,)),
                  "w_out": w(keys[8], (D, D)), "b_out": w(keys[9], (D,))},
        "ffn": {"w1": w(keys[10], (D, hidden)), "b1": w(keys[11], (hidden,)),
                "w2": w(keys[12], (hidden, D)), "b2": w(keys[13], (D,))},
        "norm1": {"gamma": jnp.ones((D,), jnp.float32), "beta": jnp.zeros((D,), jnp.float32)},
        "norm2": {"gamma": jnp.ones((D,), jnp.float32), "beta": jnp.zeros((D,), jnp.float32)},
        "norm3": {"gamma": jnp.ones((D,), jnp.float32), "beta": jnp.zeros((D,), jnp.float32)},
    }


# ----------------------------- main -----------------------------

if __name__ == "__main__":
    # Small shapes, but lane-friendly: head_dim = 128 so every per-head slice inside
    # the attention kernels is a full 128-lane (vreg-width) slab.
    B, S, D, H, HID = 2, 16, 256, 2, 512

    key = jax.random.PRNGKey(0)
    kx, ky, kp = jax.random.split(key, 3)
    x = jax.random.normal(kx, (B, S, D), jnp.float32)
    y = jax.random.normal(ky, (B, S, D), jnp.float32)
    params = init_params(kp, D, H, HID)

    # causal mask for self-attention, no masking for cross-attention
    self_mask = jnp.where(jnp.tril(jnp.ones((S, S), bool)), 0.0, -1e9).astype(jnp.float32)
    cross_mask = jnp.zeros((S, S), jnp.float32)

    decoder = jax.jit(decoder_layer, static_argnums=(5,))
    out = decoder(x, y, self_mask, cross_mask, params, H)
    out = jax.block_until_ready(out)

    ref = _ref_decoder_layer(x, y, self_mask, cross_mask, params, H)
    assert out.shape == (B, S, D)
    max_err = float(jnp.max(jnp.abs(out - ref)))
    assert jnp.allclose(out, ref, atol=5e-3, rtol=5e-3), f"mismatch, max_err={max_err}"

    print("KERNEL_OK")
</pallas_src>

<mosaic_0001>
module attributes {stable_mosaic.version = 11 : i64} {
  func.func @kernel(%arg0: i32, %arg1: memref<1x16x256xf32, #tpu.memory_space<vmem>>, %arg2: memref<16x16xf32, #tpu.memory_space<vmem>>, %arg3: memref<256x768xbf16, #tpu.memory_space<vmem>>, %arg4: memref<1x768xf32, #tpu.memory_space<vmem>>, %arg5: memref<256x256xbf16, #tpu.memory_space<vmem>>, %arg6: memref<1x256xf32, #tpu.memory_space<vmem>>, %arg7: memref<1x256xf32, #tpu.memory_space<vmem>>, %arg8: memref<1x256xf32, #tpu.memory_space<vmem>>, %arg9: memref<1x16x256xf32, #tpu.memory_space<vmem>>) attributes {dimension_semantics = [#tpu.dimension_semantics<parallel>], iteration_bounds = array<i64: 2>, scalar_prefetch = 0 : i64, scratch_operands = 0 : i64, tpu.core_type = #tpu.core_type<tc>, window_params = [{transform_indices = @transform_0, window_bounds = array<i64: 1, 16, 256>}, {pipeline_mode = #tpu.pipeline_mode<synchronous>, transform_indices = @transform_1, window_bounds = array<i64: 16, 16>}, {pipeline_mode = #tpu.pipeline_mode<synchronous>, transform_indices = @transform_2, window_bounds = array<i64: 256, 768>}, {pipeline_mode = #tpu.pipeline_mode<synchronous>, transform_indices = @transform_3, window_bounds = array<i64: 1, 768>}, {pipeline_mode = #tpu.pipeline_mode<synchronous>, transform_indices = @transform_4, window_bounds = array<i64: 256, 256>}, {pipeline_mode = #tpu.pipeline_mode<synchronous>, transform_indices = @transform_5, window_bounds = array<i64: 1, 256>}, {pipeline_mode = #tpu.pipeline_mode<synchronous>, transform_indices = @transform_6, window_bounds = array<i64: 1, 256>}, {pipeline_mode = #tpu.pipeline_mode<synchronous>, transform_indices = @transform_7, window_bounds = array<i64: 1, 256>}, {transform_indices = @transform_8, window_bounds = array<i64: 1, 16, 256>}]} {
    %c0 = arith.constant 0 : index
    %c0_0 = arith.constant 0 : index
    %0 = vector.load %arg2[%c0, %c0_0] : memref<16x16xf32, #tpu.memory_space<vmem>>, vector<16x16xf32>
    %c0_1 = arith.constant 0 : index
    %c0_2 = arith.constant 0 : index
    %c0_3 = arith.constant 0 : index
    %1 = vector.load %arg1[%c0_1, %c0_2, %c0_3] : memref<1x16x256xf32, #tpu.memory_space<vmem>>, vector<1x16x256xf32>
    %2 = vector.shape_cast %1 : vector<1x16x256xf32> to vector<16x256xf32>
    %3 = arith.truncf %2 : vector<16x256xf32> to vector<16x256xbf16>
    %c0_4 = arith.constant 0 : index
    %c0_5 = arith.constant 0 : index
    %4 = vector.load %arg3[%c0_4, %c0_5] : memref<256x768xbf16, #tpu.memory_space<vmem>>, vector<256x768xbf16>
    %cst = arith.constant dense<0.000000e+00> : vector<16x768xf32>
    %5 = tpu.matmul %3, %4, %cst {dimension_numbers = #tpu.dot_dimension_numbers<[1], [0], [0], [1], [0, 0, 1, 1], [], []>} : vector<16x256xbf16>, vector<256x768xbf16>, vector<16x768xf32> -> vector<16x768xf32>
    %c0_6 = arith.constant 0 : index
    %c0_7 = arith.constant 0 : index
    %6 = vector.load %arg4[%c0_6, %c0_7] : memref<1x768xf32, #tpu.memory_space<vmem>>, vector<1x768xf32>
    %7 = vector.broadcast %6 : vector<1x768xf32> to vector<16x768xf32>
    %8 = arith.addf %5, %7 : vector<16x768xf32>
    %cst_8 = arith.constant 0.000000e+00 : f32
    %9 = vector.broadcast %cst_8 : f32 to vector<16x256xf32>
    %10 = vector.extract_strided_slice %8 {offsets = [0, 0], sizes = [16, 128], strides = [1, 1]} : vector<16x768xf32> to vector<16x128xf32>
    %11 = vector.extract_strided_slice %8 {offsets = [0, 128], sizes = [16, 128], strides = [1, 1]} : vector<16x768xf32> to vector<16x128xf32>
    %12 = vector.extract_strided_slice %8 {offsets = [0, 256], sizes = [16, 128], strides = [1, 1]} : vector<16x768xf32> to vector<16x128xf32>
    %13 = arith.truncf %10 : vector<16x128xf32> to vector<16x128xbf16>
    %14 = arith.truncf %11 : vector<16x128xf32> to vector<16x128xbf16>
    %15 = arith.truncf %12 : vector<16x128xf32> to vector<16x128xbf16>
    %cst_9 = arith.constant dense<0.000000e+00> : vector<16x16xf32>
    %16 = tpu.matmul %13, %14, %cst_9 {dimension_numbers = #tpu.dot_dimension_numbers<[1], [1], [0], [0], [0, 0, 1, 0], [], []>} : vector<16x128xbf16>, vector<16x128xbf16>, vector<16x16xf32> -> vector<16x16xf32>
    %cst_10 = arith.constant 0.0883883461 : f32
    %17 = vector.broadcast %cst_10 : f32 to vector<16x16xf32>
    %18 = arith.mulf %16, %17 : vector<16x16xf32>
    %19 = arith.addf %18, %0 : vector<16x16xf32>
    %cst_11 = arith.constant dense<0xFF800000> : vector<16xf32>
    %20 = vector.multi_reduction <maximumf>, %19, %cst_11 [1] : vector<16x16xf32> to vector<16xf32>
    %21 = vector.shape_cast %20 : vector<16xf32> to vector<16x1xf32>
    %22 = vector.broadcast %21 : vector<16x1xf32> to vector<16x16xf32>
    %23 = arith.subf %19, %22 : vector<16x16xf32>
    %24 = math.exp %23 : vector<16x16xf32>
    %cst_12 = arith.constant dense<0.000000e+00> : vector<16xf32>
    %25 = vector.multi_reduction <add>, %24, %cst_12 [1] : vector<16x16xf32> to vector<16xf32>
    %26 = vector.shape_cast %25 : vector<16xf32> to vector<16x1xf32>
    %27 = vector.broadcast %26 : vector<16x1xf32> to vector<16x16xf32>
    %28 = arith.divf %24, %27 : vector<16x16xf32>
    %29 = arith.truncf %28 : vector<16x16xf32> to vector<16x16xbf16>
    %cst_13 = arith.constant dense<0.000000e+00> : vector<16x128xf32>
    %30 = tpu.matmul %29, %15, %cst_13 {dimension_numbers = #tpu.dot_dimension_numbers<[1], [0], [0], [1], [0, 0, 1, 1], [], []>} : vector<16x16xbf16>, vector<16x128xbf16>, vector<16x128xf32> -> vector<16x128xf32>
    %c0_14 = arith.constant 0 : index
    %c0_15 = arith.constant 0 : index
    %31 = vector.load %arg5[%c0_14, %c0_15] : memref<256x256xbf16, #tpu.memory_space<vmem>>, vector<128x256xbf16>
    %32 = arith.truncf %30 : vector<16x128xf32> to vector<16x128xbf16>
    %cst_16 = arith.constant dense<0.000000e+00> : vector<16x256xf32>
    %33 = tpu.matmul %32, %31, %cst_16 {dimension_numbers = #tpu.dot_dimension_numbers<[1], [0], [0], [1], [0, 0, 1, 1], [], []>} : vector<16x128xbf16>, vector<128x256xbf16>, vector<16x256xf32> -> vector<16x256xf32>
    %34 = arith.addf %9, %33 : vector<16x256xf32>
    %35 = vector.extract_strided_slice %8 {offsets = [0, 384], sizes = [16, 128], strides = [1, 1]} : vector<16x768xf32> to vector<16x128xf32>
    %36 = vector.extract_strided_slice %8 {offsets = [0, 512], sizes = [16, 128], strides = [1, 1]} : vector<16x768xf32> to vector<16x128xf32>
    %37 = vector.extract_strided_slice %8 {offsets = [0, 640], sizes = [16, 128], strides = [1, 1]} : vector<16x768xf32> to vector<16x128xf32>
    %38 = arith.truncf %35 : vector<16x128xf32> to vector<16x128xbf16>
    %39 = arith.truncf %36 : vector<16x128xf32> to vector<16x128xbf16>
    %40 = arith.truncf %37 : vector<16x128xf32> to vector<16x128xbf16>
    %cst_17 = arith.constant dense<0.000000e+00> : vector<16x16xf32>
    %41 = tpu.matmul %38, %39, %cst_17 {dimension_numbers = #tpu.dot_dimension_numbers<[1], [1], [0], [0], [0, 0, 1, 0], [], []>} : vector<16x128xbf16>, vector<16x128xbf16>, vector<16x16xf32> -> vector<16x16xf32>
    %cst_18 = arith.constant 0.0883883461 : f32
    %42 = vector.broadcast %cst_18 : f32 to vector<16x16xf32>
    %43 = arith.mulf %41, %42 : vector<16x16xf32>
    %44 = arith.addf %43, %0 : vector<16x16xf32>
    %cst_19 = arith.constant dense<0xFF800000> : vector<16xf32>
    %45 = vector.multi_reduction <maximumf>, %44, %cst_19 [1] : vector<16x16xf32> to vector<16xf32>
    %46 = vector.shape_cast %45 : vector<16xf32> to vector<16x1xf32>
    %47 = vector.broadcast %46 : vector<16x1xf32> to vector<16x16xf32>
    %48 = arith.subf %44, %47 : vector<16x16xf32>
    %49 = math.exp %48 : vector<16x16xf32>
    %cst_20 = arith.constant dense<0.000000e+00> : vector<16xf32>
    %50 = vector.multi_reduction <add>, %49, %cst_20 [1] : vector<16x16xf32> to vector<16xf32>
    %51 = vector.shape_cast %50 : vector<16xf32> to vector<16x1xf32>
    %52 = vector.broadcast %51 : vector<16x1xf32> to vector<16x16xf32>
    %53 = arith.divf %49, %52 : vector<16x16xf32>
    %54 = arith.truncf %53 : vector<16x16xf32> to vector<16x16xbf16>
    %cst_21 = arith.constant dense<0.000000e+00> : vector<16x128xf32>
    %55 = tpu.matmul %54, %40, %cst_21 {dimension_numbers = #tpu.dot_dimension_numbers<[1], [0], [0], [1], [0, 0, 1, 1], [], []>} : vector<16x16xbf16>, vector<16x128xbf16>, vector<16x128xf32> -> vector<16x128xf32>
    %c128 = arith.constant 128 : index
    %c0_22 = arith.constant 0 : index
    %56 = vector.load %arg5[%c128, %c0_22] : memref<256x256xbf16, #tpu.memory_space<vmem>>, vector<128x256xbf16>
    %57 = arith.truncf %55 : vector<16x128xf32> to vector<16x128xbf16>
    %cst_23 = arith.constant dense<0.000000e+00> : vector<16x256xf32>
    %58 = tpu.matmul %57, %56, %cst_23 {dimension_numbers = #tpu.dot_dimension_numbers<[1], [0], [0], [1], [0, 0, 1, 1], [], []>} : vector<16x128xbf16>, vector<128x256xbf16>, vector<16x256xf32> -> vector<16x256xf32>
    %59 = arith.addf %34, %58 : vector<16x256xf32>
    %c0_24 = arith.constant 0 : index
    %c0_25 = arith.constant 0 : index
    %60 = vector.load %arg6[%c0_24, %c0_25] : memref<1x256xf32, #tpu.memory_space<vmem>>, vector<1x256xf32>
    %61 = vector.broadcast %60 : vector<1x256xf32> to vector<16x256xf32>
    %62 = arith.addf %59, %61 : vector<16x256xf32>
    %63 = arith.addf %62, %2 : vector<16x256xf32>
    %c0_26 = arith.constant 0 : index
    %c0_27 = arith.constant 0 : index
    %64 = vector.load %arg7[%c0_26, %c0_27] : memref<1x256xf32, #tpu.memory_space<vmem>>, vector<1x256xf32>
    %c0_28 = arith.constant 0 : index
    %c0_29 = arith.constant 0 : index
    %65 = vector.load %arg8[%c0_28, %c0_29] : memref<1x256xf32, #tpu.memory_space<vmem>>, vector<1x256xf32>
    %cst_30 = arith.constant dense<0.000000e+00> : vector<16xf32>
    %66 = vector.multi_reduction <add>, %63, %cst_30 [1] : vector<16x256xf32> to vector<16xf32>
    %67 = vector.shape_cast %66 : vector<16xf32> to vector<16x1xf32>
    %cst_31 = arith.constant 2.560000e+02 : f32
    %68 = vector.broadcast %cst_31 : f32 to vector<16x1xf32>
    %69 = arith.divf %67, %68 : vector<16x1xf32>
    %70 = vector.broadcast %69 : vector<16x1xf32> to vector<16x256xf32>
    %71 = arith.subf %63, %70 : vector<16x256xf32>
    %72 = arith.mulf %71, %71 : vector<16x256xf32>
    %cst_32 = arith.constant dense<0.000000e+00> : vector<16xf32>
    %73 = vector.multi_reduction <add>, %72, %cst_32 [1] : vector<16x256xf32> to vector<16xf32>
    %74 = vector.shape_cast %73 : vector<16xf32> to vector<16x1xf32>
    %cst_33 = arith.constant 2.560000e+02 : f32
    %75 = vector.broadcast %cst_33 : f32 to vector<16x1xf32>
    %76 = arith.divf %74, %75 : vector<16x1xf32>
    %77 = vector.broadcast %69 : vector<16x1xf32> to vector<16x256xf32>
    %78 = arith.subf %63, %77 : vector<16x256xf32>
    %cst_34 = arith.constant 9.99999974E-6 : f32
    %79 = vector.broadcast %cst_34 : f32 to vector<16x1xf32>
    %80 = arith.addf %76, %79 : vector<16x1xf32>
    %81 = math.rsqrt %80 : vector<16x1xf32>
    %82 = vector.broadcast %81 : vector<16x1xf32> to vector<16x256xf32>
    %83 = arith.mulf %78, %82 : vector<16x256xf32>
    %84 = vector.broadcast %64 : vector<1x256xf32> to vector<16x256xf32>
    %85 = arith.mulf %84, %83 : vector<16x256xf32>
    %86 = vector.broadcast %65 : vector<1x256xf32> to vector<16x256xf32>
    %87 = arith.addf %85, %86 : vector<16x256xf32>
    %c0_35 = arith.constant 0 : index
    %c0_36 = arith.constant 0 : index
    %c0_37 = arith.constant 0 : index
    %88 = vector.load %arg9[%c0_35, %c0_36, %c0_37] : memref<1x16x256xf32, #tpu.memory_space<vmem>>, vector<1x16x256xf32>
    %89 = vector.shape_cast %88 : vector<1x16x256xf32> to vector<16x256xf32>
    %90 = vector.shape_cast %87 : vector<16x256xf32> to vector<1x16x256xf32>
    tpu.vector_store %arg9[%c0_35, %c0_36, %c0_37], %90 {strides = array<i32>} : memref<1x16x256xf32, #tpu.memory_space<vmem>>, vector<1x16x256xf32>,
    return
  }
  func.func @transform_0(%arg0: i32) -> (i32, i32, i32) {
    %c0_i32 = arith.constant 0 : i32
    %c0_i32_0 = arith.constant 0 : i32
    %c0_i32_1 = arith.constant 0 : i32
    return %arg0, %c0_i32, %c0_i32_0 : i32, i32, i32
  }
  func.func @transform_1(%arg0: i32) -> (i32, i32) {
    %c0_i32 = arith.constant 0 : i32
    %c0_i32_0 = arith.constant 0 : i32
    %c0_i32_1 = arith.constant 0 : i32
    return %c0_i32, %c0_i32_0 : i32, i32
  }
  func.func @transform_2(%arg0: i32) -> (i32, i32) {
    %c0_i32 = arith.constant 0 : i32
    %c0_i32_0 = arith.constant 0 : i32
    %c0_i32_1 = arith.constant 0 : i32
    return %c0_i32, %c0_i32_0 : i32, i32
  }
  func.func @transform_3(%arg0: i32) -> (i32, i32) {
    %c0_i32 = arith.constant 0 : i32
    %c0_i32_0 = arith.constant 0 : i32
    %c0_i32_1 = arith.constant 0 : i32
    return %c0_i32, %c0_i32_0 : i32, i32
  }
  func.func @transform_4(%arg0: i32) -> (i32, i32) {
    %c0_i32 = arith.constant 0 : i32
    %c0_i32_0 = arith.constant 0 : i32
    %c0_i32_1 = arith.constant 0 : i32
    return %c0_i32, %c0_i32_0 : i32, i32
  }
  func.func @transform_5(%arg0: i32) -> (i32, i32) {
    %c0_i32 = arith.constant 0 : i32
    %c0_i32_0 = arith.constant 0 : i32
    %c0_i32_1 = arith.constant 0 : i32
    return %c0_i32, %c0_i32_0 : i32, i32
  }
  func.func @transform_6(%arg0: i32) -> (i32, i32) {
    %c0_i32 = arith.constant 0 : i32
    %c0_i32_0 = arith.constant 0 : i32
    %c0_i32_1 = arith.constant 0 : i32
    return %c0_i32, %c0_i32_0 : i32, i32
  }
  func.func @transform_7(%arg0: i32) -> (i32, i32) {
    %c0_i32 = arith.constant 0 : i32
    %c0_i32_0 = arith.constant 0 : i32
    %c0_i32_1 = arith.constant 0 : i32
    return %c0_i32, %c0_i32_0 : i32, i32
  }
  func.func @transform_8(%arg0: i32) -> (i32, i32, i32) {
    %c0_i32 = arith.constant 0 : i32
    %c0_i32_0 = arith.constant 0 : i32
    %c0_i32_1 = arith.constant 0 : i32
    return %arg0, %c0_i32, %c0_i32_0 : i32, i32, i32
  }
}

module attributes {stable_mosaic.version = 11 : i64} {
  func.func @kernel(%arg0: i32, %arg1: memref<1x16x256xf32, #tpu.memory_space<vmem>>, %arg2: memref<1x16x256xf32, #tpu.memory_space<vmem>>, %arg3: memref<16x16xf32, #tpu.memory_space<vmem>>, %arg4: memref<256x512xbf16, #tpu.memory_space<vmem>>, %arg5: memref<1x512xf32, #tpu.memory_space<vmem>>, %arg6: memref<256x256xbf16, #tpu.memory_space<vmem>>, %arg7: memref<1x256xf32, #tpu.memory_space<vmem>>, %arg8: memref<256x256xbf16, #tpu.memory_space<vmem>>, %arg9: memref<1x256xf32, #tpu.memory_space<vmem>>, %arg10: memref<1x256xf32, #tpu.memory_space<vmem>>, %arg11: memref<1x256xf32, #tpu.memory_space<vmem>>, %arg12: memref<1x16x256xf32, #tpu.memory_space<vmem>>) attributes {dimension_semantics = [#tpu.dimension_semantics<parallel>], iteration_bounds = array<i64: 2>, scalar_prefetch = 0 : i64, scratch_operands = 0 : i64, tpu.core_type = #tpu.core_type<tc>, window_params = [{transform_indices = @transform_0, window_bounds = array<i64: 1, 16, 256>}, {transform_indices = @transform_1, window_bounds = array<i64: 1, 16, 256>}, {pipeline_mode = #tpu.pipeline_mode<synchronous>, transform_indices = @transform_2, window_bounds = array<i64: 16, 16>}, {pipeline_mode = #tpu.pipeline_mode<synchronous>, transform_indices = @transform_3, window_bounds = array<i64: 256, 512>}, {pipeline_mode = #tpu.pipeline_mode<synchronous>, transform_indices = @transform_4, window_bounds = array<i64: 1, 512>}, {pipeline_mode = #tpu.pipeline_mode<synchronous>, transform_indices = @transform_5, window_bounds = array<i64: 256, 256>}, {pipeline_mode = #tpu.pipeline_mode<synchronous>, transform_indices = @transform_6, window_bounds = array<i64: 1, 256>}, {pipeline_mode = #tpu.pipeline_mode<synchronous>, transform_indices = @transform_7, window_bounds = array<i64: 256, 256>}, {pipeline_mode = #tpu.pipeline_mode<synchronous>, transform_indices = @transform_8, window_bounds = array<i64: 1, 256>}, {pipeline_mode = #tpu.pipeline_mode<synchronous>, transform_indices = @transform_9, window_bounds = array<i64: 1, 256>}, {pipeline_mode = #tpu.pipeline_mode<synchronous>, transform_indices = @transform_10, window_bounds = array<i64: 1, 256>}, {transform_indices = @transform_11, window_bounds = array<i64: 1, 16, 256>}]} {
    %c0 = arith.constant 0 : index
    %c0_0 = arith.constant 0 : index
    %0 = vector.load %arg3[%c0, %c0_0] : memref<16x16xf32, #tpu.memory_space<vmem>>, vector<16x16xf32>
    %c0_1 = arith.constant 0 : index
    %c0_2 = arith.constant 0 : index
    %c0_3 = arith.constant 0 : index
    %1 = vector.load %arg1[%c0_1, %c0_2, %c0_3] : memref<1x16x256xf32, #tpu.memory_space<vmem>>, vector<1x16x256xf32>
    %2 = vector.shape_cast %1 : vector<1x16x256xf32> to vector<16x256xf32>
    %3 = arith.truncf %2 : vector<16x256xf32> to vector<16x256xbf16>
    %c0_4 = arith.constant 0 : index
    %c0_5 = arith.constant 0 : index
    %4 = vector.load %arg4[%c0_4, %c0_5] : memref<256x512xbf16, #tpu.memory_space<vmem>>, vector<256x512xbf16>
    %cst = arith.constant dense<0.000000e+00> : vector<16x512xf32>
    %5 = tpu.matmul %3, %4, %cst {dimension_numbers = #tpu.dot_dimension_numbers<[1], [0], [0], [1], [0, 0, 1, 1], [], []>} : vector<16x256xbf16>, vector<256x512xbf16>, vector<16x512xf32> -> vector<16x512xf32>
    %c0_6 = arith.constant 0 : index
    %c0_7 = arith.constant 0 : index
    %6 = vector.load %arg5[%c0_6, %c0_7] : memref<1x512xf32, #tpu.memory_space<vmem>>, vector<1x512xf32>
    %7 = vector.broadcast %6 : vector<1x512xf32> to vector<16x512xf32>
    %8 = arith.addf %5, %7 : vector<16x512xf32>
    %c0_8 = arith.constant 0 : index
    %c0_9 = arith.constant 0 : index
    %c0_10 = arith.constant 0 : index
    %9 = vector.load %arg2[%c0_8, %c0_9, %c0_10] : memref<1x16x256xf32, #tpu.memory_space<vmem>>, vector<1x16x256xf32>
    %10 = vector.shape_cast %9 : vector<1x16x256xf32> to vector<16x256xf32>
    %11 = arith.truncf %10 : vector<16x256xf32> to vector<16x256xbf16>
    %c0_11 = arith.constant 0 : index
    %c0_12 = arith.constant 0 : index
    %12 = vector.load %arg6[%c0_11, %c0_12] : memref<256x256xbf16, #tpu.memory_space<vmem>>, vector<256x256xbf16>
    %cst_13 = arith.constant dense<0.000000e+00> : vector<16x256xf32>
    %13 = tpu.matmul %11, %12, %cst_13 {dimension_numbers = #tpu.dot_dimension_numbers<[1], [0], [0], [1], [0, 0, 1, 1], [], []>} : vector<16x256xbf16>, vector<256x256xbf16>, vector<16x256xf32> -> vector<16x256xf32>
    %c0_14 = arith.constant 0 : index
    %c0_15 = arith.constant 0 : index
    %14 = vector.load %arg7[%c0_14, %c0_15] : memref<1x256xf32, #tpu.memory_space<vmem>>, vector<1x256xf32>
    %15 = vector.broadcast %14 : vector<1x256xf32> to vector<16x256xf32>
    %16 = arith.addf %13, %15 : vector<16x256xf32>
    %cst_16 = arith.constant 0.000000e+00 : f32
    %17 = vector.broadcast %cst_16 : f32 to vector<16x256xf32>
    %18 = vector.extract_strided_slice %16 {offsets = [0, 0], sizes = [16, 128], strides = [1, 1]} : vector<16x256xf32> to vector<16x128xf32>
    %19 = vector.extract_strided_slice %8 {offsets = [0, 0], sizes = [16, 128], strides = [1, 1]} : vector<16x512xf32> to vector<16x128xf32>
    %20 = vector.extract_strided_slice %8 {offsets = [0, 128], sizes = [16, 128], strides = [1, 1]} : vector<16x512xf32> to vector<16x128xf32>
    %21 = arith.truncf %18 : vector<16x128xf32> to vector<16x128xbf16>
    %22 = arith.truncf %19 : vector<16x128xf32> to vector<16x128xbf16>
    %23 = arith.truncf %20 : vector<16x128xf32> to vector<16x128xbf16>
    %cst_17 = arith.constant dense<0.000000e+00> : vector<16x16xf32>
    %24 = tpu.matmul %21, %22, %cst_17 {dimension_numbers = #tpu.dot_dimension_numbers<[1], [1], [0], [0], [0, 0, 1, 0], [], []>} : vector<16x128xbf16>, vector<16x128xbf16>, vector<16x16xf32> -> vector<16x16xf32>
    %cst_18 = arith.constant 0.0883883461 : f32
    %25 = vector.broadcast %cst_18 : f32 to vector<16x16xf32>
    %26 = arith.mulf %24, %25 : vector<16x16xf32>
    %27 = arith.addf %26, %0 : vector<16x16xf32>
    %cst_19 = arith.constant dense<0xFF800000> : vector<16xf32>
    %28 = vector.multi_reduction <maximumf>, %27, %cst_19 [1] : vector<16x16xf32> to vector<16xf32>
    %29 = vector.shape_cast %28 : vector<16xf32> to vector<16x1xf32>
    %30 = vector.broadcast %29 : vector<16x1xf32> to vector<16x16xf32>
    %31 = arith.subf %27, %30 : vector<16x16xf32>
    %32 = math.exp %31 : vector<16x16xf32>
    %cst_20 = arith.constant dense<0.000000e+00> : vector<16xf32>
    %33 = vector.multi_reduction <add>, %32, %cst_20 [1] : vector<16x16xf32> to vector<16xf32>
    %34 = vector.shape_cast %33 : vector<16xf32> to vector<16x1xf32>
    %35 = vector.broadcast %34 : vector<16x1xf32> to vector<16x16xf32>
    %36 = arith.divf %32, %35 : vector<16x16xf32>
    %37 = arith.truncf %36 : vector<16x16xf32> to vector<16x16xbf16>
    %cst_21 = arith.constant dense<0.000000e+00> : vector<16x128xf32>
    %38 = tpu.matmul %37, %23, %cst_21 {dimension_numbers = #tpu.dot_dimension_numbers<[1], [0], [0], [1], [0, 0, 1, 1], [], []>} : vector<16x16xbf16>, vector<16x128xbf16>, vector<16x128xf32> -> vector<16x128xf32>
    %c0_22 = arith.constant 0 : index
    %c0_23 = arith.constant 0 : index
    %39 = vector.load %arg8[%c0_22, %c0_23] : memref<256x256xbf16, #tpu.memory_space<vmem>>, vector<128x256xbf16>
    %40 = arith.truncf %38 : vector<16x128xf32> to vector<16x128xbf16>
    %cst_24 = arith.constant dense<0.000000e+00> : vector<16x256xf32>
    %41 = tpu.matmul %40, %39, %cst_24 {dimension_numbers = #tpu.dot_dimension_numbers<[1], [0], [0], [1], [0, 0, 1, 1], [], []>} : vector<16x128xbf16>, vector<128x256xbf16>, vector<16x256xf32> -> vector<16x256xf32>
    %42 = arith.addf %17, %41 : vector<16x256xf32>
    %43 = vector.extract_strided_slice %16 {offsets = [0, 128], sizes = [16, 128], strides = [1, 1]} : vector<16x256xf32> to vector<16x128xf32>
    %44 = vector.extract_strided_slice %8 {offsets = [0, 256], sizes = [16, 128], strides = [1, 1]} : vector<16x512xf32> to vector<16x128xf32>
    %45 = vector.extract_strided_slice %8 {offsets = [0, 384], sizes = [16, 128], strides = [1, 1]} : vector<16x512xf32> to vector<16x128xf32>
    %46 = arith.truncf %43 : vector<16x128xf32> to vector<16x128xbf16>
    %47 = arith.truncf %44 : vector<16x128xf32> to vector<16x128xbf16>
    %48 = arith.truncf %45 : vector<16x128xf32> to vector<16x128xbf16>
    %cst_25 = arith.constant dense<0.000000e+00> : vector<16x16xf32>
    %49 = tpu.matmul %46, %47, %cst_25 {dimension_numbers = #tpu.dot_dimension_numbers<[1], [1], [0], [0], [0, 0, 1, 0], [], []>} : vector<16x128xbf16>, vector<16x128xbf16>, vector<16x16xf32> -> vector<16x16xf32>
    %cst_26 = arith.constant 0.0883883461 : f32
    %50 = vector.broadcast %cst_26 : f32 to vector<16x16xf32>
    %51 = arith.mulf %49, %50 : vector<16x16xf32>
    %52 = arith.addf %51, %0 : vector<16x16xf32>
    %cst_27 = arith.constant dense<0xFF800000> : vector<16xf32>
    %53 = vector.multi_reduction <maximumf>, %52, %cst_27 [1] : vector<16x16xf32> to vector<16xf32>
    %54 = vector.shape_cast %53 : vector<16xf32> to vector<16x1xf32>
    %55 = vector.broadcast %54 : vector<16x1xf32> to vector<16x16xf32>
    %56 = arith.subf %52, %55 : vector<16x16xf32>
    %57 = math.exp %56 : vector<16x16xf32>
    %cst_28 = arith.constant dense<0.000000e+00> : vector<16xf32>
    %58 = vector.multi_reduction <add>, %57, %cst_28 [1] : vector<16x16xf32> to vector<16xf32>
    %59 = vector.shape_cast %58 : vector<16xf32> to vector<16x1xf32>
    %60 = vector.broadcast %59 : vector<16x1xf32> to vector<16x16xf32>
    %61 = arith.divf %57, %60 : vector<16x16xf32>
    %62 = arith.truncf %61 : vector<16x16xf32> to vector<16x16xbf16>
    %cst_29 = arith.constant dense<0.000000e+00> : vector<16x128xf32>
    %63 = tpu.matmul %62, %48, %cst_29 {dimension_numbers = #tpu.dot_dimension_numbers<[1], [0], [0], [1], [0, 0, 1, 1], [], []>} : vector<16x16xbf16>, vector<16x128xbf16>, vector<16x128xf32> -> vector<16x128xf32>
    %c128 = arith.constant 128 : index
    %c0_30 = arith.constant 0 : index
    %64 = vector.load %arg8[%c128, %c0_30] : memref<256x256xbf16, #tpu.memory_space<vmem>>, vector<128x256xbf16>
    %65 = arith.truncf %63 : vector<16x128xf32> to vector<16x128xbf16>
    %cst_31 = arith.constant dense<0.000000e+00> : vector<16x256xf32>
    %66 = tpu.matmul %65, %64, %cst_31 {dimension_numbers = #tpu.dot_dimension_numbers<[1], [0], [0], [1], [0, 0, 1, 1], [], []>} : vector<16x128xbf16>, vector<128x256xbf16>, vector<16x256xf32> -> vector<16x256xf32>
    %67 = arith.addf %42, %66 : vector<16x256xf32>
    %c0_32 = arith.constant 0 : index
    %c0_33 = arith.constant 0 : index
    %68 = vector.load %arg9[%c0_32, %c0_33] : memref<1x256xf32, #tpu.memory_space<vmem>>, vector<1x256xf32>
    %69 = vector.broadcast %68 : vector<1x256xf32> to vector<16x256xf32>
    %70 = arith.addf %67, %69 : vector<16x256xf32>
    %c0_34 = arith.constant 0 : index
    %c0_35 = arith.constant 0 : index
    %71 = vector.load %arg10[%c0_34, %c0_35] : memref<1x256xf32, #tpu.memory_space<vmem>>, vector<1x256xf32>
    %c0_36 = arith.constant 0 : index
    %c0_37 = arith.constant 0 : index
    %72 = vector.load %arg11[%c0_36, %c0_37] : memref<1x256xf32, #tpu.memory_space<vmem>>, vector<1x256xf32>
    %cst_38 = arith.constant dense<0.000000e+00> : vector<16xf32>
    %73 = vector.multi_reduction <add>, %70, %cst_38 [1] : vector<16x256xf32> to vector<16xf32>
    %74 = vector.shape_cast %73 : vector<16xf32> to vector<16x1xf32>
    %cst_39 = arith.constant 2.560000e+02 : f32
    %75 = vector.broadcast %cst_39 : f32 to vector<16x1xf32>
    %76 = arith.divf %74, %75 : vector<16x1xf32>
    %77 = vector.broadcast %76 : vector<16x1xf32> to vector<16x256xf32>
    %78 = arith.subf %70, %77 : vector<16x256xf32>
    %79 = arith.mulf %78, %78 : vector<16x256xf32>
    %cst_40 = arith.constant dense<0.000000e+00> : vector<16xf32>
    %80 = vector.multi_reduction <add>, %79, %cst_40 [1] : vector<16x256xf32> to vector<16xf32>
    %81 = vector.shape_cast %80 : vector<16xf32> to vector<16x1xf32>
    %cst_41 = arith.constant 2.560000e+02 : f32
    %82 = vector.broadcast %cst_41 : f32 to vector<16x1xf32>
    %83 = arith.divf %81, %82 : vector<16x1xf32>
    %84 = vector.broadcast %76 : vector<16x1xf32> to vector<16x256xf32>
    %85 = arith.subf %70, %84 : vector<16x256xf32>
    %cst_42 = arith.constant 9.99999974E-6 : f32
    %86 = vector.broadcast %cst_42 : f32 to vector<16x1xf32>
    %87 = arith.addf %83, %86 : vector<16x1xf32>
    %88 = math.rsqrt %87 : vector<16x1xf32>
    %89 = vector.broadcast %88 : vector<16x1xf32> to vector<16x256xf32>
    %90 = arith.mulf %85, %89 : vector<16x256xf32>
    %91 = vector.broadcast %71 : vector<1x256xf32> to vector<16x256xf32>
    %92 = arith.mulf %91, %90 : vector<16x256xf32>
    %93 = vector.broadcast %72 : vector<1x256xf32> to vector<16x256xf32>
    %94 = arith.addf %92, %93 : vector<16x256xf32>
    %c0_43 = arith.constant 0 : index
    %c0_44 = arith.constant 0 : index
    %c0_45 = arith.constant 0 : index
    %95 = vector.load %arg12[%c0_43, %c0_44, %c0_45] : memref<1x16x256xf32, #tpu.memory_space<vmem>>, vector<1x16x256xf32>
    %96 = vector.shape_cast %95 : vector<1x16x256xf32> to vector<16x256xf32>
    %97 = vector.shape_cast %94 : vector<16x256xf32> to vector<1x16x256xf32>
    tpu.vector_store %arg12[%c0_43, %c0_44, %c0_45], %97 {strides = array<i32>} : memref<1x16x256xf32, #tpu.memory_space<vmem>>, vector<1x16x256xf32>,
    return
  }
  func.func @transform_0(%arg0: i32) -> (i32, i32, i32) {
    %c0_i32 = arith.constant 0 : i32
    %c0_i32_0 = arith.constant 0 : i32
    %c0_i32_1 = arith.constant 0 : i32
    return %arg0, %c0_i32, %c0_i32_0 : i32, i32, i32
  }
  func.func @transform_1(%arg0: i32) -> (i32, i32, i32) {
    %c0_i32 = arith.constant 0 : i32
    %c0_i32_0 = arith.constant 0 : i32
    %c0_i32_1 = arith.constant 0 : i32
    return %arg0, %c0_i32, %c0_i32_0 : i32, i32, i32
  }
  func.func @transform_2(%arg0: i32) -> (i32, i32) {
    %c0_i32 = arith.constant 0 : i32
    %c0_i32_0 = arith.constant 0 : i32
    %c0_i32_1 = arith.constant 0 : i32
    return %c0_i32, %c0_i32_0 : i32, i32
  }
  func.func @transform_3(%arg0: i32) -> (i32, i32) {
    %c0_i32 = arith.constant 0 : i32
    %c0_i32_0 = arith.constant 0 : i32
    %c0_i32_1 = arith.constant 0 : i32
    return %c0_i32, %c0_i32_0 : i32, i32
  }
  func.func @transform_4(%arg0: i32) -> (i32, i32) {
    %c0_i32 = arith.constant 0 : i32
    %c0_i32_0 = arith.constant 0 : i32
    %c0_i32_1 = arith.constant 0 : i32
    return %c0_i32, %c0_i32_0 : i32, i32
  }
  func.func @transform_5(%arg0: i32) -> (i32, i32) {
    %c0_i32 = arith.constant 0 : i32
    %c0_i32_0 = arith.constant 0 : i32
    %c0_i32_1 = arith.constant 0 : i32
    return %c0_i32, %c0_i32_0 : i32, i32
  }
  func.func @transform_6(%arg0: i32) -> (i32, i32) {
    %c0_i32 = arith.constant 0 : i32
    %c0_i32_0 = arith.constant 0 : i32
    %c0_i32_1 = arith.constant 0 : i32
    return %c0_i32, %c0_i32_0 : i32, i32
  }
  func.func @transform_7(%arg0: i32) -> (i32, i32) {
    %c0_i32 = arith.constant 0 : i32
    %c0_i32_0 = arith.constant 0 : i32
    %c0_i32_1 = arith.constant 0 : i32
    return %c0_i32, %c0_i32_0 : i32, i32
  }
  func.func @transform_8(%arg0: i32) -> (i32, i32) {
    %c0_i32 = arith.constant 0 : i32
    %c0_i32_0 = arith.constant 0 : i32
    %c0_i32_1 = arith.constant 0 : i32
    return %c0_i32, %c0_i32_0 : i32, i32
  }
  func.func @transform_9(%arg0: i32) -> (i32, i32) {
    %c0_i32 = arith.constant 0 : i32
    %c0_i32_0 = arith.constant 0 : i32
    %c0_i32_1 = arith.constant 0 : i32
    return %c0_i32, %c0_i32_0 : i32, i32
  }
  func.func @transform_10(%arg0: i32) -> (i32, i32) {
    %c0_i32 = arith.constant 0 : i32
    %c0_i32_0 = arith.constant 0 : i32
    %c0_i32_1 = arith.constant 0 : i32
    return %c0_i32, %c0_i32_0 : i32, i32
  }
  func.func @transform_11(%arg0: i32) -> (i32, i32, i32) {
    %c0_i32 = arith.constant 0 : i32
    %c0_i32_0 = arith.constant 0 : i32
    %c0_i32_1 = arith.constant 0 : i32
    return %arg0, %c0_i32, %c0_i32_0 : i32, i32, i32
  }
}

module attributes {stable_mosaic.version = 11 : i64} {
  func.func @kernel(%arg0: i32, %arg1: i32, %arg2: memref<32x256xf32, #tpu.memory_space<vmem>>, %arg3: memref<32x256xf32, #tpu.memory_space<vmem>>, %arg4: memref<256x256xbf16, #tpu.memory_space<vmem>>, %arg5: memref<1x256xf32, #tpu.memory_space<vmem>>, %arg6: memref<256x256xbf16, #tpu.memory_space<vmem>>, %arg7: memref<1x256xf32, #tpu.memory_space<vmem>>, %arg8: memref<1x256xf32, #tpu.memory_space<vmem>>, %arg9: memref<1x256xf32, #tpu.memory_space<vmem>>, %arg10: memref<32x256xf32, #tpu.memory_space<vmem>>, %arg11: memref<32x256xf32, #tpu.memory_space<vmem>>) attributes {dimension_semantics = [#tpu.dimension_semantics<parallel>, #tpu.dimension_semantics<arbitrary>], iteration_bounds = array<i64: 1, 2>, scalar_prefetch = 0 : i64, scratch_operands = 1 : i64, tpu.core_type = #tpu.core_type<tc>, window_params = [{transform_indices = @transform_0, window_bounds = array<i64: 32, 256>}, {transform_indices = @transform_1, window_bounds = array<i64: 32, 256>}, {transform_indices = @transform_2, window_bounds = array<i64: 256, 256>}, {transform_indices = @transform_3, window_bounds = array<i64: 1, 256>}, {transform_indices = @transform_4, window_bounds = array<i64: 256, 256>}, {pipeline_mode = #tpu.pipeline_mode<synchronous>, transform_indices = @transform_5, window_bounds = array<i64: 1, 256>}, {pipeline_mode = #tpu.pipeline_mode<synchronous>, transform_indices = @transform_6, window_bounds = array<i64: 1, 256>}, {pipeline_mode = #tpu.pipeline_mode<synchronous>, transform_indices = @transform_7, window_bounds = array<i64: 1, 256>}, {transform_indices = @transform_8, window_bounds = array<i64: 32, 256>}]} {
    %c0_i32 = arith.constant 0 : i32
    %0 = arith.cmpi eq, %arg1, %c0_i32 : i32
    %1 = arith.extui %0 : i1 to i32
    %c0_i32_0 = arith.constant 0 : i32
    %2 = arith.cmpi ne, %1, %c0_i32_0 : i32
    scf.if %2 {
      %cst_15 = arith.constant 0.000000e+00 : f32
      %21 = vector.broadcast %cst_15 : f32 to vector<32x256xf32>
      %c0_16 = arith.constant 0 : index
      %c0_17 = arith.constant 0 : index
      %22 = vector.load %arg11[%c0_16, %c0_17] : memref<32x256xf32, #tpu.memory_space<vmem>>, vector<32x256xf32>
      tpu.vector_store %arg11[%c0_16, %c0_17], %21 {strides = array<i32>} : memref<32x256xf32, #tpu.memory_space<vmem>>, vector<32x256xf32>,
    } else {
    }
    %c0 = arith.constant 0 : index
    %c0_1 = arith.constant 0 : index
    %3 = vector.load %arg2[%c0, %c0_1] : memref<32x256xf32, #tpu.memory_space<vmem>>, vector<32x256xf32>
    %4 = arith.truncf %3 : vector<32x256xf32> to vector<32x256xbf16>
    %c0_2 = arith.constant 0 : index
    %c0_3 = arith.constant 0 : index
    %5 = vector.load %arg4[%c0_2, %c0_3] : memref<256x256xbf16, #tpu.memory_space<vmem>>, vector<256x256xbf16>
    %cst = arith.constant dense<0.000000e+00> : vector<32x256xf32>
    %6 = tpu.matmul %4, %5, %cst {dimension_numbers = #tpu.dot_dimension_numbers<[1], [0], [0], [1], [0, 0, 1, 1], [], []>} : vector<32x256xbf16>, vector<256x256xbf16>, vector<32x256xf32> -> vector<32x256xf32>
    %c0_4 = arith.constant 0 : index
    %c0_5 = arith.constant 0 : index
    %7 = vector.load %arg5[%c0_4, %c0_5] : memref<1x256xf32, #tpu.memory_space<vmem>>, vector<1x256xf32>
    %8 = vector.broadcast %7 : vector<1x256xf32> to vector<32x256xf32>
    %9 = arith.addf %6, %8 : vector<32x256xf32>
    %cst_6 = arith.constant 0.000000e+00 : f32
    %10 = vector.broadcast %cst_6 : f32 to vector<32x256xf32>
    %11 = arith.maximumf %9, %10 : vector<32x256xf32>
    %c0_7 = arith.constant 0 : index
    %c0_8 = arith.constant 0 : index
    %12 = vector.load %arg11[%c0_7, %c0_8] : memref<32x256xf32, #tpu.memory_space<vmem>>, vector<32x256xf32>
    %13 = arith.truncf %11 : vector<32x256xf32> to vector<32x256xbf16>
    %c0_9 = arith.constant 0 : index
    %c0_10 = arith.constant 0 : index
    %14 = vector.load %arg6[%c0_9, %c0_10] : memref<256x256xbf16, #tpu.memory_space<vmem>>, vector<256x256xbf16>
    %cst_11 = arith.constant dense<0.000000e+00> : vector<32x256xf32>
    %15 = tpu.matmul %13, %14, %cst_11 {dimension_numbers = #tpu.dot_dimension_numbers<[1], [0], [0], [1], [0, 0, 1, 1], [], []>} : vector<32x256xbf16>, vector<256x256xbf16>, vector<32x256xf32> -> vector<32x256xf32>
    %16 = arith.addf %12, %15 : vector<32x256xf32>
    %c0_12 = arith.constant 0 : index
    %c0_13 = arith.constant 0 : index
    %17 = vector.load %arg11[%c0_12, %c0_13] : memref<32x256xf32, #tpu.memory_space<vmem>>, vector<32x256xf32>
    tpu.vector_store %arg11[%c0_12, %c0_13], %16 {strides = array<i32>} : memref<32x256xf32, #tpu.memory_space<vmem>>, vector<32x256xf32>,
    %c1_i32 = arith.constant 1 : i32
    %18 = arith.cmpi eq, %arg1, %c1_i32 : i32
    %19 = arith.extui %18 : i1 to i32
    %c0_i32_14 = arith.constant 0 : i32
    %20 = arith.cmpi ne, %19, %c0_i32_14 : i32
    scf.if %20 {
      %c0_15 = arith.constant 0 : index
      %c0_16 = arith.constant 0 : index
      %21 = vector.load %arg11[%c0_15, %c0_16] : memref<32x256xf32, #tpu.memory_space<vmem>>, vector<32x256xf32>
      %c0_17 = arith.constant 0 : index
      %c0_18 = arith.constant 0 : index
      %22 = vector.load %arg7[%c0_17, %c0_18] : memref<1x256xf32, #tpu.memory_space<vmem>>, vector<1x256xf32>
      %23 = vector.broadcast %22 : vector<1x256xf32> to vector<32x256xf32>
      %24 = arith.addf %21, %23 : vector<32x256xf32>
      %c0_19 = arith.constant 0 : index
      %c0_20 = arith.constant 0 : index
      %25 = vector.load %arg3[%c0_19, %c0_20] : memref<32x256xf32, #tpu.memory_space<vmem>>, vector<32x256xf32>
      %26 = arith.addf %24, %25 : vector<32x256xf32>
      %c0_21 = arith.constant 0 : index
      %c0_22 = arith.constant 0 : index
      %27 = vector.load %arg8[%c0_21, %c0_22] : memref<1x256xf32, #tpu.memory_space<vmem>>, vector<1x256xf32>
      %c0_23 = arith.constant 0 : index
      %c0_24 = arith.constant 0 : index
      %28 = vector.load %arg9[%c0_23, %c0_24] : memref<1x256xf32, #tpu.memory_space<vmem>>, vector<1x256xf32>
      %cst_25 = arith.constant dense<0.000000e+00> : vector<32xf32>
      %29 = vector.multi_reduction <add>, %26, %cst_25 [1] : vector<32x256xf32> to vector<32xf32>
      %30 = vector.shape_cast %29 : vector<32xf32> to vector<32x1xf32>
      %cst_26 = arith.constant 2.560000e+02 : f32
      %31 = vector.broadcast %cst_26 : f32 to vector<32x1xf32>
      %32 = arith.divf %30, %31 : vector<32x1xf32>
      %33 = vector.broadcast %32 : vector<32x1xf32> to vector<32x256xf32>
      %34 = arith.subf %26, %33 : vector<32x256xf32>
      %35 = arith.mulf %34, %34 : vector<32x256xf32>
      %cst_27 = arith.constant dense<0.000000e+00> : vector<32xf32>
      %36 = vector.multi_reduction <add>, %35, %cst_27 [1] : vector<32x256xf32> to vector<32xf32>
      %37 = vector.shape_cast %36 : vector<32xf32> to vector<32x1xf32>
      %cst_28 = arith.constant 2.560000e+02 : f32
      %38 = vector.broadcast %cst_28 : f32 to vector<32x1xf32>
      %39 = arith.divf %37, %38 : vector<32x1xf32>
      %40 = vector.broadcast %32 : vector<32x1xf32> to vector<32x256xf32>
      %41 = arith.subf %26, %40 : vector<32x256xf32>
      %cst_29 = arith.constant 9.99999974E-6 : f32
      %42 = vector.broadcast %cst_29 : f32 to vector<32x1xf32>
      %43 = arith.addf %39, %42 : vector<32x1xf32>
      %44 = math.rsqrt %43 : vector<32x1xf32>
      %45 = vector.broadcast %44 : vector<32x1xf32> to vector<32x256xf32>
      %46 = arith.mulf %41, %45 : vector<32x256xf32>
      %47 = vector.broadcast %27 : vector<1x256xf32> to vector<32x256xf32>
      %48 = arith.mulf %47, %46 : vector<32x256xf32>
      %49 = vector.broadcast %28 : vector<1x256xf32> to vector<32x256xf32>
      %50 = arith.addf %48, %49 : vector<32x256xf32>
      %c0_30 = arith.constant 0 : index
      %c0_31 = arith.constant 0 : index
      %51 = vector.load %arg10[%c0_30, %c0_31] : memref<32x256xf32, #tpu.memory_space<vmem>>, vector<32x256xf32>
      tpu.vector_store %arg10[%c0_30, %c0_31], %50 {strides = array<i32>} : memref<32x256xf32, #tpu.memory_space<vmem>>, vector<32x256xf32>,
    } else {
    }
    return
  }
  func.func @transform_0(%arg0: i32, %arg1: i32) -> (i32, i32) {
    %c0_i32 = arith.constant 0 : i32
    %c0_i32_0 = arith.constant 0 : i32
    return %arg0, %c0_i32 : i32, i32
  }
  func.func @transform_1(%arg0: i32, %arg1: i32) -> (i32, i32) {
    %c0_i32 = arith.constant 0 : i32
    %c0_i32_0 = arith.constant 0 : i32
    return %arg0, %c0_i32 : i32, i32
  }
  func.func @transform_2(%arg0: i32, %arg1: i32) -> (i32, i32) {
    %c0_i32 = arith.constant 0 : i32
    %c0_i32_0 = arith.constant 0 : i32
    return %c0_i32, %arg1 : i32, i32
  }
  func.func @transform_3(%arg0: i32, %arg1: i32) -> (i32, i32) {
    %c0_i32 = arith.constant 0 : i32
    %c0_i32_0 = arith.constant 0 : i32
    return %c0_i32, %arg1 : i32, i32
  }
  func.func @transform_4(%arg0: i32, %arg1: i32) -> (i32, i32) {
    %c0_i32 = arith.constant 0 : i32
    %c0_i32_0 = arith.constant 0 : i32
    return %arg1, %c0_i32 : i32, i32
  }
  func.func @transform_5(%arg0: i32, %arg1: i32) -> (i32, i32) {
    %c0_i32 = arith.constant 0 : i32
    %c0_i32_0 = arith.constant 0 : i32
    %c0_i32_1 = arith.constant 0 : i32
    return %c0_i32, %c0_i32_0 : i32, i32
  }
  func.func @transform_6(%arg0: i32, %arg1: i32) -> (i32, i32) {
    %c0_i32 = arith.constant 0 : i32
    %c0_i32_0 = arith.constant 0 : i32
    %c0_i32_1 = arith.constant 0 : i32
    return %c0_i32, %c0_i32_0 : i32, i32
  }
  func.func @transform_7(%arg0: i32, %arg1: i32) -> (i32, i32) {
    %c0_i32 = arith.constant 0 : i32
    %c0_i32_0 = arith.constant 0 : i32
    %c0_i32_1 = arith.constant 0 : i32
    return %c0_i32, %c0_i32_0 : i32, i32
  }
  func.func @transform_8(%arg0: i32, %arg1: i32) -> (i32, i32) {
    %c0_i32 = arith.constant 0 : i32
    %c0_i32_0 = arith.constant 0 : i32
    return %arg0, %c0_i32 : i32, i32
  }
}

</mosaic_0001>

<llo_original>
// kernel: decoder_layer.5
$region0: #{decoder_layer.5}
  #allocation0 [shape = 'u32[]', space=smem, size = 0x4, offset = 0x4, fixed_abs, tag = 'smem constant byte address 0x4 - core index']
  #allocation1 [shape = 'u32[72,128]{1,0:T(1,128)}', space=vmem, size = 0x9000, scoped, tag = 'internal scratch']
  #allocation2 [shape = 'f32[32,256]{1,0:T(8,128)}', space=vmem, size = 0x8000, scoped, tag = 'scratch operand']
  %s0 = inlined_call_operand.vmem [shape: f32[32,256], index: 0, kind: input, shape index: {}]
  %s1 = inlined_call_operand.vmem [shape: f32[32,256], index: 1, kind: input, shape index: {}]
  %s2 = inlined_call_operand.vmem [shape: bf16[256,512], index: 2, kind: input, shape index: {}]
  %s3 = inlined_call_operand.vmem [shape: f32[1,512], index: 3, kind: input, shape index: {}]
  %s4 = inlined_call_operand.vmem [shape: bf16[512,256], index: 4, kind: input, shape index: {}]
  %s5 = inlined_call_operand.vmem [shape: f32[1,256], index: 5, kind: input, shape index: {}]
  %s6 = inlined_call_operand.vmem [shape: f32[1,256], index: 6, kind: input, shape index: {}]
  %s7 = inlined_call_operand.vmem [shape: f32[1,256], index: 7, kind: input, shape index: {}]
  %s8 = inlined_call_operand.hbm [shape: f32[32,256], index: 8, kind: output, shape index: {}]
  %s9 = sld [smem:[#allocation0]]
  $region111: #{decoder_layer.5} parent=0
    _
  %s11 = ssub.s32 1, %s9
  %s12 = scalar_select 0, %s11, %s9
  $region1: #{decoder_layer.5} parent=0
    #allocation3 [shape = 'u8[262144]{0}', space=vmem, size = 0x40000, scoped, tag = 'input window, operand 2']
    #allocation4 [shape = 'u8[32768]{0}', space=vmem, size = 0x8000, scoped, tag = 'output window, operand 0, single buffered']
    #allocation5 [shape = 's32[2]{0}', space=sflag, size = 0x8, scoped, tag = 'scoped memory for decoder_layer.5']
    %13 = vsyncpa [#allocation5], 0
    loop: start=0, step=1, limit=4
    $region2: #{decoder_layer.5} parent=1 // loop_pre_header
      _
    $region3: #{decoder_layer.5} parent=1 // loop_header
      %s15 = sphi 0, %s19
      %p16 = scmp.ge.s32.totalorder %s15, 4
      %s22 = sphi 0, %s34
      %s23 = sphi 0, %s30
      %s24 = sphi 0, %s22
      %s25 = sphi 0, %s23
      %s26 = sphi 0, %s24
      %s27 = sphi 0, %s25
      %s37 = sphi 0, %s39
      %s40 = sphi 0, %s37
      %s41 = sphi 0, %s40
      %s57 = sphi 0, %s41
      %s63 = sphi 0, %s65
      %s66 = sphi 0, %s63
      %s67 = sphi 0, %s66
      %s83 = sphi 0, %s67
      %s89 = sphi 0, %s91
      %s92 = sphi 0, %s89
      %s93 = sphi 0, %s92
      %s109 = sphi 0, %s93
      %s115 = sphi 0, %s117
      %s118 = sphi 0, %s115
      %s119 = sphi 0, %s118
      %s135 = sphi 0, %s119
      %s141 = sphi 0, %s143
      %s144 = sphi 0, %s141
      %s145 = sphi 0, %s144
      %s161 = sphi 0, %s145
      %s165 = sphi 0, %s165
      %s167 = sphi 0, %s165
      %s168 = sphi 0, %s167
      %s182 = sphi 0, %s168
      %s186 = sphi 0, %s186
      %s188 = sphi 0, %s186
      %s189 = sphi 0, %s188
      %s203 = sphi 0, %s189
      %s207 = sphi 0, %s207
      %s209 = sphi 0, %s207
      %s210 = sphi 0, %s209
      %s224 = sphi 0, %s210
      %s230 = sphi 0, %s232
      %s233 = sphi 0, %s230
      %s234 = sphi 0, %s233
      %s250 = sphi 0, %s234
    $region4: #{decoder_layer.5} parent=1 // loop_header_branch
      %18 = sbr.rel (%p16) target = $region8
    $region5: #{decoder_layer.5} parent=1 // loop_body
      %s20 = ssub.s32 %s15, 1
      %s21 = ssub.s32 %s15, 2
      %s28 = sadd.s32 1, %s23
      %p29 = scmp.ge.s32.totalorder %s28, 2
      %s30 = scalar_select %p29, 0, %s28
      %s31 = sadd.s32 1, %s22
      %s32 = scalar_select %p29, %s31, %s22
      %p33 = scmp.ge.s32.totalorder %s32, 1
      %s34 = scalar_select %p33, 0, %s32
      %s35 = ssub.s32 %s22, %s34
      %p36 = scmp.eq.s32.totalorder %s35, 0
      %s38 = sadd.s32 %s37, 1
      %s39 = scalar_select %p36, %s37, %s38
      %p42 = pneg %p36
      %p43 = scmp.eq.s32.totalorder %s15, 1
      %p44 = por %p42, %p43
      %p45 = scmp.ne.s32.totalorder %s37, %s40
      %p46 = scmp.eq.s32.totalorder %s15, 0
      %p47 = por %p45, %p46
      %p48 = scmp.ne.s32.totalorder %s37, %s40
      %p49 = scmp.eq.s32.totalorder %s20, 1
      %p50 = por %p48, %p49
      %p51 = scmp.ne.s32.totalorder %s40, %s41
      %p52 = scmp.eq.s32.totalorder %s20, 0
      %p53 = por %p51, %p52
      %p54 = scmp.ne.s32.totalorder %s40, %s41
      %p55 = scmp.eq.s32.totalorder %s21, 1
      %p56 = por %p54, %p55
      %p58 = scmp.ne.s32.totalorder %s41, %s57
      %p59 = scmp.eq.s32.totalorder %s21, 0
      %p60 = por %p58, %p59
      %s61 = ssub.s32 %s22, %s34
      %p62 = scmp.eq.s32.totalorder %s61, 0
      %s64 = sadd.s32 %s63, 1
      %s65 = scalar_select %p62, %s63, %s64
      %p68 = pneg %p62
      %p69 = scmp.eq.s32.totalorder %s15, 1
      %p70 = por %p68, %p69
      %p71 = scmp.ne.s32.totalorder %s63, %s66
      %p72 = scmp.eq.s32.totalorder %s15, 0
      %p73 = por %p71, %p72
      %p74 = scmp.ne.s32.totalorder %s63, %s66
      %p75 = scmp.eq.s32.totalorder %s20, 1
      %p76 = por %p74, %p75
      %p77 = scmp.ne.s32.totalorder %s66, %s67
      %p78 = scmp.eq.s32.totalorder %s20, 0
      %p79 = por %p77, %p78
      %p80 = scmp.ne.s32.totalorder %s66, %s67
      %p81 = scmp.eq.s32.totalorder %s21, 1
      %p82 = por %p80, %p81
      %p84 = scmp.ne.s32.totalorder %s67, %s83
      %p85 = scmp.eq.s32.totalorder %s21, 0
      %p86 = por %p84, %p85
      %s87 = ssub.s32 %s23, %s30
      %p88 = scmp.eq.s32.totalorder %s87, 0
      %s90 = sadd.s32 %s89, 1
      %s91 = scalar_select %p88, %s89, %s90
      %p94 = pneg %p88
      %p95 = scmp.eq.s32.totalorder %s15, 1
      %p96 = por %p94, %p95
      %p97 = scmp.ne.s32.totalorder %s89, %s92
      %p98 = scmp.eq.s32.totalorder %s15, 0
      %p99 = por %p97, %p98
      %p100 = scmp.ne.s32.totalorder %s89, %s92
      %p101 = scmp.eq.s32.totalorder %s20, 1
      %p102 = por %p100, %p101
      %p103 = scmp.ne.s32.totalorder %s92, %s93
      %p104 = scmp.eq.s32.totalorder %s20, 0
      %p105 = por %p103, %p104
      %p106 = scmp.ne.s32.totalorder %s92, %s93
      %p107 = scmp.eq.s32.totalorder %s21, 1
      %p108 = por %p106, %p107
      %p110 = scmp.ne.s32.totalorder %s93, %s109
      %p111 = scmp.eq.s32.totalorder %s21, 0
      %p112 = por %p110, %p111
      %s113 = ssub.s32 %s23, %s30
      %p114 = scmp.eq.s32.totalorder %s113, 0
      %s116 = sadd.s32 %s115, 1
      %s117 = scalar_select %p114, %s115, %s116
      %p120 = pneg %p114
      %p121 = scmp.eq.s32.totalorder %s15, 1
      %p122 = por %p120, %p121
      %p123 = scmp.ne.s32.totalorder %s115, %s118
      %p124 = scmp.eq.s32.totalorder %s15, 0
      %p125 = por %p123, %p124
      %p126 = scmp.ne.s32.totalorder %s115, %s118
      %p127 = scmp.eq.s32.totalorder %s20, 1
      %p128 = por %p126, %p127
      %p129 = scmp.ne.s32.totalorder %s118, %s119
      %p130 = scmp.eq.s32.totalorder %s20, 0
      %p131 = por %p129, %p130
      %p132 = scmp.ne.s32.totalorder %s118, %s119
      %p133 = scmp.eq.s32.totalorder %s21, 1
      %p134 = por %p132, %p133
      %p136 = scmp.ne.s32.totalorder %s119, %s135
      %p137 = scmp.eq.s32.totalorder %s21, 0
      %p138 = por %p136, %p137
      %s139 = ssub.s32 %s23, %s30
      %p140 = scmp.eq.s32.totalorder %s139, 0
      %s142 = sadd.s32 %s141, 1
      %s143 = scalar_select %p140, %s141, %s142
      %p146 = pneg %p140
      %p147 = scmp.eq.s32.totalorder %s15, 1
      %p148 = por %p146, %p147
      %p149 = scmp.ne.s32.totalorder %s141, %s144
      %p150 = scmp.eq.s32.totalorder %s15, 0
      %p151 = por %p149, %p150
      %p152 = scmp.ne.s32.totalorder %s141, %s144
      %p153 = scmp.eq.s32.totalorder %s20, 1
      %p154 = por %p152, %p153
      %p155 = scmp.ne.s32.totalorder %s144, %s145
      %p156 = scmp.eq.s32.totalorder %s20, 0
      %p157 = por %p155, %p156
      %p158 = scmp.ne.s32.totalorder %s144, %s145
      %p159 = scmp.eq.s32.totalorder %s21, 1
      %p160 = por %p158, %p159
      %p162 = scmp.ne.s32.totalorder %s145, %s161
      %p163 = scmp.eq.s32.totalorder %s21, 0
      %p164 = por %p162, %p163
      %s166 = sadd.s32 %s165, 1
      %p169 = scmp.eq.s32.totalorder %s15, 1
      %p170 = scmp.ne.s32.totalorder %s165, %s167
      %p171 = scmp.eq.s32.totalorder %s15, 0
      %p172 = por %p170, %p171
      %p173 = scmp.ne.s32.totalorder %s165, %s167
      %p174 = scmp.eq.s32.totalorder %s20, 1
      %p175 = por %p173, %p174
      %p176 = scmp.ne.s32.totalorder %s167, %s168
      %p177 = scmp.eq.s32.totalorder %s20, 0
      %p178 = por %p176, %p177
      %p179 = scmp.ne.s32.totalorder %s167, %s168
      %p180 = scmp.eq.s32.totalorder %s21, 1
      %p181 = por %p179, %p180
      %p183 = scmp.ne.s32.totalorder %s168, %s182
      %p184 = scmp.eq.s32.totalorder %s21, 0
      %p185 = por %p183, %p184
      %s187 = sadd.s32 %s186, 1
      %p190 = scmp.eq.s32.totalorder %s15, 1
      %p191 = scmp.ne.s32.totalorder %s186, %s188
      %p192 = scmp.eq.s32.totalorder %s15, 0
      %p193 = por %p191, %p192
      %p194 = scmp.ne.s32.totalorder %s186, %s188
      %p195 = scmp.eq.s32.totalorder %s20, 1
      %p196 = por %p194, %p195
      %p197 = scmp.ne.s32.totalorder %s188, %s189
      %p198 = scmp.eq.s32.totalorder %s20, 0
      %p199 = por %p197, %p198
      %p200 = scmp.ne.s32.totalorder %s188, %s189
      %p201 = scmp.eq.s32.totalorder %s21, 1
      %p202 = por %p200, %p201
      %p204 = scmp.ne.s32.totalorder %s189, %s203
      %p205 = scmp.eq.s32.totalorder %s21, 0
      %p206 = por %p204, %p205
      %s208 = sadd.s32 %s207, 1
      %p211 = scmp.eq.s32.totalorder %s15, 1
      %p212 = scmp.ne.s32.totalorder %s207, %s209
      %p213 = scmp.eq.s32.totalorder %s15, 0
      %p214 = por %p212, %p213
      %p215 = scmp.ne.s32.totalorder %s207, %s209
      %p216 = scmp.eq.s32.totalorder %s20, 1
      %p217 = por %p215, %p216
      %p218 = scmp.ne.s32.totalorder %s209, %s210
      %p219 = scmp.eq.s32.totalorder %s20, 0
      %p220 = por %p218, %p219
      %p221 = scmp.ne.s32.totalorder %s209, %s210
      %p222 = scmp.eq.s32.totalorder %s21, 1
      %p223 = por %p221, %p222
      %p225 = scmp.ne.s32.totalorder %s210, %s224
      %p226 = scmp.eq.s32.totalorder %s21, 0
      %p227 = por %p225, %p226
      %s228 = ssub.s32 %s22, %s34
      %p229 = scmp.eq.s32.totalorder %s228, 0
      %s231 = sadd.s32 %s230, 1
      %s232 = scalar_select %p229, %s230, %s231
      %p235 = pneg %p229
      %p236 = scmp.eq.s32.totalorder %s15, 1
      %p237 = por %p235, %p236
      %p238 = scmp.ne.s32.totalorder %s230, %s233
      %p239 = scmp.eq.s32.totalorder %s15, 0
      %p240 = por %p238, %p239
      %p241 = scmp.ne.s32.totalorder %s230, %s233
      %p242 = scmp.eq.s32.totalorder %s20, 1
      %p243 = por %p241, %p242
      %p244 = scmp.ne.s32.totalorder %s233, %s234
      %p245 = scmp.eq.s32.totalorder %s20, 0
      %p246 = por %p244, %p245
      %p247 = scmp.ne.s32.totalorder %s233, %s234
      %p248 = scmp.eq.s32.totalorder %s21, 1
      %p249 = por %p247, %p248
      %p251 = scmp.ne.s32.totalorder %s234, %s250
      %p252 = scmp.eq.s32.totalorder %s21, 0
      %p253 = por %p251, %p252
      %p254 = scmp.le.s32.totalorder 1, %s15
      %p255 = scmp.lt.s32.totalorder %s15, 3
      %p256 = pnand %p254, %p255
      %p257 = pneg %p256
      // Predicated region
      $region9: #{decoder_layer.5} parent=5 // pred_check
        _
      $region10: #{decoder_layer.5} parent=5 // pred_check_branch
        %259 = sbr.rel (%p256) target = $region12
      $region11: #{decoder_layer.5} parent=5 // pred_region
        %s260 = ssub.s32 %s15, 1
        // Predicated region
        $region13: #{decoder_layer.5} parent=11 // pred_check
          %p261 = pneg %p53
        $region14: #{decoder_layer.5} parent=11 // pred_check_branch
          %263 = sbr.rel (%p261) target = $region16
        $region15: #{decoder_layer.5} parent=11 // pred_region
          %s264 = smul.u32 4, %s24
          %p265 = scmp.lt.s32.totalorder %s264, 3
          %s266 = scalar_select %p265, %s264, 3
          %s267 = smul.addr %s266, 2
          %s268 = smul.addr %s267, 8
          %s269 = scalar_lea.vmem %s0, %s268
          %s270 = smul.u32 4, %s24
        $region16: #{decoder_layer.5} parent=11 // pred_fallthru
          _
        // Predicated region
        $region17: #{decoder_layer.5} parent=11 // pred_check
          %p271 = pneg %p79
        $region18: #{decoder_layer.5} parent=11 // pred_check_branch
          %273 = sbr.rel (%p271) target = $region20
        $region19: #{decoder_layer.5} parent=11 // pred_region
          %s274 = smul.u32 4, %s24
          %p275 = scmp.lt.s32.totalorder %s274, 3
          %s276 = scalar_select %p275, %s274, 3
          %s277 = smul.addr %s276, 2
          %s278 = smul.addr %s277, 8
          %s279 = scalar_lea.vmem %s1, %s278
          %s280 = smul.u32 4, %s24
        $region20: #{decoder_layer.5} parent=11 // pred_fallthru
          _
        // Predicated region
        $region21: #{decoder_layer.5} parent=11 // pred_check
          %p281 = pneg %p178
        $region22: #{decoder_layer.5} parent=11 // pred_check_branch
          %283 = sbr.rel (%p281) target = $region24
        $region23: #{decoder_layer.5} parent=11 // pred_region
          _
        $region24: #{decoder_layer.5} parent=11 // pred_fallthru
          _
        // Predicated region
        $region25: #{decoder_layer.5} parent=11 // pred_check
          %p284 = pneg %p199
        $region26: #{decoder_layer.5} parent=11 // pred_check_branch
          %286 = sbr.rel (%p284) target = $region28
        $region27: #{decoder_layer.5} parent=11 // pred_region
          _
        $region28: #{decoder_layer.5} parent=11 // pred_fallthru
          _
        // Predicated region
        $region29: #{decoder_layer.5} parent=11 // pred_check
          %p287 = pneg %p220
        $region30: #{decoder_layer.5} parent=11 // pred_check_branch
          %289 = sbr.rel (%p287) target = $region32
        $region31: #{decoder_layer.5} parent=11 // pred_region
          _
        $region32: #{decoder_layer.5} parent=11 // pred_fallthru
          _
      $region12: #{decoder_layer.5} parent=5 // pred_fallthru
        _
      %p290 = scmp.lt.s32.totalorder %s15, 2
      // Predicated region
      $region33: #{decoder_layer.5} parent=5 // pred_check
        %p291 = pneg %p290
      $region34: #{decoder_layer.5} parent=5 // pred_check_branch
        %293 = sbr.rel (%p291) target = $region36
      $region35: #{decoder_layer.5} parent=5 // pred_region
        // Predicated region
        $region37: #{decoder_layer.5} parent=35 // pred_check
          %p294 = pneg %p99
        $region38: #{decoder_layer.5} parent=35 // pred_check_branch
          %296 = sbr.rel (%p294) target = $region40
        $region39: #{decoder_layer.5} parent=35 // pred_region
          %s297 = sand.u32 %s89, 1
          %s298 = sand.u32 %s89, 1
          %s299 = smul.addr %s298, 256
          %s300 = scalar_lea.vmem [#allocation3], %s299
          %s301 = smul.u32 2, %s23
          %s302 = smul.addr %s301, 4
          %s303 = scalar_lea.vmem %s2, %s302
          // Predicated region
          $region41: #{decoder_layer.5} parent=39 // pred_check
            _
          $region42: #{decoder_layer.5} parent=39 // pred_check_branch
            %305 = sbr.rel (0) target = $region44
          $region43: #{decoder_layer.5} parent=39 // pred_region
            // Predicated region
            $region45: #{decoder_layer.5} parent=43 // pred_check
              _
            $region46: #{decoder_layer.5} parent=43 // pred_check_branch
              %307 = sbr.rel (0) target = $region48
            $region47: #{decoder_layer.5} parent=43 // pred_region
              // Predicated region
              $region60: #{decoder_layer.5} parent=47 // pred_check
                _
              $region61: #{decoder_layer.5} parent=47 // pred_check_branch
                %385 = sbr.rel (0) target = $region63
              $region62: #{decoder_layer.5} parent=47 // pred_region
                loop: start=0, step=1, limit=1
                $region64: #{decoder_layer.5} parent=62 // loop_pre_header
                  _
                $region65: #{decoder_layer.5} parent=62 // loop_header
                  %s387 = sphi 0, %s391
                  %p388 = scmp.ge.s32.totalorder %s387, 1
                  %s392 = sphi %s303, %s303
                  %s393 = sphi %s300, %s300
                $region66: #{decoder_layer.5} parent=62 // loop_header_branch
                  %390 = sbr.rel (%p388) target = $region70
                $region67: #{decoder_layer.5} parent=62 // loop_body
                  %v394 = vld [vmem:[%s392] sm:$0xff]
                  %395 = vst [vmem:[%s393] sm:$0xff] %v394
                  %v396 = vld [vmem:[%s392 + $0x10] sm:$0xff]
                  %397 = vst [vmem:[%s393 + $0x8] sm:$0xff] %v396
                  %v398 = vld [vmem:[%s392 + $0x20] sm:$0xff]
                  %399 = vst [vmem:[%s393 + $0x10] sm:$0xff] %v398
                  %v400 = vld [vmem:[%s392 + $0x30] sm:$0xff]
                  %401 = vst [vmem:[%s393 + $0x18] sm:$0xff] %v400
                  %v402 = vld [vmem:[%s392 + $0x40] sm:$0xff]
                  %403 = vst [vmem:[%s393 + $0x20] sm:$0xff] %v402
                  %v404 = vld [vmem:[%s392 + $0x50] sm:$0xff]
                  %405 = vst [vmem:[%s393 + $0x28] sm:$0xff] %v404
                  %v406 = vld [vmem:[%s392 + $0x60] sm:$0xff]
                  %407 = vst [vmem:[%s393 + $0x30] sm:$0xff] %v406
                  %v408 = vld [vmem:[%s392 + $0x70] sm:$0xff]
                  %409 = vst [vmem:[%s393 + $0x38] sm:$0xff] %v408
                  %v410 = vld [vmem:[%s392 + $0x80] sm:$0xff]
                  %411 = vst [vmem:[%s393 + $0x40] sm:$0xff] %v410
                  %v412 = vld [vmem:[%s392 + $0x90] sm:$0xff]
                  %413 = vst [vmem:[%s393 + $0x48] sm:$0xff] %v412
                  %v414 = vld [vmem:[%s392 + $0xa0] sm:$0xff]
                  %415 = vst [vmem:[%s393 + $0x50] sm:$0xff] %v414
                  %v416 = vld [vmem:[%s392 + $0xb0] sm:$0xff]
                  %417 = vst [vmem:[%s393 + $0x58] sm:$0xff] %v416
                  %v418 = vld [vmem:[%s392 + $0xc0] sm:$0xff]
                  %419 = vst [vmem:[%s393 + $0x60] sm:$0xff] %v418
                  %v420 = vld [vmem:[%s392 + $0xd0] sm:$0xff]
                  %421 = vst [vmem:[%s393 + $0x68] sm:$0xff] %v420
                  %v422 = vld [vmem:[%s392 + $0xe0] sm:$0xff]
                  %423 = vst [vmem:[%s393 + $0x70] sm:$0xff] %v422
                  %v424 = vld [vmem:[%s392 + $0xf0] sm:$0xff]
                  %425 = vst [vmem:[%s393 + $0x78] sm:$0xff] %v424
                  %v426 = vld [vmem:[%s392 + $0x100] sm:$0xff]
                  %427 = vst [vmem:[%s393 + $0x80] sm:$0xff] %v426
                  %v428 = vld [vmem:[%s392 + $0x110] sm:$0xff]
                  %429 = vst [vmem:[%s393 + $0x88] sm:$0xff] %v428
                  %v430 = vld [vmem:[%s392 + $0x120] sm:$0xff]
                  %431 = vst [vmem:[%s393 + $0x90] sm:$0xff] %v430
                  %v432 = vld [vmem:[%s392 + $0x130] sm:$0xff]
                  %433 = vst [vmem:[%s393 + $0x98] sm:$0xff] %v432
                  %v434 = vld [vmem:[%s392 + $0x140] sm:$0xff]
                  %435 = vst [vmem:[%s393 + $0xa0] sm:$0xff] %v434
                  %v436 = vld [vmem:[%s392 + $0x150] sm:$0xff]
                  %437 = vst [vmem:[%s393 + $0xa8] sm:$0xff] %v436
                  %v438 = vld [vmem:[%s392 + $0x160] sm:$0xff]
                  %439 = vst [vmem:[%s393 + $0xb0] sm:$0xff] %v438
                  %v440 = vld [vmem:[%s392 + $0x170] sm:$0xff]
                  %441 = vst [vmem:[%s393 + $0xb8] sm:$0xff] %v440
                  %v442 = vld [vmem:[%s392 + $0x180] sm:$0xff]
                  %443 = vst [vmem:[%s393 + $0xc0] sm:$0xff] %v442
                  %v444 = vld [vmem:[%s392 + $0x190] sm:$0xff]
                  %445 = vst [vmem:[%s393 + $0xc8] sm:$0xff] %v444
                  %v446 = vld [vmem:[%s392 + $0x1a0] sm:$0xff]
                  %447 = vst [vmem:[%s393 + $0xd0] sm:$0xff] %v446
                  %v448 = vld [vmem:[%s392 + $0x1b0] sm:$0xff]
                  %449 = vst [vmem:[%s393 + $0xd8] sm:$0xff] %v448
                  %v450 = vld [vmem:[%s392 + $0x1c0] sm:$0xff]
                  %451 = vst [vmem:[%s393 + $0xe0] sm:$0xff] %v450
                  %v452 = vld [vmem:[%s392 + $0x1d0] sm:$0xff]
                  %453 = vst [vmem:[%s393 + $0xe8] sm:$0xff] %v452
                  %v454 = vld [vmem:[%s392 + $0x1e0] sm:$0xff]
                  %455 = vst [vmem:[%s393 + $0xf0] sm:$0xff] %v454
                  %v456 = vld [vmem:[%s392 + $0x1f0] sm:$0xff]
                  %457 = vst [vmem:[%s393 + $0xf8] sm:$0xff] %v456
                $region68: #{decoder_layer.5} parent=62 // loop_footer
                  %s391 = sadd.s32 1, %s387
                $region69: #{decoder_layer.5} parent=62 // loop_footer_branch
                  %386 = sbr.rel target = $region65
                $region70: #{decoder_layer.5} parent=62 // loop_exit
                  _
              $region63: #{decoder_layer.5} parent=47 // pred_fallthru
                _
              // Predicated region
              $region71: #{decoder_layer.5} parent=47 // pred_check
                _
              $region72: #{decoder_layer.5} parent=47 // pred_check_branch
                %459 = sbr.rel target = $region74
              $region73: #{decoder_layer.5} parent=47 // pred_region
                _
              $region74: #{decoder_layer.5} parent=47 // pred_fallthru
                _
            $region48: #{decoder_layer.5} parent=43 // pred_fallthru
              _
            // Predicated region
            $region49: #{decoder_layer.5} parent=43 // pred_check
              _
            $region50: #{decoder_layer.5} parent=43 // pred_check_branch
              %309 = sbr.rel target = $region52
            $region51: #{decoder_layer.5} parent=43 // pred_region
              %s311 = ssub.s32 256, 1
              loop: start=0, step=1, limit=1
              $region53: #{decoder_layer.5} parent=51 // loop_pre_header
                _
              $region54: #{decoder_layer.5} parent=51 // loop_header
                %s313 = sphi 0, %s317
                %p314 = scmp.ge.s32.totalorder %s313, 1
                %s318 = sphi %s303, %s303
                %s319 = sphi %s300, %s300
              $region55: #{decoder_layer.5} parent=51 // loop_header_branch
                %316 = sbr.rel (%p314) target = $region59
              $region56: #{decoder_layer.5} parent=51 // loop_body
                %v320 = vld [vmem:[%s318] sm:%s311]
                %321 = vst [vmem:[%s319] sm:%s311] %v320
                %v322 = vld [vmem:[%s318 + $0x10] sm:%s311]
                %323 = vst [vmem:[%s319 + $0x8] sm:%s311] %v322
                %v324 = vld [vmem:[%s318 + $0x20] sm:%s311]
                %325 = vst [vmem:[%s319 + $0x10] sm:%s311] %v324
                %v326 = vld [vmem:[%s318 + $0x30] sm:%s311]
                %327 = vst [vmem:[%s319 + $0x18] sm:%s311] %v326
                %v328 = vld [vmem:[%s318 + $0x40] sm:%s311]
                %329 = vst [vmem:[%s319 + $0x20] sm:%s311] %v328
                %v330 = vld [vmem:[%s318 + $0x50] sm:%s311]
                %331 = vst [vmem:[%s319 + $0x28] sm:%s311] %v330
                %v332 = vld [vmem:[%s318 + $0x60] sm:%s311]
                %333 = vst [vmem:[%s319 + $0x30] sm:%s311] %v332
                %v334 = vld [vmem:[%s318 + $0x70] sm:%s311]
                %335 = vst [vmem:[%s319 + $0x38] sm:%s311] %v334
                %v336 = vld [vmem:[%s318 + $0x80] sm:%s311]
                %337 = vst [vmem:[%s319 + $0x40] sm:%s311] %v336
                %v338 = vld [vmem:[%s318 + $0x90] sm:%s311]
                %339 = vst [vmem:[%s319 + $0x48] sm:%s311] %v338
                %v340 = vld [vmem:[%s318 + $0xa0] sm:%s311]
                %341 = vst [vmem:[%s319 + $0x50] sm:%s311] %v340
                %v342 = vld [vmem:[%s318 + $0xb0] sm:%s311]
                %343 = vst [vmem:[%s319 + $0x58] sm:%s311] %v342
                %v344 = vld [vmem:[%s318 + $0xc0] sm:%s311]
                %345 = vst [vmem:[%s319 + $0x60] sm:%s311] %v344
                %v346 = vld [vmem:[%s318 + $0xd0] sm:%s311]
                %347 = vst [vmem:[%s319 + $0x68] sm:%s311] %v346
                %v348 = vld [vmem:[%s318 + $0xe0] sm:%s311]
                %349 = vst [vmem:[%s319 + $0x70] sm:%s311] %v348
                %v350 = vld [vmem:[%s318 + $0xf0] sm:%s311]
                %351 = vst [vmem:[%s319 + $0x78] sm:%s311] %v350
                %v352 = vld [vmem:[%s318 + $0x100] sm:%s311]
                %353 = vst [vmem:[%s319 + $0x80] sm:%s311] %v352
                %v354 = vld [vmem:[%s318 + $0x110] sm:%s311]
                %355 = vst [vmem:[%s319 + $0x88] sm:%s311] %v354
                %v356 = vld [vmem:[%s318 + $0x120] sm:%s311]
                %357 = vst [vmem:[%s319 + $0x90] sm:%s311] %v356
                %v358 = vld [vmem:[%s318 + $0x130] sm:%s311]
                %359 = vst [vmem:[%s319 + $0x98] sm:%s311] %v358
                %v360 = vld [vmem:[%s318 + $0x140] sm:%s311]
                %361 = vst [vmem:[%s319 + $0xa0] sm:%s311] %v360
                %v362 = vld [vmem:[%s318 + $0x150] sm:%s311]
                %363 = vst [vmem:[%s319 + $0xa8] sm:%s311] %v362
                %v364 = vld [vmem:[%s318 + $0x160] sm:%s311]
                %365 = vst [vmem:[%s319 + $0xb0] sm:%s311] %v364
                %v366 = vld [vmem:[%s318 + $0x170] sm:%s311]
                %367 = vst [vmem:[%s319 + $0xb8] sm:%s311] %v366
                %v368 = vld [vmem:[%s318 + $0x180] sm:%s311]
                %369 = vst [vmem:[%s319 + $0xc0] sm:%s311] %v368
                %v370 = vld [vmem:[%s318 + $0x190] sm:%s311]
                %371 = vst [vmem:[%s319 + $0xc8] sm:%s311] %v370
                %v372 = vld [vmem:[%s318 + $0x1a0] sm:%s311]
                %373 = vst [vmem:[%s319 + $0xd0] sm:%s311] %v372
                %v374 = vld [vmem:[%s318 + $0x1b0] sm:%s311]
                %375 = vst [vmem:[%s319 + $0xd8] sm:%s311] %v374
                %v376 = vld [vmem:[%s318 + $0x1c0] sm:%s311]
                %377 = vst [vmem:[%s319 + $0xe0] sm:%s311] %v376
                %v378 = vld [vmem:[%s318 + $0x1d0] sm:%s311]
                %379 = vst [vmem:[%s319 + $0xe8] sm:%s311] %v378
                %v380 = vld [vmem:[%s318 + $0x1e0] sm:%s311]
                %381 = vst [vmem:[%s319 + $0xf0] sm:%s311] %v380
                %v382 = vld [vmem:[%s318 + $0x1f0] sm:%s311]
                %383 = vst [vmem:[%s319 + $0xf8] sm:%s311] %v382
              $region57: #{decoder_layer.5} parent=51 // loop_footer
                %s317 = sadd.s32 1, %s313
              $region58: #{decoder_layer.5} parent=51 // loop_footer_branch
                %312 = sbr.rel target = $region54
              $region59: #{decoder_layer.5} parent=51 // loop_exit
                _
            $region52: #{decoder_layer.5} parent=43 // pred_fallthru
              _
          $region44: #{decoder_layer.5} parent=39 // pred_fallthru
            _
          %460 = vnop
        $region40: #{decoder_layer.5} parent=35 // pred_fallthru
          _
        // Predicated region
        $region75: #{decoder_layer.5} parent=35 // pred_check
          %p461 = pneg %p125
        $region76: #{decoder_layer.5} parent=35 // pred_check_branch
          %463 = sbr.rel (%p461) target = $region78
        $region77: #{decoder_layer.5} parent=35 // pred_region
          %s464 = smul.u32 2, %s23
          %p465 = scmp.lt.s32.totalorder %s464, 3
          %s466 = scalar_select %p465, %s464, 3
          %s467 = scalar_lea.vmem %s3, %s466
          %s468 = smul.u32 2, %s23
        $region78: #{decoder_layer.5} parent=35 // pred_fallthru
          _
        // Predicated region
        $region79: #{decoder_layer.5} parent=35 // pred_check
          %p469 = pneg %p151
        $region80: #{decoder_layer.5} parent=35 // pred_check_branch
          %471 = sbr.rel (%p469) target = $region82
        $region81: #{decoder_layer.5} parent=35 // pred_region
          %s472 = smul.u32 32, %s23
          %p473 = scmp.lt.s32.totalorder %s472, 63
          %s474 = scalar_select %p473, %s472, 63
          %s475 = smul.addr %s474, 2
          %s476 = smul.addr %s475, 4
          %s477 = scalar_lea.vmem %s4, %s476
          %s478 = smul.u32 32, %s23
        $region82: #{decoder_layer.5} parent=35 // pred_fallthru
          _
      $region36: #{decoder_layer.5} parent=5 // pred_fallthru
        _
      %p479 = scmp.le.s32.totalorder 1, %s15
      %p480 = scmp.lt.s32.totalorder %s15, 3
      %p481 = pnand %p479, %p480
      %p482 = pneg %p481
      // Predicated region
      $region83: #{decoder_layer.5} parent=5 // pred_check
        _
      $region84: #{decoder_layer.5} parent=5 // pred_check_branch
        %484 = sbr.rel (%p481) target = $region86
      $region85: #{decoder_layer.5} parent=5 // pred_region
        %s485 = ssub.s32 %s15, 1
        %s486 = sand.u32 %s92, 1
        %s487 = sand.u32 %s92, 1
        %s488 = smul.addr %s487, 256
        %s489 = scalar_lea.vmem [#allocation3], %s488
        // Predicated region
        $region87: #{decoder_layer.5} parent=85 // pred_check
          %p490 = pneg %p105
        $region88: #{decoder_layer.5} parent=85 // pred_check_branch
          %492 = sbr.rel (%p490) target = $region90
        $region89: #{decoder_layer.5} parent=85 // pred_region
          _
        $region90: #{decoder_layer.5} parent=85 // pred_fallthru
          _
        %s493 = smul.u32 4, %s24
        %p494 = scmp.lt.s32.totalorder %s493, 3
        %s495 = scalar_select %p494, %s493, 3
        %s496 = smul.addr %s495, 2
        %s497 = smul.addr %s496, 8
        %s498 = scalar_lea.vmem %s0, %s497
        %p499 = pneg %p53
        %p500 = pneg %p50
        %s501 = smul.u32 4, %s24
        %p502 = scmp.lt.s32.totalorder %s501, 3
        %s503 = scalar_select %p502, %s501, 3
        %s504 = smul.addr %s503, 2
        %s505 = smul.addr %s504, 8
        %s506 = scalar_lea.vmem %s1, %s505
        %p507 = pneg %p79
        %p508 = pneg %p76
        %s509 = sand.u32 %s92, 1
        %s510 = sand.u32 %s92, 1
        %s511 = smul.addr %s510, 256
        %s512 = scalar_lea.vmem [#allocation3], %s511
        %p513 = pneg %p105
        %p514 = pneg %p102
        %s515 = smul.u32 2, %s25
        %p516 = scmp.lt.s32.totalorder %s515, 3
        %s517 = scalar_select %p516, %s515, 3
        %s518 = scalar_lea.vmem %s3, %s517
        %p519 = pneg %p131
        %p520 = pneg %p128
        %s521 = smul.u32 32, %s25
        %p522 = scmp.lt.s32.totalorder %s521, 63
        %s523 = scalar_select %p522, %s521, 63
        %s524 = smul.addr %s523, 2
        %s525 = smul.addr %s524, 4
        %s526 = scalar_lea.vmem %s4, %s525
        %p527 = pneg %p157
        %p528 = pneg %p154
        %p529 = pneg %p178
        %p530 = pneg %p175
        %p531 = pneg %p199
        %p532 = pneg %p196
        %p533 = pneg %p220
        %p534 = pneg %p217
        %p535 = pneg %p246
        %p536 = pneg %p243
        %s537 = smul.u32 4, %s24
        %p538 = scmp.lt.s32.totalorder %s537, 3
        %s539 = scalar_select %p538, %s537, 3
        %s540 = smul.addr %s539, 2
        %s541 = smul.addr %s540, 8
        %s542 = scalar_lea.vmem %s0, %s541
        %s543 = smul.u32 4, %s24
        %s544 = smul.u32 4, %s24
        %p545 = scmp.lt.s32.totalorder %s544, 3
        %s546 = scalar_select %p545, %s544, 3
        %s547 = smul.addr %s546, 2
        %s548 = smul.addr %s547, 8
        %s549 = scalar_lea.vmem %s1, %s548
        %s550 = smul.u32 4, %s24
        %s551 = smul.u32 2, %s25
        %s552 = smul.u32 2, %s25
        %p553 = scmp.lt.s32.totalorder %s552, 3
        %s554 = scalar_select %p553, %s552, 3
        %s555 = scalar_lea.vmem %s3, %s554
        %s556 = smul.u32 2, %s25
        %s557 = smul.u32 32, %s25
        %p558 = scmp.lt.s32.totalorder %s557, 63
        %s559 = scalar_select %p558, %s557, 63
        %s560 = smul.addr %s559, 2
        %s561 = smul.addr %s560, 4
        %s562 = scalar_lea.vmem %s4, %s561
        %s563 = smul.u32 32, %s25
        %s564 = smul.u32 4, %s24
        %p565 = scmp.eq.s32.totalorder %s25, 0
        // Predicated region
        $region91: #{decoder_layer.5} parent=85 // pred_check
          %p566 = pneg %p565
        $region92: #{decoder_layer.5} parent=85 // pred_check_branch
          %568 = sbr.rel (%p566) target = $region94
        $region93: #{decoder_layer.5} parent=85 // pred_region
          %569 = vst [vmem:[#allocation2] sm:$0xff] 0.0
          %570 = vst [vmem:[#allocation2 + $0x8] sm:$0xff] 0.0
          %571 = vst [vmem:[#allocation2 + $0x10] sm:$0xff] 0.0
          %572 = vst [vmem:[#allocation2 + $0x18] sm:$0xff] 0.0
          %573 = vst [vmem:[#allocation2 + $0x20] sm:$0xff] 0.0
          %574 = vst [vmem:[#allocation2 + $0x28] sm:$0xff] 0.0
          %575 = vst [vmem:[#allocation2 + $0x30] sm:$0xff] 0.0
          %576 = vst [vmem:[#allocation2 + $0x38] sm:$0xff] 0.0
        $region94: #{decoder_layer.5} parent=85 // pred_fallthru
          _
        %v577 = vld [vmem:[%s542] sm:$0xff]
        %v578 = vld [vmem:[%s542 + $0x8] sm:$0xff]
        %v579 = vld [vmem:[%s542 + $0x10] sm:$0xff]
        %v580 = vld [vmem:[%s542 + $0x18] sm:$0xff]
        %v581 = vld [vmem:[%s542 + $0x20] sm:$0xff]
        %v582 = vld [vmem:[%s542 + $0x28] sm:$0xff]
        %v583 = vld [vmem:[%s542 + $0x30] sm:$0xff]
        %v584 = vld [vmem:[%s542 + $0x38] sm:$0xff]
        %v585 = vpack.c.bf16 %v579, %v577
        %v586 = vpack.c.bf16 %v580, %v578
        %v587 = vpack.c.bf16 %v583, %v581
        %v588 = vpack.c.bf16 %v584, %v582
        %v589 = vld [vmem:[%s489] sm:$0xff]
        %v590 = vld [vmem:[%s489 + $0x8] sm:$0xff]
        %v591 = vld [vmem:[%s489 + $0x10] sm:$0xff]
        %v592 = vld [vmem:[%s489 + $0x18] sm:$0xff]
        %v593 = vld [vmem:[%s489 + $0x20] sm:$0xff]
        %v594 = vld [vmem:[%s489 + $0x28] sm:$0xff]
        %v595 = vld [vmem:[%s489 + $0x30] sm:$0xff]
        %v596 = vld [vmem:[%s489 + $0x38] sm:$0xff]
        %v597 = vld [vmem:[%s489 + $0x40] sm:$0xff]
        %v598 = vld [vmem:[%s489 + $0x48] sm:$0xff]
        %v599 = vld [vmem:[%s489 + $0x50] sm:$0xff]
        %v600 = vld [vmem:[%s489 + $0x58] sm:$0xff]
        %v601 = vld [vmem:[%s489 + $0x60] sm:$0xff]
        %v602 = vld [vmem:[%s489 + $0x68] sm:$0xff]
        %v603 = vld [vmem:[%s489 + $0x70] sm:$0xff]
        %v604 = vld [vmem:[%s489 + $0x78] sm:$0xff]
        %v605 = vld [vmem:[%s489 + $0x80] sm:$0xff]
        %v606 = vld [vmem:[%s489 + $0x88] sm:$0xff]
        %v607 = vld [vmem:[%s489 + $0x90] sm:$0xff]
        %v608 = vld [vmem:[%s489 + $0x98] sm:$0xff]
        %v609 = vld [vmem:[%s489 + $0xa0] sm:$0xff]
        %v610 = vld [vmem:[%s489 + $0xa8] sm:$0xff]
        %v611 = vld [vmem:[%s489 + $0xb0] sm:$0xff]
        %v612 = vld [vmem:[%s489 + $0xb8] sm:$0xff]
        %v613 = vld [vmem:[%s489 + $0xc0] sm:$0xff]
        %v614 = vld [vmem:[%s489 + $0xc8] sm:$0xff]
        %v615 = vld [vmem:[%s489 + $0xd0] sm:$0xff]
        %v616 = vld [vmem:[%s489 + $0xd8] sm:$0xff]
        %v617 = vld [vmem:[%s489 + $0xe0] sm:$0xff]
        %v618 = vld [vmem:[%s489 + $0xe8] sm:$0xff]
        %v619 = vld [vmem:[%s489 + $0xf0] sm:$0xff]
        %v620 = vld [vmem:[%s489 + $0xf8] sm:$0xff]
        %v621 = vld [vmem:[%s555] sm:$0x3]
        %v623 = vperm.slane %v621, 0
        %v624 = vperm.slane %v621, 1
        %v659 = vunpack.c.l.b16 %v589
        %v660 = vunpack.c.h.b16 %v589
        %v661 = vunpack.c.l.b16 %v590
        %v662 = vunpack.c.h.b16 %v590
        %v663 = vunpack.c.l.b16 %v591
        %v664 = vunpack.c.h.b16 %v591
        %v665 = vunpack.c.l.b16 %v592
        %v666 = vunpack.c.h.b16 %v592
        %v667 = vunpack.c.l.b16 %v593
        %v668 = vunpack.c.h.b16 %v593
        %v669 = vunpack.c.l.b16 %v594
        %v670 = vunpack.c.h.b16 %v594
        %v671 = vunpack.c.l.b16 %v595
        %v672 = vunpack.c.h.b16 %v595
        %v673 = vunpack.c.l.b16 %v596
        %v674 = vunpack.c.h.b16 %v596
        %v675 = vunpack.c.l.b16 %v597
        %v676 = vunpack.c.h.b16 %v597
        %v677 = vunpack.c.l.b16 %v598
        %v678 = vunpack.c.h.b16 %v598
        %v679 = vunpack.c.l.b16 %v599
        %v680 = vunpack.c.h.b16 %v599
        %v681 = vunpack.c.l.b16 %v600
        %v682 = vunpack.c.h.b16 %v600
        %v683 = vunpack.c.l.b16 %v601
        %v684 = vunpack.c.h.b16 %v601
        %v685 = vunpack.c.l.b16 %v602
        %v686 = vunpack.c.h.b16 %v602
        %v687 = vunpack.c.l.b16 %v603
        %v688 = vunpack.c.h.b16 %v603
        %v689 = vunpack.c.l.b16 %v604
        %v690 = vunpack.c.h.b16 %v604
        %v691 = vunpack.c.l.b16 %v605
        %v692 = vunpack.c.h.b16 %v605
        %v693 = vunpack.c.l.b16 %v606
        %v694 = vunpack.c.h.b16 %v606
        %v695 = vunpack.c.l.b16 %v607
        %v696 = vunpack.c.h.b16 %v607
        %v697 = vunpack.c.l.b16 %v608
        %v698 = vunpack.c.h.b16 %v608
        %v699 = vunpack.c.l.b16 %v609
        %v700 = vunpack.c.h.b16 %v609
        %v701 = vunpack.c.l.b16 %v610
        %v702 = vunpack.c.h.b16 %v610
        %v703 = vunpack.c.l.b16 %v611
        %v704 = vunpack.c.h.b16 %v611
        %v705 = vunpack.c.l.b16 %v612
        %v706 = vunpack.c.h.b16 %v612
        %v707 = vunpack.c.l.b16 %v613
        %v708 = vunpack.c.h.b16 %v613
        %v709 = vunpack.c.l.b16 %v614
        %v710 = vunpack.c.h.b16 %v614
        %v711 = vunpack.c.l.b16 %v615
        %v712 = vunpack.c.h.b16 %v615
        %v713 = vunpack.c.l.b16 %v616
        %v714 = vunpack.c.h.b16 %v616
        %v715 = vunpack.c.l.b16 %v617
        %v716 = vunpack.c.h.b16 %v617
        %v717 = vunpack.c.l.b16 %v618
        %v718 = vunpack.c.h.b16 %v618
        %v719 = vunpack.c.l.b16 %v619
        %v720 = vunpack.c.h.b16 %v619
        %v721 = vunpack.c.l.b16 %v620
        %v722 = vunpack.c.h.b16 %v620
        %v723 = vpack.c.b16 %v661, %v659
        %v724 = vpack.c.b16 %v662, %v660
        %v725 = vpack.c.b16 %v665, %v663
        %v726 = vpack.c.b16 %v666, %v664
        %v727 = vpack.c.b16 %v669, %v667
        %v728 = vpack.c.b16 %v670, %v668
        %v729 = vpack.c.b16 %v673, %v671
        %v730 = vpack.c.b16 %v674, %v672
        %v731 = vpack.c.b16 %v677, %v675
        %v732 = vpack.c.b16 %v678, %v676
        %v733 = vpack.c.b16 %v681, %v679
        %v734 = vpack.c.b16 %v682, %v680
        %v735 = vpack.c.b16 %v685, %v683
        %v736 = vpack.c.b16 %v686, %v684
        %v737 = vpack.c.b16 %v689, %v687
        %v738 = vpack.c.b16 %v690, %v688
        %v739 = vpack.c.b16 %v693, %v691
        %v740 = vpack.c.b16 %v694, %v692
        %v741 = vpack.c.b16 %v697, %v695
        %v742 = vpack.c.b16 %v698, %v696
        %v743 = vpack.c.b16 %v701, %v699
        %v744 = vpack.c.b16 %v702, %v700
        %v745 = vpack.c.b16 %v705, %v703
        %v746 = vpack.c.b16 %v706, %v704
        %v747 = vpack.c.b16 %v709, %v707
        %v748 = vpack.c.b16 %v710, %v708
        %v749 = vpack.c.b16 %v713, %v711
        %v750 = vpack.c.b16 %v714, %v712
        %v751 = vpack.c.b16 %v717, %v715
        %v752 = vpack.c.b16 %v718, %v716
        %v753 = vpack.c.b16 %v721, %v719
        %v754 = vpack.c.b16 %v722, %v720
        %787 = vmatpush.bf16.msra.mxu0 %v737
        %788 = vmatpush.bf16.msra.mxu0 %v735
        %789 = vmatpush.bf16.msra.mxu0 %v733
        %790 = vmatpush.bf16.msra.mxu0 %v731
        %791 = vmatpush.bf16.msra.mxu0 %v729
        %792 = vmatpush.bf16.msra.mxu0 %v727
        %793 = vmatpush.bf16.msra.mxu0 %v725
        %794 = vmatpush.bf16.msra.mxu0 %v723
        %795 = vmatmul.bf16.gmra.mxu0 %v585
        %v796 = vpop.f32.mrf.mxu0
        %v797 = vadd.f32 %v623, %v796
        %v798 = vpop.f32.mrf.mxu0
        %v799 = vadd.f32 %v623, %v798
        %800 = vmatmul.bf16.gmra.mxu0 %v587
        %v801 = vpop.f32.mrf.mxu0
        %v802 = vadd.f32 %v623, %v801
        %v803 = vpop.f32.mrf.mxu0
        %v804 = vadd.f32 %v623, %v803
        %805 = vdwg.mxu0
        %806 = vmatpush.bf16.msra.mxu0 %v753
        %807 = vmatpush.bf16.msra.mxu0 %v751
        %808 = vmatpush.bf16.msra.mxu0 %v749
        %809 = vmatpush.bf16.msra.mxu0 %v747
        %810 = vmatpush.bf16.msra.mxu0 %v745
        %811 = vmatpush.bf16.msra.mxu0 %v743
        %812 = vmatpush.bf16.msra.mxu0 %v741
        %813 = vmatpush.bf16.msra.mxu0 %v739
        %814 = vmatmul.bf16.gmra.mxu0 %v586
        %v815 = vpop.f32.mrf.mxu0
        %v816 = vadd.f32 %v797, %v815
        %v817 = vpop.f32.mrf.mxu0
        %v818 = vadd.f32 %v799, %v817
        %819 = vmatmul.bf16.gmra.mxu0 %v588
        %v820 = vpop.f32.mrf.mxu0
        %v821 = vadd.f32 %v802, %v820
        %v822 = vpop.f32.mrf.mxu0
        %v823 = vadd.f32 %v804, %v822
        %824 = vdwg.mxu0
        %825 = vmatpush.bf16.msra.mxu0 %v738
        %826 = vmatpush.bf16.msra.mxu0 %v736
        %827 = vmatpush.bf16.msra.mxu0 %v734
        %828 = vmatpush.bf16.msra.mxu0 %v732
        %829 = vmatpush.bf16.msra.mxu0 %v730
        %830 = vmatpush.bf16.msra.mxu0 %v728
        %831 = vmatpush.bf16.msra.mxu0 %v726
        %832 = vmatpush.bf16.msra.mxu0 %v724
        %833 = vmatmul.bf16.gmra.mxu0 %v585
        %v834 = vpop.f32.mrf.mxu0
        %v835 = vadd.f32 %v624, %v834
        %v836 = vpop.f32.mrf.mxu0
        %v837 = vadd.f32 %v624, %v836
        %838 = vmatmul.bf16.gmra.mxu0 %v587
        %v839 = vpop.f32.mrf.mxu0
        %v840 = vadd.f32 %v624, %v839
        %v841 = vpop.f32.mrf.mxu0
        %v842 = vadd.f32 %v624, %v841
        %843 = vdwg.mxu0
        %844 = vmatpush.bf16.msra.mxu0 %v754
        %845 = vmatpush.bf16.msra.mxu0 %v752
        %846 = vmatpush.bf16.msra.mxu0 %v750
        %847 = vmatpush.bf16.msra.mxu0 %v748
        %848 = vmatpush.bf16.msra.mxu0 %v746
        %849 = vmatpush.bf16.msra.mxu0 %v744
        %850 = vmatpush.bf16.msra.mxu0 %v742
        %851 = vmatpush.bf16.msra.mxu0 %v740
        %852 = vmatmul.bf16.gmra.mxu0 %v586
        %v853 = vpop.f32.mrf.mxu0
        %v854 = vadd.f32 %v835, %v853
        %v855 = vpop.f32.mrf.mxu0
        %v856 = vadd.f32 %v837, %v855
        %857 = vmatmul.bf16.gmra.mxu0 %v588
        %v858 = vpop.f32.mrf.mxu0
        %v859 = vadd.f32 %v840, %v858
        %v860 = vpop.f32.mrf.mxu0
        %v861 = vadd.f32 %v842, %v860
        %862 = vdwg.mxu0
        %v863 = vmax.f32 %v816, 0.0
        %v864 = vmax.f32 %v854, 0.0
        %v865 = vmax.f32 %v818, 0.0
        %v866 = vmax.f32 %v856, 0.0
        %v867 = vmax.f32 %v821, 0.0
        %v868 = vmax.f32 %v859, 0.0
        %v869 = vmax.f32 %v823, 0.0
        %v870 = vmax.f32 %v861, 0.0
        %v871 = vld [vmem:[#allocation2] sm:$0xff]
        %v872 = vld [vmem:[#allocation2 + $0x8] sm:$0xff]
        %v873 = vld [vmem:[#allocation2 + $0x10] sm:$0xff]
        %v874 = vld [vmem:[#allocation2 + $0x18] sm:$0xff]
        %v875 = vld [vmem:[#allocation2 + $0x20] sm:$0xff]
        %v876 = vld [vmem:[#allocation2 + $0x28] sm:$0xff]
        %v877 = vld [vmem:[#allocation2 + $0x30] sm:$0xff]
        %v878 = vld [vmem:[#allocation2 + $0x38] sm:$0xff]
        %v879 = vpack.c.bf16 %v865, %v863
        %v880 = vpack.c.bf16 %v866, %v864
        %v881 = vpack.c.bf16 %v869, %v867
        %v882 = vpack.c.bf16 %v870, %v868
        %v883 = vld [vmem:[%s562] sm:$0xff]
        %v884 = vld [vmem:[%s562 + $0x8] sm:$0xff]
        %v885 = vld [vmem:[%s562 + $0x10] sm:$0xff]
        %v886 = vld [vmem:[%s562 + $0x18] sm:$0xff]
        %v887 = vld [vmem:[%s562 + $0x20] sm:$0xff]
        %v888 = vld [vmem:[%s562 + $0x28] sm:$0xff]
        %v889 = vld [vmem:[%s562 + $0x30] sm:$0xff]
        %v890 = vld [vmem:[%s562 + $0x38] sm:$0xff]
        %v891 = vld [vmem:[%s562 + $0x40] sm:$0xff]
        %v892 = vld [vmem:[%s562 + $0x48] sm:$0xff]
        %v893 = vld [vmem:[%s562 + $0x50] sm:$0xff]
        %v894 = vld [vmem:[%s562 + $0x58] sm:$0xff]
        %v895 = vld [vmem:[%s562 + $0x60] sm:$0xff]
        %v896 = vld [vmem:[%s562 + $0x68] sm:$0xff]
        %v897 = vld [vmem:[%s562 + $0x70] sm:$0xff]
        %v898 = vld [vmem:[%s562 + $0x78] sm:$0xff]
        %v899 = vld [vmem:[%s562 + $0x80] sm:$0xff]
        %v900 = vld [vmem:[%s562 + $0x88] sm:$0xff]
        %v901 = vld [vmem:[%s562 + $0x90] sm:$0xff]
        %v902 = vld [vmem:[%s562 + $0x98] sm:$0xff]
        %v903 = vld [vmem:[%s562 + $0xa0] sm:$0xff]
        %v904 = vld [vmem:[%s562 + $0xa8] sm:$0xff]
        %v905 = vld [vmem:[%s562 + $0xb0] sm:$0xff]
        %v906 = vld [vmem:[%s562 + $0xb8] sm:$0xff]
        %v907 = vld [vmem:[%s562 + $0xc0] sm:$0xff]
        %v908 = vld [vmem:[%s562 + $0xc8] sm:$0xff]
        %v909 = vld [vmem:[%s562 + $0xd0] sm:$0xff]
        %v910 = vld [vmem:[%s562 + $0xd8] sm:$0xff]
        %v911 = vld [vmem:[%s562 + $0xe0] sm:$0xff]
        %v912 = vld [vmem:[%s562 + $0xe8] sm:$0xff]
        %v913 = vld [vmem:[%s562 + $0xf0] sm:$0xff]
        %v914 = vld [vmem:[%s562 + $0xf8] sm:$0xff]
        %v947 = vunpack.c.l.b16 %v883
        %v948 = vunpack.c.h.b16 %v883
        %v949 = vunpack.c.l.b16 %v884
        %v950 = vunpack.c.h.b16 %v884
        %v951 = vunpack.c.l.b16 %v885
        %v952 = vunpack.c.h.b16 %v885
        %v953 = vunpack.c.l.b16 %v886
        %v954 = vunpack.c.h.b16 %v886
        %v955 = vunpack.c.l.b16 %v887
        %v956 = vunpack.c.h.b16 %v887
        %v957 = vunpack.c.l.b16 %v888
        %v958 = vunpack.c.h.b16 %v888
        %v959 = vunpack.c.l.b16 %v889
        %v960 = vunpack.c.h.b16 %v889
        %v961 = vunpack.c.l.b16 %v890
        %v962 = vunpack.c.h.b16 %v890
        %v963 = vunpack.c.l.b16 %v891
        %v964 = vunpack.c.h.b16 %v891
        %v965 = vunpack.c.l.b16 %v892
        %v966 = vunpack.c.h.b16 %v892
        %v967 = vunpack.c.l.b16 %v893
        %v968 = vunpack.c.h.b16 %v893
        %v969 = vunpack.c.l.b16 %v894
        %v970 = vunpack.c.h.b16 %v894
        %v971 = vunpack.c.l.b16 %v895
        %v972 = vunpack.c.h.b16 %v895
        %v973 = vunpack.c.l.b16 %v896
        %v974 = vunpack.c.h.b16 %v896
        %v975 = vunpack.c.l.b16 %v897
        %v976 = vunpack.c.h.b16 %v897
        %v977 = vunpack.c.l.b16 %v898
        %v978 = vunpack.c.h.b16 %v898
        %v979 = vunpack.c.l.b16 %v899
        %v980 = vunpack.c.h.b16 %v899
        %v981 = vunpack.c.l.b16 %v900
        %v982 = vunpack.c.h.b16 %v900
        %v983 = vunpack.c.l.b16 %v901
        %v984 = vunpack.c.h.b16 %v901
        %v985 = vunpack.c.l.b16 %v902
        %v986 = vunpack.c.h.b16 %v902
        %v987 = vunpack.c.l.b16 %v903
        %v988 = vunpack.c.h.b16 %v903
        %v989 = vunpack.c.l.b16 %v904
        %v990 = vunpack.c.h.b16 %v904
        %v991 = vunpack.c.l.b16 %v905
        %v992 = vunpack.c.h.b16 %v905
        %v993 = vunpack.c.l.b16 %v906
        %v994 = vunpack.c.h.b16 %v906
        %v995 = vunpack.c.l.b16 %v907
        %v996 = vunpack.c.h.b16 %v907
        %v997 = vunpack.c.l.b16 %v908
        %v998 = vunpack.c.h.b16 %v908
        %v999 = vunpack.c.l.b16 %v909
        %v1000 = vunpack.c.h.b16 %v909
        %v1001 = vunpack.c.l.b16 %v910
        %v1002 = vunpack.c.h.b16 %v910
        %v1003 = vunpack.c.l.b16 %v911
        %v1004 = vunpack.c.h.b16 %v911
        %v1005 = vunpack.c.l.b16 %v912
        %v1006 = vunpack.c.h.b16 %v912
        %v1007 = vunpack.c.l.b16 %v913
        %v1008 = vunpack.c.h.b16 %v913
        %v1009 = vunpack.c.l.b16 %v914
        %v1010 = vunpack.c.h.b16 %v914
        %v1011 = vpack.c.b16 %v949, %v947
        %v1012 = vpack.c.b16 %v950, %v948
        %v1013 = vpack.c.b16 %v953, %v951
        %v1014 = vpack.c.b16 %v954, %v952
        %v1015 = vpack.c.b16 %v957, %v955
        %v1016 = vpack.c.b16 %v958, %v956
        %v1017 = vpack.c.b16 %v961, %v959
        %v1018 = vpack.c.b16 %v962, %v960
        %v1019 = vpack.c.b16 %v965, %v963
        %v1020 = vpack.c.b16 %v966, %v964
        %v1021 = vpack.c.b16 %v969, %v967
        %v1022 = vpack.c.b16 %v970, %v968
        %v1023 = vpack.c.b16 %v973, %v971
        %v1024 = vpack.c.b16 %v974, %v972
        %v1025 = vpack.c.b16 %v977, %v975
        %v1026 = vpack.c.b16 %v978, %v976
        %v1027 = vpack.c.b16 %v981, %v979
        %v1028 = vpack.c.b16 %v982, %v980
        %v1029 = vpack.c.b16 %v985, %v983
        %v1030 = vpack.c.b16 %v986, %v984
        %v1031 = vpack.c.b16 %v989, %v987
        %v1032 = vpack.c.b16 %v990, %v988
        %v1033 = vpack.c.b16 %v993, %v991
        %v1034 = vpack.c.b16 %v994, %v992
        %v1035 = vpack.c.b16 %v997, %v995
        %v1036 = vpack.c.b16 %v998, %v996
        %v1037 = vpack.c.b16 %v1001, %v999
        %v1038 = vpack.c.b16 %v1002, %v1000
        %v1039 = vpack.c.b16 %v1005, %v1003
        %v1040 = vpack.c.b16 %v1006, %v1004
        %v1041 = vpack.c.b16 %v1009, %v1007
        %v1042 = vpack.c.b16 %v1010, %v1008
        %1075 = vmatpush.bf16.msra.mxu0 %v1025
        %1076 = vmatpush.bf16.msra.mxu0 %v1023
        %1077 = vmatpush.bf16.msra.mxu0 %v1021
        %1078 = vmatpush.bf16.msra.mxu0 %v1019
        %1079 = vmatpush.bf16.msra.mxu0 %v1017
        %1080 = vmatpush.bf16.msra.mxu0 %v1015
        %1081 = vmatpush.bf16.msra.mxu0 %v1013
        %1082 = vmatpush.bf16.msra.mxu0 %v1011
        %1083 = vmatmul.bf16.gmra.mxu0 %v879
        %v1084 = vpop.f32.mrf.mxu0
        %v1085 = vadd.f32 0.0, %v1084
        %v1086 = vpop.f32.mrf.mxu0
        %v1087 = vadd.f32 0.0, %v1086
        %1088 = vmatmul.bf16.gmra.mxu0 %v881
        %v1089 = vpop.f32.mrf.mxu0
        %v1090 = vadd.f32 0.0, %v1089
        %v1091 = vpop.f32.mrf.mxu0
        %v1092 = vadd.f32 0.0, %v1091
        %1093 = vdwg.mxu0
        %1094 = vmatpush.bf16.msra.mxu0 %v1041
        %1095 = vmatpush.bf16.msra.mxu0 %v1039
        %1096 = vmatpush.bf16.msra.mxu0 %v1037
        %1097 = vmatpush.bf16.msra.mxu0 %v1035
        %1098 = vmatpush.bf16.msra.mxu0 %v1033
        %1099 = vmatpush.bf16.msra.mxu0 %v1031
        %1100 = vmatpush.bf16.msra.mxu0 %v1029
        %1101 = vmatpush.bf16.msra.mxu0 %v1027
        %1102 = vmatmul.bf16.gmra.mxu0 %v880
        %v1103 = vpop.f32.mrf.mxu0
        %v1104 = vadd.f32 %v1085, %v1103
        %v1105 = vpop.f32.mrf.mxu0
        %v1106 = vadd.f32 %v1087, %v1105
        %1107 = vmatmul.bf16.gmra.mxu0 %v882
        %v1108 = vpop.f32.mrf.mxu0
        %v1109 = vadd.f32 %v1090, %v1108
        %v1110 = vpop.f32.mrf.mxu0
        %v1111 = vadd.f32 %v1092, %v1110
        %1112 = vdwg.mxu0
        %1113 = vmatpush.bf16.msra.mxu0 %v1026
        %1114 = vmatpush.bf16.msra.mxu0 %v1024
        %1115 = vmatpush.bf16.msra.mxu0 %v1022
        %1116 = vmatpush.bf16.msra.mxu0 %v1020
        %1117 = vmatpush.bf16.msra.mxu0 %v1018
        %1118 = vmatpush.bf16.msra.mxu0 %v1016
        %1119 = vmatpush.bf16.msra.mxu0 %v1014
        %1120 = vmatpush.bf16.msra.mxu0 %v1012
        %1121 = vmatmul.bf16.gmra.mxu0 %v879
        %v1122 = vpop.f32.mrf.mxu0
        %v1123 = vadd.f32 0.0, %v1122
        %v1124 = vpop.f32.mrf.mxu0
        %v1125 = vadd.f32 0.0, %v1124
        %1126 = vmatmul.bf16.gmra.mxu0 %v881
        %v1127 = vpop.f32.mrf.mxu0
        %v1128 = vadd.f32 0.0, %v1127
        %v1129 = vpop.f32.mrf.mxu0
        %v1130 = vadd.f32 0.0, %v1129
        %1131 = vdwg.mxu0
        %1132 = vmatpush.bf16.msra.mxu0 %v1042
        %1133 = vmatpush.bf16.msra.mxu0 %v1040
        %1134 = vmatpush.bf16.msra.mxu0 %v1038
        %1135 = vmatpush.bf16.msra.mxu0 %v1036
        %1136 = vmatpush.bf16.msra.mxu0 %v1034
        %1137 = vmatpush.bf16.msra.mxu0 %v1032
        %1138 = vmatpush.bf16.msra.mxu0 %v1030
        %1139 = vmatpush.bf16.msra.mxu0 %v1028
        %1140 = vmatmul.bf16.gmra.mxu0 %v880
        %v1141 = vpop.f32.mrf.mxu0
        %v1142 = vadd.f32 %v1123, %v1141
        %v1143 = vpop.f32.mrf.mxu0
        %v1144 = vadd.f32 %v1125, %v1143
        %1145 = vmatmul.bf16.gmra.mxu0 %v882
        %v1146 = vpop.f32.mrf.mxu0
        %v1147 = vadd.f32 %v1128, %v1146
        %v1148 = vpop.f32.mrf.mxu0
        %v1149 = vadd.f32 %v1130, %v1148
        %1150 = vdwg.mxu0
        %v1151 = vadd.f32 %v871, %v1104
        %v1152 = vadd.f32 %v872, %v1142
        %v1153 = vadd.f32 %v873, %v1106
        %v1154 = vadd.f32 %v874, %v1144
        %v1155 = vadd.f32 %v875, %v1109
        %v1156 = vadd.f32 %v876, %v1147
        %v1157 = vadd.f32 %v877, %v1111
        %v1158 = vadd.f32 %v878, %v1149
        %1159 = vst [vmem:[#allocation2] sm:$0xff] %v1151
        %1160 = vst [vmem:[#allocation2 + $0x8] sm:$0xff] %v1152
        %1161 = vst [vmem:[#allocation2 + $0x10] sm:$0xff] %v1153
        %1162 = vst [vmem:[#allocation2 + $0x18] sm:$0xff] %v1154
        %1163 = vst [vmem:[#allocation2 + $0x20] sm:$0xff] %v1155
        %1164 = vst [vmem:[#allocation2 + $0x28] sm:$0xff] %v1156
        %1165 = vst [vmem:[#allocation2 + $0x30] sm:$0xff] %v1157
        %1166 = vst [vmem:[#allocation2 + $0x38] sm:$0xff] %v1158
        %p1167 = scmp.eq.s32.totalorder %s25, 1
        // Predicated region
        $region95: #{decoder_layer.5} parent=85 // pred_check
          %p1168 = pneg %p1167
        $region96: #{decoder_layer.5} parent=85 // pred_check_branch
          %1170 = sbr.rel (%p1168) target = $region98
        $region97: #{decoder_layer.5} parent=85 // pred_region
          %v1171 = vld [vmem:[#allocation2] sm:$0xff]
          %v1172 = vld [vmem:[#allocation2 + $0x8] sm:$0xff]
          %v1173 = vld [vmem:[#allocation2 + $0x10] sm:$0xff]
          %v1174 = vld [vmem:[#allocation2 + $0x18] sm:$0xff]
          %v1175 = vld [vmem:[#allocation2 + $0x20] sm:$0xff]
          %v1176 = vld [vmem:[#allocation2 + $0x28] sm:$0xff]
          %v1177 = vld [vmem:[#allocation2 + $0x30] sm:$0xff]
          %v1178 = vld [vmem:[#allocation2 + $0x38] sm:$0xff]
          %v1179 = vld [vmem:[%s5] sm:$0x3]
          %v1181 = vperm.slane %v1179, 0
          %v1182 = vperm.slane %v1179, 1
          %v1185 = vadd.f32 %v1171, %v1181
          %v1186 = vadd.f32 %v1172, %v1182
          %v1187 = vadd.f32 %v1173, %v1181
          %v1188 = vadd.f32 %v1174, %v1182
          %v1189 = vadd.f32 %v1175, %v1181
          %v1190 = vadd.f32 %v1176, %v1182
          %v1191 = vadd.f32 %v1177, %v1181
          %v1192 = vadd.f32 %v1178, %v1182
          %v1193 = vld [vmem:[%s549] sm:$0xff]
          %v1194 = vld [vmem:[%s549 + $0x8] sm:$0xff]
          %v1195 = vld [vmem:[%s549 + $0x10] sm:$0xff]
          %v1196 = vld [vmem:[%s549 + $0x18] sm:$0xff]
          %v1197 = vld [vmem:[%s549 + $0x20] sm:$0xff]
          %v1198 = vld [vmem:[%s549 + $0x28] sm:$0xff]
          %v1199 = vld [vmem:[%s549 + $0x30] sm:$0xff]
          %v1200 = vld [vmem:[%s549 + $0x38] sm:$0xff]
          %v1201 = vadd.f32 %v1185, %v1193
          %v1202 = vadd.f32 %v1186, %v1194
          %v1203 = vadd.f32 %v1187, %v1195
          %v1204 = vadd.f32 %v1188, %v1196
          %v1205 = vadd.f32 %v1189, %v1197
          %v1206 = vadd.f32 %v1190, %v1198
          %v1207 = vadd.f32 %v1191, %v1199
          %v1208 = vadd.f32 %v1192, %v1200
          %v1209 = vld [vmem:[%s6] sm:$0x3]
          %v1210 = vld [vmem:[%s7] sm:$0x3]
          %v1211 = vadd.f32 %v1201, %v1202
          %1212 = vadd.xlane.f32.xlu0 %v1211
          %v1213 = vpop.xlane.xlu0 %1212
          %v1214 = vadd.f32 %v1203, %v1204
          %1215 = vadd.xlane.f32.xlu0 %v1214
          %v1216 = vpop.xlane.xlu0 %1215
          %v1217 = vadd.f32 %v1205, %v1206
          %1218 = vadd.xlane.f32.xlu0 %v1217
          %v1219 = vpop.xlane.xlu0 %1218
          %v1220 = vadd.f32 %v1207, %v1208
          %1221 = vadd.xlane.f32.xlu0 %v1220
          %v1222 = vpop.xlane.xlu0 %1221
          %v1223 = vrcp.pop 256.0
          %v1224 = vmul.f32 256.0, %v1223
          %v1225 = vsub.f32 1.0, %v1224
          %v1226 = vmul.f32 %v1223, %v1225
          %v1227 = vadd.f32 %v1223, %v1226
          %vm1228 = vweird.f32 %v1223
          %v1229 = vsel %vm1228, %v1223, %v1227
          %v1230 = vmul.f32 %v1213, %v1229
          %v1231 = vmul.f32 %v1216, %v1229
          %v1232 = vmul.f32 %v1219, %v1229
          %v1233 = vmul.f32 %v1222, %v1229
          %v1234 = vsub.f32 %v1201, %v1230
          %v1235 = vsub.f32 %v1202, %v1230
          %v1236 = vsub.f32 %v1203, %v1231
          %v1237 = vsub.f32 %v1204, %v1231
          %v1238 = vsub.f32 %v1205, %v1232
          %v1239 = vsub.f32 %v1206, %v1232
          %v1240 = vsub.f32 %v1207, %v1233
          %v1241 = vsub.f32 %v1208, %v1233
          %v1242 = vmul.f32 %v1234, %v1234
          %v1243 = vmul.f32 %v1235, %v1235
          %v1244 = vmul.f32 %v1236, %v1236
          %v1245 = vmul.f32 %v1237, %v1237
          %v1246 = vmul.f32 %v1238, %v1238
          %v1247 = vmul.f32 %v1239, %v1239
          %v1248 = vmul.f32 %v1240, %v1240
          %v1249 = vmul.f32 %v1241, %v1241
          %v1250 = vadd.f32 %v1242, %v1243
          %1251 = vadd.xlane.f32.xlu0 %v1250
          %v1252 = vpop.xlane.xlu0 %1251
          %v1253 = vadd.f32 %v1244, %v1245
          %1254 = vadd.xlane.f32.xlu0 %v1253
          %v1255 = vpop.xlane.xlu0 %1254
          %v1256 = vadd.f32 %v1246, %v1247
          %1257 = vadd.xlane.f32.xlu0 %v1256
          %v1258 = vpop.xlane.xlu0 %1257
          %v1259 = vadd.f32 %v1248, %v1249
          %1260 = vadd.xlane.f32.xlu0 %v1259
          %v1261 = vpop.xlane.xlu0 %1260
          %v1262 = vmul.f32 %v1252, %v1229
          %v1263 = vmul.f32 %v1255, %v1229
          %v1264 = vmul.f32 %v1258, %v1229
          %v1265 = vmul.f32 %v1261, %v1229
          %v1266 = vadd.f32 %v1262, 1e-05
          %v1267 = vadd.f32 %v1263, 1e-05
          %v1268 = vadd.f32 %v1264, 1e-05
          %v1269 = vadd.f32 %v1265, 1e-05
          %v1270 = vrsqrt.pop %v1266
          %v1271 = vmul.f32 %v1270, %v1266
          %v1272 = vmul.f32 %v1271, %v1270
          %v1273 = vmul.f32 0.5, %v1272
          %v1274 = vsub.f32 1.5, %v1273
          %v1275 = vmul.f32 %v1270, %v1274
          %vm1276 = vweird.f32 %v1266
          %vm1277 = vweird.f32 %v1270
          %vm1278 = vmor %vm1276, %vm1277
          %v1279 = vsel %vm1278, %v1270, %v1275
          %v1280 = vrsqrt.pop %v1267
          %v1281 = vmul.f32 %v1280, %v1267
          %v1282 = vmul.f32 %v1281, %v1280
          %v1283 = vmul.f32 0.5, %v1282
          %v1284 = vsub.f32 1.5, %v1283
          %v1285 = vmul.f32 %v1280, %v1284
          %vm1286 = vweird.f32 %v1267
          %vm1287 = vweird.f32 %v1280
          %vm1288 = vmor %vm1286, %vm1287
          %v1289 = vsel %vm1288, %v1280, %v1285
          %v1290 = vrsqrt.pop %v1268
          %v1291 = vmul.f32 %v1290, %v1268
          %v1292 = vmul.f32 %v1291, %v1290
          %v1293 = vmul.f32 0.5, %v1292
          %v1294 = vsub.f32 1.5, %v1293
          %v1295 = vmul.f32 %v1290, %v1294
          %vm1296 = vweird.f32 %v1268
          %vm1297 = vweird.f32 %v1290
          %vm1298 = vmor %vm1296, %vm1297
          %v1299 = vsel %vm1298, %v1290, %v1295
          %v1300 = vrsqrt.pop %v1269
          %v1301 = vmul.f32 %v1300, %v1269
          %v1302 = vmul.f32 %v1301, %v1300
          %v1303 = vmul.f32 0.5, %v1302
          %v1304 = vsub.f32 1.5, %v1303
          %v1305 = vmul.f32 %v1300, %v1304
          %vm1306 = vweird.f32 %v1269
          %vm1307 = vweird.f32 %v1300
          %vm1308 = vmor %vm1306, %vm1307
          %v1309 = vsel %vm1308, %v1300, %v1305
          %v1310 = vmul.f32 %v1234, %v1279
          %v1311 = vmul.f32 %v1235, %v1279
          %v1312 = vmul.f32 %v1236, %v1289
          %v1313 = vmul.f32 %v1237, %v1289
          %v1314 = vmul.f32 %v1238, %v1299
          %v1315 = vmul.f32 %v1239, %v1299
          %v1316 = vmul.f32 %v1240, %v1309
          %v1317 = vmul.f32 %v1241, %v1309
          %v1319 = vperm.slane %v1209, 0
          %v1320 = vperm.slane %v1209, 1
          %v1323 = vmul.f32 %v1319, %v1310
          %v1324 = vmul.f32 %v1320, %v1311
          %v1325 = vmul.f32 %v1319, %v1312
          %v1326 = vmul.f32 %v1320, %v1313
          %v1327 = vmul.f32 %v1319, %v1314
          %v1328 = vmul.f32 %v1320, %v1315
          %v1329 = vmul.f32 %v1319, %v1316
          %v1330 = vmul.f32 %v1320, %v1317
          %v1332 = vperm.slane %v1210, 0
          %v1333 = vperm.slane %v1210, 1
          %v1336 = vadd.f32 %v1323, %v1332
          %v1337 = vadd.f32 %v1324, %v1333
          %v1338 = vadd.f32 %v1325, %v1332
          %v1339 = vadd.f32 %v1326, %v1333
          %v1340 = vadd.f32 %v1327, %v1332
          %v1341 = vadd.f32 %v1328, %v1333
          %v1342 = vadd.f32 %v1329, %v1332
          %v1343 = vadd.f32 %v1330, %v1333
          %1344 = vst [vmem:[#allocation4] sm:$0xff] %v1336
          %1345 = vst [vmem:[#allocation4 + $0x8] sm:$0xff] %v1337
          %1346 = vst [vmem:[#allocation4 + $0x10] sm:$0xff] %v1338
          %1347 = vst [vmem:[#allocation4 + $0x18] sm:$0xff] %v1339
          %1348 = vst [vmem:[#allocation4 + $0x20] sm:$0xff] %v1340
          %1349 = vst [vmem:[#allocation4 + $0x28] sm:$0xff] %v1341
          %1350 = vst [vmem:[#allocation4 + $0x30] sm:$0xff] %v1342
          %1351 = vst [vmem:[#allocation4 + $0x38] sm:$0xff] %v1343
        $region98: #{decoder_layer.5} parent=85 // pred_fallthru
          _
        // Predicated region
        $region99: #{decoder_layer.5} parent=85 // pred_check
          %p1352 = pneg %p243
        $region100: #{decoder_layer.5} parent=85 // pred_check_branch
          %1354 = sbr.rel (%p1352) target = $region102
        $region101: #{decoder_layer.5} parent=85 // pred_region
          %s1355 = smul.u32 4, %s24
          %1357 = vsyncadd [#allocation5], 0
          %s1358 = smul.addr %s1355, 2
          %s1359 = smul.addr %s1358, 8
          %s1360 = scalar_lea.hbm %s8, %s1359
          %s1361 = sshll.u32 [#allocation4], 4
          %s1362 = int_to_ptr.vmem [resolvable:$true] %s1361
          %s1363 = sshll.u32 %s1360, 4
          %s1364 = int_to_ptr.hbm [resolvable:$true] %s1363
          %1369 = dma.vmem_to_hbm [thread:$0]  %s1362, 1024, %s1364, [#allocation5], 256, 256, 16
        $region102: #{decoder_layer.5} parent=85 // pred_fallthru
          _
        // Predicated region
        $region103: #{decoder_layer.5} parent=85 // pred_check
          %p1370 = pneg %p243
        $region104: #{decoder_layer.5} parent=85 // pred_check_branch
          %1372 = sbr.rel (%p1370) target = $region106
        $region105: #{decoder_layer.5} parent=85 // pred_region
          %1374 = dma.done [#allocation5], 1024
        $region106: #{decoder_layer.5} parent=85 // pred_fallthru
          _
      $region86: #{decoder_layer.5} parent=5 // pred_fallthru
        _
      %p1375 = scmp.le.s32.totalorder 2, %s15
      // Predicated region
      $region107: #{decoder_layer.5} parent=5 // pred_check
        %p1376 = pneg %p1375
      $region108: #{decoder_layer.5} parent=5 // pred_check_branch
        %1378 = sbr.rel (%p1376) target = $region110
      $region109: #{decoder_layer.5} parent=5 // pred_region
        %s1379 = ssub.s32 %s15, 2
      $region110: #{decoder_layer.5} parent=5 // pred_fallthru
        _
    $region6: #{decoder_layer.5} parent=1 // loop_footer
      %s19 = sadd.s32 1, %s15
    $region7: #{decoder_layer.5} parent=1 // loop_footer_branch
      %14 = sbr.rel target = $region3
    $region8: #{decoder_layer.5} parent=1 // loop_exit
      _
    %1380 = vsyncpa [#allocation5], 1
    %s1381 = scalar_lea.sflag [#allocation5], 1
    %1382 = vsyncpa %s1381, 1

// kernel: decoder_layer.3
$region0: #{decoder_layer.3}
  #allocation0 [shape = 'u32[]', space=smem, size = 0x4, offset = 0x4, fixed_abs, tag = 'smem constant byte address 0x4 - core index']
  #allocation1 [shape = 'u32[72,128]{1,0:T(1,128)}', space=vmem, size = 0x9000, scoped, tag = 'internal scratch']
  %s0 = inlined_call_operand.vmem [shape: f32[2,16,256], index: 0, kind: input, shape index: {}]
  %s1 = inlined_call_operand.vmem [shape: f32[16,16], index: 1, kind: input, shape index: {}]
  %s2 = inlined_call_operand.vmem [shape: bf16[256,768], index: 2, kind: input, shape index: {}]
  %s3 = inlined_call_operand.vmem [shape: f32[1,768], index: 3, kind: input, shape index: {}]
  %s4 = inlined_call_operand.vmem [shape: bf16[256,256], index: 4, kind: input, shape index: {}]
  %s5 = inlined_call_operand.vmem [shape: f32[1,256], index: 5, kind: input, shape index: {}]
  %s6 = inlined_call_operand.vmem [shape: f32[1,256], index: 6, kind: input, shape index: {}]
  %s7 = inlined_call_operand.vmem [shape: f32[1,256], index: 7, kind: input, shape index: {}]
  %s8 = inlined_call_operand.vmem [shape: f32[2,16,256], index: 8, kind: output, shape index: {}]
  %s9 = sld [smem:[#allocation0]]
  $region65: #{decoder_layer.3} parent=0
    _
  %s11 = ssub.s32 1, %s9
  %s12 = scalar_select 0, %s11, %s9
  loop: start=0, step=1, limit=4
  $region2: #{decoder_layer.3} parent=0 // loop_pre_header
    _
  $region3: #{decoder_layer.3} parent=0 // loop_header
    %s14 = sphi 0, %s18
    %p15 = scmp.ge.s32.totalorder %s14, 4
    %s24 = sphi 0, %s26
    %s27 = sphi 0, %s24
    %s28 = sphi 0, %s27
    %s44 = sphi 0, %s28
    %s48 = sphi 0, %s48
    %s50 = sphi 0, %s48
    %s51 = sphi 0, %s50
    %s65 = sphi 0, %s51
    %s69 = sphi 0, %s69
    %s71 = sphi 0, %s69
    %s72 = sphi 0, %s71
    %s86 = sphi 0, %s72
    %s90 = sphi 0, %s90
    %s92 = sphi 0, %s90
    %s93 = sphi 0, %s92
    %s107 = sphi 0, %s93
    %s111 = sphi 0, %s111
    %s113 = sphi 0, %s111
    %s114 = sphi 0, %s113
    %s128 = sphi 0, %s114
    %s132 = sphi 0, %s132
    %s134 = sphi 0, %s132
    %s135 = sphi 0, %s134
    %s149 = sphi 0, %s135
    %s153 = sphi 0, %s153
    %s155 = sphi 0, %s153
    %s156 = sphi 0, %s155
    %s170 = sphi 0, %s156
    %s174 = sphi 0, %s174
    %s176 = sphi 0, %s174
    %s177 = sphi 0, %s176
    %s191 = sphi 0, %s177
    %s197 = sphi 0, %s199
    %s200 = sphi 0, %s197
    %s201 = sphi 0, %s200
    %s217 = sphi 0, %s201
  $region4: #{decoder_layer.3} parent=0 // loop_header_branch
    %17 = sbr.rel (%p15) target = $region8
  $region5: #{decoder_layer.3} parent=0 // loop_body
    %s19 = ssub.s32 %s14, 1
    %s20 = ssub.s32 %s14, 2
    %s21 = sadd.s32 %s14, 1
    %s22 = ssub.s32 %s14, %s21
    %p23 = scmp.eq.s32.totalorder %s22, 0
    %s25 = sadd.s32 %s24, 1
    %s26 = scalar_select %p23, %s24, %s25
    %p29 = pneg %p23
    %p30 = scmp.eq.s32.totalorder %s14, 1
    %p31 = por %p29, %p30
    %p32 = scmp.ne.s32.totalorder %s24, %s27
    %p33 = scmp.eq.s32.totalorder %s14, 0
    %p34 = por %p32, %p33
    %p35 = scmp.ne.s32.totalorder %s24, %s27
    %p36 = scmp.eq.s32.totalorder %s19, 1
    %p37 = por %p35, %p36
    %p38 = scmp.ne.s32.totalorder %s27, %s28
    %p39 = scmp.eq.s32.totalorder %s19, 0
    %p40 = por %p38, %p39
    %p41 = scmp.ne.s32.totalorder %s27, %s28
    %p42 = scmp.eq.s32.totalorder %s20, 1
    %p43 = por %p41, %p42
    %p45 = scmp.ne.s32.totalorder %s28, %s44
    %p46 = scmp.eq.s32.totalorder %s20, 0
    %p47 = por %p45, %p46
    %s49 = sadd.s32 %s48, 1
    %p52 = scmp.eq.s32.totalorder %s14, 1
    %p53 = scmp.ne.s32.totalorder %s48, %s50
    %p54 = scmp.eq.s32.totalorder %s14, 0
    %p55 = por %p53, %p54
    %p56 = scmp.ne.s32.totalorder %s48, %s50
    %p57 = scmp.eq.s32.totalorder %s19, 1
    %p58 = por %p56, %p57
    %p59 = scmp.ne.s32.totalorder %s50, %s51
    %p60 = scmp.eq.s32.totalorder %s19, 0
    %p61 = por %p59, %p60
    %p62 = scmp.ne.s32.totalorder %s50, %s51
    %p63 = scmp.eq.s32.totalorder %s20, 1
    %p64 = por %p62, %p63
    %p66 = scmp.ne.s32.totalorder %s51, %s65
    %p67 = scmp.eq.s32.totalorder %s20, 0
    %p68 = por %p66, %p67
    %s70 = sadd.s32 %s69, 1
    %p73 = scmp.eq.s32.totalorder %s14, 1
    %p74 = scmp.ne.s32.totalorder %s69, %s71
    %p75 = scmp.eq.s32.totalorder %s14, 0
    %p76 = por %p74, %p75
    %p77 = scmp.ne.s32.totalorder %s69, %s71
    %p78 = scmp.eq.s32.totalorder %s19, 1
    %p79 = por %p77, %p78
    %p80 = scmp.ne.s32.totalorder %s71, %s72
    %p81 = scmp.eq.s32.totalorder %s19, 0
    %p82 = por %p80, %p81
    %p83 = scmp.ne.s32.totalorder %s71, %s72
    %p84 = scmp.eq.s32.totalorder %s20, 1
    %p85 = por %p83, %p84
    %p87 = scmp.ne.s32.totalorder %s72, %s86
    %p88 = scmp.eq.s32.totalorder %s20, 0
    %p89 = por %p87, %p88
    %s91 = sadd.s32 %s90, 1
    %p94 = scmp.eq.s32.totalorder %s14, 1
    %p95 = scmp.ne.s32.totalorder %s90, %s92
    %p96 = scmp.eq.s32.totalorder %s14, 0
    %p97 = por %p95, %p96
    %p98 = scmp.ne.s32.totalorder %s90, %s92
    %p99 = scmp.eq.s32.totalorder %s19, 1
    %p100 = por %p98, %p99
    %p101 = scmp.ne.s32.totalorder %s92, %s93
    %p102 = scmp.eq.s32.totalorder %s19, 0
    %p103 = por %p101, %p102
    %p104 = scmp.ne.s32.totalorder %s92, %s93
    %p105 = scmp.eq.s32.totalorder %s20, 1
    %p106 = por %p104, %p105
    %p108 = scmp.ne.s32.totalorder %s93, %s107
    %p109 = scmp.eq.s32.totalorder %s20, 0
    %p110 = por %p108, %p109
    %s112 = sadd.s32 %s111, 1
    %p115 = scmp.eq.s32.totalorder %s14, 1
    %p116 = scmp.ne.s32.totalorder %s111, %s113
    %p117 = scmp.eq.s32.totalorder %s14, 0
    %p118 = por %p116, %p117
    %p119 = scmp.ne.s32.totalorder %s111, %s113
    %p120 = scmp.eq.s32.totalorder %s19, 1
    %p121 = por %p119, %p120
    %p122 = scmp.ne.s32.totalorder %s113, %s114
    %p123 = scmp.eq.s32.totalorder %s19, 0
    %p124 = por %p122, %p123
    %p125 = scmp.ne.s32.totalorder %s113, %s114
    %p126 = scmp.eq.s32.totalorder %s20, 1
    %p127 = por %p125, %p126
    %p129 = scmp.ne.s32.totalorder %s114, %s128
    %p130 = scmp.eq.s32.totalorder %s20, 0
    %p131 = por %p129, %p130
    %s133 = sadd.s32 %s132, 1
    %p136 = scmp.eq.s32.totalorder %s14, 1
    %p137 = scmp.ne.s32.totalorder %s132, %s134
    %p138 = scmp.eq.s32.totalorder %s14, 0
    %p139 = por %p137, %p138
    %p140 = scmp.ne.s32.totalorder %s132, %s134
    %p141 = scmp.eq.s32.totalorder %s19, 1
    %p142 = por %p140, %p141
    %p143 = scmp.ne.s32.totalorder %s134, %s135
    %p144 = scmp.eq.s32.totalorder %s19, 0
    %p145 = por %p143, %p144
    %p146 = scmp.ne.s32.totalorder %s134, %s135
    %p147 = scmp.eq.s32.totalorder %s20, 1
    %p148 = por %p146, %p147
    %p150 = scmp.ne.s32.totalorder %s135, %s149
    %p151 = scmp.eq.s32.totalorder %s20, 0
    %p152 = por %p150, %p151
    %s154 = sadd.s32 %s153, 1
    %p157 = scmp.eq.s32.totalorder %s14, 1
    %p158 = scmp.ne.s32.totalorder %s153, %s155
    %p159 = scmp.eq.s32.totalorder %s14, 0
    %p160 = por %p158, %p159
    %p161 = scmp.ne.s32.totalorder %s153, %s155
    %p162 = scmp.eq.s32.totalorder %s19, 1
    %p163 = por %p161, %p162
    %p164 = scmp.ne.s32.totalorder %s155, %s156
    %p165 = scmp.eq.s32.totalorder %s19, 0
    %p166 = por %p164, %p165
    %p167 = scmp.ne.s32.totalorder %s155, %s156
    %p168 = scmp.eq.s32.totalorder %s20, 1
    %p169 = por %p167, %p168
    %p171 = scmp.ne.s32.totalorder %s156, %s170
    %p172 = scmp.eq.s32.totalorder %s20, 0
    %p173 = por %p171, %p172
    %s175 = sadd.s32 %s174, 1
    %p178 = scmp.eq.s32.totalorder %s14, 1
    %p179 = scmp.ne.s32.totalorder %s174, %s176
    %p180 = scmp.eq.s32.totalorder %s14, 0
    %p181 = por %p179, %p180
    %p182 = scmp.ne.s32.totalorder %s174, %s176
    %p183 = scmp.eq.s32.totalorder %s19, 1
    %p184 = por %p182, %p183
    %p185 = scmp.ne.s32.totalorder %s176, %s177
    %p186 = scmp.eq.s32.totalorder %s19, 0
    %p187 = por %p185, %p186
    %p188 = scmp.ne.s32.totalorder %s176, %s177
    %p189 = scmp.eq.s32.totalorder %s20, 1
    %p190 = por %p188, %p189
    %p192 = scmp.ne.s32.totalorder %s177, %s191
    %p193 = scmp.eq.s32.totalorder %s20, 0
    %p194 = por %p192, %p193
    %s195 = ssub.s32 %s14, %s21
    %p196 = scmp.eq.s32.totalorder %s195, 0
    %s198 = sadd.s32 %s197, 1
    %s199 = scalar_select %p196, %s197, %s198
    %p202 = pneg %p196
    %p203 = scmp.eq.s32.totalorder %s14, 1
    %p204 = por %p202, %p203
    %p205 = scmp.ne.s32.totalorder %s197, %s200
    %p206 = scmp.eq.s32.totalorder %s14, 0
    %p207 = por %p205, %p206
    %p208 = scmp.ne.s32.totalorder %s197, %s200
    %p209 = scmp.eq.s32.totalorder %s19, 1
    %p210 = por %p208, %p209
    %p211 = scmp.ne.s32.totalorder %s200, %s201
    %p212 = scmp.eq.s32.totalorder %s19, 0
    %p213 = por %p211, %p212
    %p214 = scmp.ne.s32.totalorder %s200, %s201
    %p215 = scmp.eq.s32.totalorder %s20, 1
    %p216 = por %p214, %p215
    %p218 = scmp.ne.s32.totalorder %s201, %s217
    %p219 = scmp.eq.s32.totalorder %s20, 0
    %p220 = por %p218, %p219
    %p221 = scmp.le.s32.totalorder 1, %s14
    %p222 = scmp.lt.s32.totalorder %s14, 3
    %p223 = pnand %p221, %p222
    %p224 = pneg %p223
    // Predicated region
    $region9: #{decoder_layer.3} parent=5 // pred_check
      _
    $region10: #{decoder_layer.3} parent=5 // pred_check_branch
      %226 = sbr.rel (%p223) target = $region12
    $region11: #{decoder_layer.3} parent=5 // pred_region
      %s227 = ssub.s32 %s14, 1
      // Predicated region
      $region13: #{decoder_layer.3} parent=11 // pred_check
        %p228 = pneg %p61
      $region14: #{decoder_layer.3} parent=11 // pred_check_branch
        %230 = sbr.rel (%p228) target = $region16
      $region15: #{decoder_layer.3} parent=11 // pred_region
        _
      $region16: #{decoder_layer.3} parent=11 // pred_fallthru
        _
      // Predicated region
      $region17: #{decoder_layer.3} parent=11 // pred_check
        %p231 = pneg %p82
      $region18: #{decoder_layer.3} parent=11 // pred_check_branch
        %233 = sbr.rel (%p231) target = $region20
      $region19: #{decoder_layer.3} parent=11 // pred_region
        _
      $region20: #{decoder_layer.3} parent=11 // pred_fallthru
        _
      // Predicated region
      $region21: #{decoder_layer.3} parent=11 // pred_check
        %p234 = pneg %p103
      $region22: #{decoder_layer.3} parent=11 // pred_check_branch
        %236 = sbr.rel (%p234) target = $region24
      $region23: #{decoder_layer.3} parent=11 // pred_region
        _
      $region24: #{decoder_layer.3} parent=11 // pred_fallthru
        _
      // Predicated region
      $region25: #{decoder_layer.3} parent=11 // pred_check
        %p237 = pneg %p124
      $region26: #{decoder_layer.3} parent=11 // pred_check_branch
        %239 = sbr.rel (%p237) target = $region28
      $region27: #{decoder_layer.3} parent=11 // pred_region
        _
      $region28: #{decoder_layer.3} parent=11 // pred_fallthru
        _
      // Predicated region
      $region29: #{decoder_layer.3} parent=11 // pred_check
        %p240 = pneg %p145
      $region30: #{decoder_layer.3} parent=11 // pred_check_branch
        %242 = sbr.rel (%p240) target = $region32
      $region31: #{decoder_layer.3} parent=11 // pred_region
        _
      $region32: #{decoder_layer.3} parent=11 // pred_fallthru
        _
      // Predicated region
      $region33: #{decoder_layer.3} parent=11 // pred_check
        %p243 = pneg %p166
      $region34: #{decoder_layer.3} parent=11 // pred_check_branch
        %245 = sbr.rel (%p243) target = $region36
      $region35: #{decoder_layer.3} parent=11 // pred_region
        _
      $region36: #{decoder_layer.3} parent=11 // pred_fallthru
        _
      // Predicated region
      $region37: #{decoder_layer.3} parent=11 // pred_check
        %p246 = pneg %p187
      $region38: #{decoder_layer.3} parent=11 // pred_check_branch
        %248 = sbr.rel (%p246) target = $region40
      $region39: #{decoder_layer.3} parent=11 // pred_region
        _
      $region40: #{decoder_layer.3} parent=11 // pred_fallthru
        _
    $region12: #{decoder_layer.3} parent=5 // pred_fallthru
      _
    %p249 = scmp.lt.s32.totalorder %s14, 2
    // Predicated region
    $region41: #{decoder_layer.3} parent=5 // pred_check
      %p250 = pneg %p249
    $region42: #{decoder_layer.3} parent=5 // pred_check_branch
      %252 = sbr.rel (%p250) target = $region44
    $region43: #{decoder_layer.3} parent=5 // pred_region
      // Predicated region
      $region45: #{decoder_layer.3} parent=43 // pred_check
        %p253 = pneg %p34
      $region46: #{decoder_layer.3} parent=43 // pred_check_branch
        %255 = sbr.rel (%p253) target = $region48
      $region47: #{decoder_layer.3} parent=43 // pred_region
        %p256 = scmp.lt.s32.totalorder %s14, 1
        %s257 = scalar_select %p256, %s14, 1
        %s258 = smul.addr %s257, 4
        %s259 = smul.addr %s258, 8
        %s260 = scalar_lea.vmem %s0, %s259
      $region48: #{decoder_layer.3} parent=43 // pred_fallthru
        _
    $region44: #{decoder_layer.3} parent=5 // pred_fallthru
      _
    %p261 = scmp.le.s32.totalorder 1, %s14
    %p262 = scmp.lt.s32.totalorder %s14, 3
    %p263 = pnand %p261, %p262
    %p264 = pneg %p263
    // Predicated region
    $region49: #{decoder_layer.3} parent=5 // pred_check
      _
    $region50: #{decoder_layer.3} parent=5 // pred_check_branch
      %266 = sbr.rel (%p263) target = $region52
    $region51: #{decoder_layer.3} parent=5 // pred_region
      %s267 = ssub.s32 %s14, 1
      %p268 = scmp.lt.s32.totalorder %s19, 1
      %s269 = scalar_select %p268, %s19, 1
      %s270 = smul.addr %s269, 4
      %s271 = smul.addr %s270, 8
      %s272 = scalar_lea.vmem %s0, %s271
      %p273 = pneg %p40
      %p274 = pneg %p37
      %p275 = pneg %p61
      %p276 = pneg %p58
      %p277 = pneg %p82
      %p278 = pneg %p79
      %p279 = pneg %p103
      %p280 = pneg %p100
      %p281 = pneg %p124
      %p282 = pneg %p121
      %p283 = pneg %p145
      %p284 = pneg %p142
      %p285 = pneg %p166
      %p286 = pneg %p163
      %p287 = pneg %p187
      %p288 = pneg %p184
      %p289 = pneg %p213
      %p290 = pneg %p210
      %p291 = scmp.lt.s32.totalorder %s19, 1
      %s292 = scalar_select %p291, %s19, 1
      %s293 = smul.addr %s292, 4
      %s294 = smul.addr %s293, 8
      %s295 = scalar_lea.vmem %s8, %s294
      %p296 = scmp.lt.s32.totalorder %s19, 1
      %s297 = scalar_select %p296, %s19, 1
      %s298 = smul.addr %s297, 4
      %s299 = smul.addr %s298, 8
      %s300 = scalar_lea.vmem %s0, %s299
      %p301 = scmp.lt.s32.totalorder %s19, 1
      %s302 = scalar_select %p301, %s19, 1
      %s303 = smul.addr %s302, 4
      %s304 = smul.addr %s303, 8
      %s305 = scalar_lea.vmem %s8, %s304
      %v307 = vld [vmem:[%s1] sm:$0xff]
      %v308 = vld [vmem:[%s1 + $0x8] sm:$0xff]
      %v309 = vld [vmem:[%s300] sm:$0xff]
      %v310 = vld [vmem:[%s300 + $0x8] sm:$0xff]
      %v311 = vld [vmem:[%s300 + $0x10] sm:$0xff]
      %v312 = vld [vmem:[%s300 + $0x18] sm:$0xff]
      %v313 = vpack.c.bf16 %v311, %v309
      %v314 = vpack.c.bf16 %v312, %v310
      %v315 = vld [vmem:[%s2] sm:$0xff]
      %v316 = vld [vmem:[%s2 + $0x8] sm:$0xff]
      %v317 = vld [vmem:[%s2 + $0x10] sm:$0xff]
      %v318 = vld [vmem:[%s2 + $0x18] sm:$0xff]
      %v319 = vld [vmem:[%s2 + $0x20] sm:$0xff]
      %v320 = vld [vmem:[%s2 + $0x28] sm:$0xff]
      %v321 = vld [vmem:[%s2 + $0x30] sm:$0xff]
      %v322 = vld [vmem:[%s2 + $0x38] sm:$0xff]
      %v323 = vld [vmem:[%s2 + $0x40] sm:$0xff]
      %v324 = vld [vmem:[%s2 + $0x48] sm:$0xff]
      %v325 = vld [vmem:[%s2 + $0x50] sm:$0xff]
      %v326 = vld [vmem:[%s2 + $0x58] sm:$0xff]
      %v327 = vld [vmem:[%s2 + $0x60] sm:$0xff]
      %v328 = vld [vmem:[%s2 + $0x68] sm:$0xff]
      %v329 = vld [vmem:[%s2 + $0x70] sm:$0xff]
      %v330 = vld [vmem:[%s2 + $0x78] sm:$0xff]
      %v331 = vld [vmem:[%s2 + $0x80] sm:$0xff]
      %v332 = vld [vmem:[%s2 + $0x88] sm:$0xff]
      %v333 = vld [vmem:[%s2 + $0x90] sm:$0xff]
      %v334 = vld [vmem:[%s2 + $0x98] sm:$0xff]
      %v335 = vld [vmem:[%s2 + $0xa0] sm:$0xff]
      %v336 = vld [vmem:[%s2 + $0xa8] sm:$0xff]
      %v337 = vld [vmem:[%s2 + $0xb0] sm:$0xff]
      %v338 = vld [vmem:[%s2 + $0xb8] sm:$0xff]
      %v339 = vld [vmem:[%s2 + $0xc0] sm:$0xff]
      %v340 = vld [vmem:[%s2 + $0xc8] sm:$0xff]
      %v341 = vld [vmem:[%s2 + $0xd0] sm:$0xff]
      %v342 = vld [vmem:[%s2 + $0xd8] sm:$0xff]
      %v343 = vld [vmem:[%s2 + $0xe0] sm:$0xff]
      %v344 = vld [vmem:[%s2 + $0xe8] sm:$0xff]
      %v345 = vld [vmem:[%s2 + $0xf0] sm:$0xff]
      %v346 = vld [vmem:[%s2 + $0xf8] sm:$0xff]
      %v347 = vld [vmem:[%s2 + $0x100] sm:$0xff]
      %v348 = vld [vmem:[%s2 + $0x108] sm:$0xff]
      %v349 = vld [vmem:[%s2 + $0x110] sm:$0xff]
      %v350 = vld [vmem:[%s2 + $0x118] sm:$0xff]
      %v351 = vld [vmem:[%s2 + $0x120] sm:$0xff]
      %v352 = vld [vmem:[%s2 + $0x128] sm:$0xff]
      %v353 = vld [vmem:[%s2 + $0x130] sm:$0xff]
      %v354 = vld [vmem:[%s2 + $0x138] sm:$0xff]
      %v355 = vld [vmem:[%s2 + $0x140] sm:$0xff]
      %v356 = vld [vmem:[%s2 + $0x148] sm:$0xff]
      %v357 = vld [vmem:[%s2 + $0x150] sm:$0xff]
      %v358 = vld [vmem:[%s2 + $0x158] sm:$0xff]
      %v359 = vld [vmem:[%s2 + $0x160] sm:$0xff]
      %v360 = vld [vmem:[%s2 + $0x168] sm:$0xff]
      %v361 = vld [vmem:[%s2 + $0x170] sm:$0xff]
      %v362 = vld [vmem:[%s2 + $0x178] sm:$0xff]
      %v363 = vld [vmem:[%s2 + $0x180] sm:$0xff]
      %v364 = vld [vmem:[%s2 + $0x188] sm:$0xff]
      %v365 = vld [vmem:[%s2 + $0x190] sm:$0xff]
      %v366 = vld [vmem:[%s2 + $0x198] sm:$0xff]
      %v367 = vld [vmem:[%s2 + $0x1a0] sm:$0xff]
      %v368 = vld [vmem:[%s2 + $0x1a8] sm:$0xff]
      %v369 = vld [vmem:[%s2 + $0x1b0] sm:$0xff]
      %v370 = vld [vmem:[%s2 + $0x1b8] sm:$0xff]
      %v371 = vld [vmem:[%s2 + $0x1c0] sm:$0xff]
      %v372 = vld [vmem:[%s2 + $0x1c8] sm:$0xff]
      %v373 = vld [vmem:[%s2 + $0x1d0] sm:$0xff]
      %v374 = vld [vmem:[%s2 + $0x1d8] sm:$0xff]
      %v375 = vld [vmem:[%s2 + $0x1e0] sm:$0xff]
      %v376 = vld [vmem:[%s2 + $0x1e8] sm:$0xff]
      %v377 = vld [vmem:[%s2 + $0x1f0] sm:$0xff]
      %v378 = vld [vmem:[%s2 + $0x1f8] sm:$0xff]
      %v379 = vld [vmem:[%s2 + $0x200] sm:$0xff]
      %v380 = vld [vmem:[%s2 + $0x208] sm:$0xff]
      %v381 = vld [vmem:[%s2 + $0x210] sm:$0xff]
      %v382 = vld [vmem:[%s2 + $0x218] sm:$0xff]
      %v383 = vld [vmem:[%s2 + $0x220] sm:$0xff]
      %v384 = vld [vmem:[%s2 + $0x228] sm:$0xff]
      %v385 = vld [vmem:[%s2 + $0x230] sm:$0xff]
      %v386 = vld [vmem:[%s2 + $0x238] sm:$0xff]
      %v387 = vld [vmem:[%s2 + $0x240] sm:$0xff]
      %v388 = vld [vmem:[%s2 + $0x248] sm:$0xff]
      %v389 = vld [vmem:[%s2 + $0x250] sm:$0xff]
      %v390 = vld [vmem:[%s2 + $0x258] sm:$0xff]
      %v391 = vld [vmem:[%s2 + $0x260] sm:$0xff]
      %v392 = vld [vmem:[%s2 + $0x268] sm:$0xff]
      %v393 = vld [vmem:[%s2 + $0x270] sm:$0xff]
      %v394 = vld [vmem:[%s2 + $0x278] sm:$0xff]
      %v395 = vld [vmem:[%s2 + $0x280] sm:$0xff]
      %v396 = vld [vmem:[%s2 + $0x288] sm:$0xff]
      %v397 = vld [vmem:[%s2 + $0x290] sm:$0xff]
      %v398 = vld [vmem:[%s2 + $0x298] sm:$0xff]
      %v399 = vld [vmem:[%s2 + $0x2a0] sm:$0xff]
      %v400 = vld [vmem:[%s2 + $0x2a8] sm:$0xff]
      %v401 = vld [vmem:[%s2 + $0x2b0] sm:$0xff]
      %v402 = vld [vmem:[%s2 + $0x2b8] sm:$0xff]
      %v403 = vld [vmem:[%s2 + $0x2c0] sm:$0xff]
      %v404 = vld [vmem:[%s2 + $0x2c8] sm:$0xff]
      %v405 = vld [vmem:[%s2 + $0x2d0] sm:$0xff]
      %v406 = vld [vmem:[%s2 + $0x2d8] sm:$0xff]
      %v407 = vld [vmem:[%s2 + $0x2e0] sm:$0xff]
      %v408 = vld [vmem:[%s2 + $0x2e8] sm:$0xff]
      %v409 = vld [vmem:[%s2 + $0x2f0] sm:$0xff]
      %v410 = vld [vmem:[%s2 + $0x2f8] sm:$0xff]
      %v411 = vld [vmem:[%s3] sm:$0x3f]
      %v413 = vperm.slane %v411, 0
      %v414 = vperm.slane %v411, 1
      %v415 = vperm.slane %v411, 2
      %v416 = vperm.slane %v411, 3
      %v417 = vperm.slane %v411, 4
      %v418 = vperm.slane %v411, 5
      %v521 = vunpack.c.l.b16 %v315
      %v522 = vunpack.c.h.b16 %v315
      %v523 = vunpack.c.l.b16 %v316
      %v524 = vunpack.c.h.b16 %v316
      %v525 = vunpack.c.l.b16 %v317
      %v526 = vunpack.c.h.b16 %v317
      %v527 = vunpack.c.l.b16 %v318
      %v528 = vunpack.c.h.b16 %v318
      %v529 = vunpack.c.l.b16 %v319
      %v530 = vunpack.c.h.b16 %v319
      %v531 = vunpack.c.l.b16 %v320
      %v532 = vunpack.c.h.b16 %v320
      %v533 = vunpack.c.l.b16 %v321
      %v534 = vunpack.c.h.b16 %v321
      %v535 = vunpack.c.l.b16 %v322
      %v536 = vunpack.c.h.b16 %v322
      %v537 = vunpack.c.l.b16 %v323
      %v538 = vunpack.c.h.b16 %v323
      %v539 = vunpack.c.l.b16 %v324
      %v540 = vunpack.c.h.b16 %v324
      %v541 = vunpack.c.l.b16 %v325
      %v542 = vunpack.c.h.b16 %v325
      %v543 = vunpack.c.l.b16 %v326
      %v544 = vunpack.c.h.b16 %v326
      %v545 = vunpack.c.l.b16 %v327
      %v546 = vunpack.c.h.b16 %v327
      %v547 = vunpack.c.l.b16 %v328
      %v548 = vunpack.c.h.b16 %v328
      %v549 = vunpack.c.l.b16 %v329
      %v550 = vunpack.c.h.b16 %v329
      %v551 = vunpack.c.l.b16 %v330
      %v552 = vunpack.c.h.b16 %v330
      %v553 = vunpack.c.l.b16 %v331
      %v554 = vunpack.c.h.b16 %v331
      %v555 = vunpack.c.l.b16 %v332
      %v556 = vunpack.c.h.b16 %v332
      %v557 = vunpack.c.l.b16 %v333
      %v558 = vunpack.c.h.b16 %v333
      %v559 = vunpack.c.l.b16 %v334
      %v560 = vunpack.c.h.b16 %v334
      %v561 = vunpack.c.l.b16 %v335
      %v562 = vunpack.c.h.b16 %v335
      %v563 = vunpack.c.l.b16 %v336
      %v564 = vunpack.c.h.b16 %v336
      %v565 = vunpack.c.l.b16 %v337
      %v566 = vunpack.c.h.b16 %v337
      %v567 = vunpack.c.l.b16 %v338
      %v568 = vunpack.c.h.b16 %v338
      %v569 = vunpack.c.l.b16 %v339
      %v570 = vunpack.c.h.b16 %v339
      %v571 = vunpack.c.l.b16 %v340
      %v572 = vunpack.c.h.b16 %v340
      %v573 = vunpack.c.l.b16 %v341
      %v574 = vunpack.c.h.b16 %v341
      %v575 = vunpack.c.l.b16 %v342
      %v576 = vunpack.c.h.b16 %v342
      %v577 = vunpack.c.l.b16 %v343
      %v578 = vunpack.c.h.b16 %v343
      %v579 = vunpack.c.l.b16 %v344
      %v580 = vunpack.c.h.b16 %v344
      %v581 = vunpack.c.l.b16 %v345
      %v582 = vunpack.c.h.b16 %v345
      %v583 = vunpack.c.l.b16 %v346
      %v584 = vunpack.c.h.b16 %v346
      %v585 = vunpack.c.l.b16 %v347
      %v586 = vunpack.c.h.b16 %v347
      %v587 = vunpack.c.l.b16 %v348
      %v588 = vunpack.c.h.b16 %v348
      %v589 = vunpack.c.l.b16 %v349
      %v590 = vunpack.c.h.b16 %v349
      %v591 = vunpack.c.l.b16 %v350
      %v592 = vunpack.c.h.b16 %v350
      %v593 = vunpack.c.l.b16 %v351
      %v594 = vunpack.c.h.b16 %v351
      %v595 = vunpack.c.l.b16 %v352
      %v596 = vunpack.c.h.b16 %v352
      %v597 = vunpack.c.l.b16 %v353
      %v598 = vunpack.c.h.b16 %v353
      %v599 = vunpack.c.l.b16 %v354
      %v600 = vunpack.c.h.b16 %v354
      %v601 = vunpack.c.l.b16 %v355
      %v602 = vunpack.c.h.b16 %v355
      %v603 = vunpack.c.l.b16 %v356
      %v604 = vunpack.c.h.b16 %v356
      %v605 = vunpack.c.l.b16 %v357
      %v606 = vunpack.c.h.b16 %v357
      %v607 = vunpack.c.l.b16 %v358
      %v608 = vunpack.c.h.b16 %v358
      %v609 = vunpack.c.l.b16 %v359
      %v610 = vunpack.c.h.b16 %v359
      %v611 = vunpack.c.l.b16 %v360
      %v612 = vunpack.c.h.b16 %v360
      %v613 = vunpack.c.l.b16 %v361
      %v614 = vunpack.c.h.b16 %v361
      %v615 = vunpack.c.l.b16 %v362
      %v616 = vunpack.c.h.b16 %v362
      %v617 = vunpack.c.l.b16 %v363
      %v618 = vunpack.c.h.b16 %v363
      %v619 = vunpack.c.l.b16 %v364
      %v620 = vunpack.c.h.b16 %v364
      %v621 = vunpack.c.l.b16 %v365
      %v622 = vunpack.c.h.b16 %v365
      %v623 = vunpack.c.l.b16 %v366
      %v624 = vunpack.c.h.b16 %v366
      %v625 = vunpack.c.l.b16 %v367
      %v626 = vunpack.c.h.b16 %v367
      %v627 = vunpack.c.l.b16 %v368
      %v628 = vunpack.c.h.b16 %v368
      %v629 = vunpack.c.l.b16 %v369
      %v630 = vunpack.c.h.b16 %v369
      %v631 = vunpack.c.l.b16 %v370
      %v632 = vunpack.c.h.b16 %v370
      %v633 = vunpack.c.l.b16 %v371
      %v634 = vunpack.c.h.b16 %v371
      %v635 = vunpack.c.l.b16 %v372
      %v636 = vunpack.c.h.b16 %v372
      %v637 = vunpack.c.l.b16 %v373
      %v638 = vunpack.c.h.b16 %v373
      %v639 = vunpack.c.l.b16 %v374
      %v640 = vunpack.c.h.b16 %v374
      %v641 = vunpack.c.l.b16 %v375
      %v642 = vunpack.c.h.b16 %v375
      %v643 = vunpack.c.l.b16 %v376
      %v644 = vunpack.c.h.b16 %v376
      %v645 = vunpack.c.l.b16 %v377
      %v646 = vunpack.c.h.b16 %v377
      %v647 = vunpack.c.l.b16 %v378
      %v648 = vunpack.c.h.b16 %v378
      %v649 = vunpack.c.l.b16 %v379
      %v650 = vunpack.c.h.b16 %v379
      %v651 = vunpack.c.l.b16 %v380
      %v652 = vunpack.c.h.b16 %v380
      %v653 = vunpack.c.l.b16 %v381
      %v654 = vunpack.c.h.b16 %v381
      %v655 = vunpack.c.l.b16 %v382
      %v656 = vunpack.c.h.b16 %v382
      %v657 = vunpack.c.l.b16 %v383
      %v658 = vunpack.c.h.b16 %v383
      %v659 = vunpack.c.l.b16 %v384
      %v660 = vunpack.c.h.b16 %v384
      %v661 = vunpack.c.l.b16 %v385
      %v662 = vunpack.c.h.b16 %v385
      %v663 = vunpack.c.l.b16 %v386
      %v664 = vunpack.c.h.b16 %v386
      %v665 = vunpack.c.l.b16 %v387
      %v666 = vunpack.c.h.b16 %v387
      %v667 = vunpack.c.l.b16 %v388
      %v668 = vunpack.c.h.b16 %v388
      %v669 = vunpack.c.l.b16 %v389
      %v670 = vunpack.c.h.b16 %v389
      %v671 = vunpack.c.l.b16 %v390
      %v672 = vunpack.c.h.b16 %v390
      %v673 = vunpack.c.l.b16 %v391
      %v674 = vunpack.c.h.b16 %v391
      %v675 = vunpack.c.l.b16 %v392
      %v676 = vunpack.c.h.b16 %v392
      %v677 = vunpack.c.l.b16 %v393
      %v678 = vunpack.c.h.b16 %v393
      %v679 = vunpack.c.l.b16 %v394
      %v680 = vunpack.c.h.b16 %v394
      %v681 = vunpack.c.l.b16 %v395
      %v682 = vunpack.c.h.b16 %v395
      %v683 = vunpack.c.l.b16 %v396
      %v684 = vunpack.c.h.b16 %v396
      %v685 = vunpack.c.l.b16 %v397
      %v686 = vunpack.c.h.b16 %v397
      %v687 = vunpack.c.l.b16 %v398
      %v688 = vunpack.c.h.b16 %v398
      %v689 = vunpack.c.l.b16 %v399
      %v690 = vunpack.c.h.b16 %v399
      %v691 = vunpack.c.l.b16 %v400
      %v692 = vunpack.c.h.b16 %v400
      %v693 = vunpack.c.l.b16 %v401
      %v694 = vunpack.c.h.b16 %v401
      %v695 = vunpack.c.l.b16 %v402
      %v696 = vunpack.c.h.b16 %v402
      %v697 = vunpack.c.l.b16 %v403
      %v698 = vunpack.c.h.b16 %v403
      %v699 = vunpack.c.l.b16 %v404
      %v700 = vunpack.c.h.b16 %v404
      %v701 = vunpack.c.l.b16 %v405
      %v702 = vunpack.c.h.b16 %v405
      %v703 = vunpack.c.l.b16 %v406
      %v704 = vunpack.c.h.b16 %v406
      %v705 = vunpack.c.l.b16 %v407
      %v706 = vunpack.c.h.b16 %v407
      %v707 = vunpack.c.l.b16 %v408
      %v708 = vunpack.c.h.b16 %v408
      %v709 = vunpack.c.l.b16 %v409
      %v710 = vunpack.c.h.b16 %v409
      %v711 = vunpack.c.l.b16 %v410
      %v712 = vunpack.c.h.b16 %v410
      %v713 = vpack.c.b16 %v527, %v521
      %v714 = vpack.c.b16 %v528, %v522
      %v715 = vpack.c.b16 %v529, %v523
      %v716 = vpack.c.b16 %v530, %v524
      %v717 = vpack.c.b16 %v531, %v525
      %v718 = vpack.c.b16 %v532, %v526
      %v719 = vpack.c.b16 %v539, %v533
      %v720 = vpack.c.b16 %v540, %v534
      %v721 = vpack.c.b16 %v541, %v535
      %v722 = vpack.c.b16 %v542, %v536
      %v723 = vpack.c.b16 %v543, %v537
      %v724 = vpack.c.b16 %v544, %v538
      %v725 = vpack.c.b16 %v551, %v545
      %v726 = vpack.c.b16 %v552, %v546
      %v727 = vpack.c.b16 %v553, %v547
      %v728 = vpack.c.b16 %v554, %v548
      %v729 = vpack.c.b16 %v555, %v549
      %v730 = vpack.c.b16 %v556, %v550
      %v731 = vpack.c.b16 %v563, %v557
      %v732 = vpack.c.b16 %v564, %v558
      %v733 = vpack.c.b16 %v565, %v559
      %v734 = vpack.c.b16 %v566, %v560
      %v735 = vpack.c.b16 %v567, %v561
      %v736 = vpack.c.b16 %v568, %v562
      %v737 = vpack.c.b16 %v575, %v569
      %v738 = vpack.c.b16 %v576, %v570
      %v739 = vpack.c.b16 %v577, %v571
      %v740 = vpack.c.b16 %v578, %v572
      %v741 = vpack.c.b16 %v579, %v573
      %v742 = vpack.c.b16 %v580, %v574
      %v743 = vpack.c.b16 %v587, %v581
      %v744 = vpack.c.b16 %v588, %v582
      %v745 = vpack.c.b16 %v589, %v583
      %v746 = vpack.c.b16 %v590, %v584
      %v747 = vpack.c.b16 %v591, %v585
      %v748 = vpack.c.b16 %v592, %v586
      %v749 = vpack.c.b16 %v599, %v593
      %v750 = vpack.c.b16 %v600, %v594
      %v751 = vpack.c.b16 %v601, %v595
      %v752 = vpack.c.b16 %v602, %v596
      %v753 = vpack.c.b16 %v603, %v597
      %v754 = vpack.c.b16 %v604, %v598
      %v755 = vpack.c.b16 %v611, %v605
      %v756 = vpack.c.b16 %v612, %v606
      %v757 = vpack.c.b16 %v613, %v607
      %v758 = vpack.c.b16 %v614, %v608
      %v759 = vpack.c.b16 %v615, %v609
      %v760 = vpack.c.b16 %v616, %v610
      %v761 = vpack.c.b16 %v623, %v617
      %v762 = vpack.c.b16 %v624, %v618
      %v763 = vpack.c.b16 %v625, %v619
      %v764 = vpack.c.b16 %v626, %v620
      %v765 = vpack.c.b16 %v627, %v621
      %v766 = vpack.c.b16 %v628, %v622
      %v767 = vpack.c.b16 %v635, %v629
      %v768 = vpack.c.b16 %v636, %v630
      %v769 = vpack.c.b16 %v637, %v631
      %v770 = vpack.c.b16 %v638, %v632
      %v771 = vpack.c.b16 %v639, %v633
      %v772 = vpack.c.b16 %v640, %v634
      %v773 = vpack.c.b16 %v647, %v641
      %v774 = vpack.c.b16 %v648, %v642
      %v775 = vpack.c.b16 %v649, %v643
      %v776 = vpack.c.b16 %v650, %v644
      %v777 = vpack.c.b16 %v651, %v645
      %v778 = vpack.c.b16 %v652, %v646
      %v779 = vpack.c.b16 %v659, %v653
      %v780 = vpack.c.b16 %v660, %v654
      %v781 = vpack.c.b16 %v661, %v655
      %v782 = vpack.c.b16 %v662, %v656
      %v783 = vpack.c.b16 %v663, %v657
      %v784 = vpack.c.b16 %v664, %v658
      %v785 = vpack.c.b16 %v671, %v665
      %v786 = vpack.c.b16 %v672, %v666
      %v787 = vpack.c.b16 %v673, %v667
      %v788 = vpack.c.b16 %v674, %v668
      %v789 = vpack.c.b16 %v675, %v669
      %v790 = vpack.c.b16 %v676, %v670
      %v791 = vpack.c.b16 %v683, %v677
      %v792 = vpack.c.b16 %v684, %v678
      %v793 = vpack.c.b16 %v685, %v679
      %v794 = vpack.c.b16 %v686, %v680
      %v795 = vpack.c.b16 %v687, %v681
      %v796 = vpack.c.b16 %v688, %v682
      %v797 = vpack.c.b16 %v695, %v689
      %v798 = vpack.c.b16 %v696, %v690
      %v799 = vpack.c.b16 %v697, %v691
      %v800 = vpack.c.b16 %v698, %v692
      %v801 = vpack.c.b16 %v699, %v693
      %v802 = vpack.c.b16 %v700, %v694
      %v803 = vpack.c.b16 %v707, %v701
      %v804 = vpack.c.b16 %v708, %v702
      %v805 = vpack.c.b16 %v709, %v703
      %v806 = vpack.c.b16 %v710, %v704
      %v807 = vpack.c.b16 %v711, %v705
      %v808 = vpack.c.b16 %v712, %v706
      %905 = vmatpush.bf16.msra.mxu0 %v755
      %906 = vmatpush.bf16.msra.mxu0 %v749
      %907 = vmatpush.bf16.msra.mxu0 %v743
      %908 = vmatpush.bf16.msra.mxu0 %v737
      %909 = vmatpush.bf16.msra.mxu0 %v731
      %910 = vmatpush.bf16.msra.mxu0 %v725
      %911 = vmatpush.bf16.msra.mxu0 %v719
      %912 = vmatpush.bf16.msra.mxu0 %v713
      %913 = vmatmul.bf16.gmra.mxu0 %v313
      %v914 = vpop.f32.mrf.mxu0
      %v915 = vadd.f32 %v413, %v914
      %v916 = vpop.f32.mrf.mxu0
      %v917 = vadd.f32 %v413, %v916
      %918 = vdwg.mxu0
      %919 = vmatpush.bf16.msra.mxu0 %v803
      %920 = vmatpush.bf16.msra.mxu0 %v797
      %921 = vmatpush.bf16.msra.mxu0 %v791
      %922 = vmatpush.bf16.msra.mxu0 %v785
      %923 = vmatpush.bf16.msra.mxu0 %v779
      %924 = vmatpush.bf16.msra.mxu0 %v773
      %925 = vmatpush.bf16.msra.mxu0 %v767
      %926 = vmatpush.bf16.msra.mxu0 %v761
      %927 = vmatmul.bf16.gmra.mxu0 %v314
      %v928 = vpop.f32.mrf.mxu0
      %v929 = vadd.f32 %v915, %v928
      %v930 = vpop.f32.mrf.mxu0
      %v931 = vadd.f32 %v917, %v930
      %932 = vdwg.mxu0
      %933 = vmatpush.bf16.msra.mxu0 %v756
      %934 = vmatpush.bf16.msra.mxu0 %v750
      %935 = vmatpush.bf16.msra.mxu0 %v744
      %936 = vmatpush.bf16.msra.mxu0 %v738
      %937 = vmatpush.bf16.msra.mxu0 %v732
      %938 = vmatpush.bf16.msra.mxu0 %v726
      %939 = vmatpush.bf16.msra.mxu0 %v720
      %940 = vmatpush.bf16.msra.mxu0 %v714
      %941 = vmatmul.bf16.gmra.mxu0 %v313
      %v942 = vpop.f32.mrf.mxu0
      %v943 = vadd.f32 %v414, %v942
      %v944 = vpop.f32.mrf.mxu0
      %v945 = vadd.f32 %v414, %v944
      %946 = vdwg.mxu0
      %947 = vmatpush.bf16.msra.mxu0 %v804
      %948 = vmatpush.bf16.msra.mxu0 %v798
      %949 = vmatpush.bf16.msra.mxu0 %v792
      %950 = vmatpush.bf16.msra.mxu0 %v786
      %951 = vmatpush.bf16.msra.mxu0 %v780
      %952 = vmatpush.bf16.msra.mxu0 %v774
      %953 = vmatpush.bf16.msra.mxu0 %v768
      %954 = vmatpush.bf16.msra.mxu0 %v762
      %955 = vmatmul.bf16.gmra.mxu0 %v314
      %v956 = vpop.f32.mrf.mxu0
      %v957 = vadd.f32 %v943, %v956
      %v958 = vpop.f32.mrf.mxu0
      %v959 = vadd.f32 %v945, %v958
      %960 = vdwg.mxu0
      %961 = vmatpush.bf16.msra.mxu0 %v757
      %962 = vmatpush.bf16.msra.mxu0 %v751
      %963 = vmatpush.bf16.msra.mxu0 %v745
      %964 = vmatpush.bf16.msra.mxu0 %v739
      %965 = vmatpush.bf16.msra.mxu0 %v733
      %966 = vmatpush.bf16.msra.mxu0 %v727
      %967 = vmatpush.bf16.msra.mxu0 %v721
      %968 = vmatpush.bf16.msra.mxu0 %v715
      %969 = vmatmul.bf16.gmra.mxu0 %v313
      %v970 = vpop.f32.mrf.mxu0
      %v971 = vadd.f32 %v415, %v970
      %v972 = vpop.f32.mrf.mxu0
      %v973 = vadd.f32 %v415, %v972
      %974 = vdwg.mxu0
      %975 = vmatpush.bf16.msra.mxu0 %v805
      %976 = vmatpush.bf16.msra.mxu0 %v799
      %977 = vmatpush.bf16.msra.mxu0 %v793
      %978 = vmatpush.bf16.msra.mxu0 %v787
      %979 = vmatpush.bf16.msra.mxu0 %v781
      %980 = vmatpush.bf16.msra.mxu0 %v775
      %981 = vmatpush.bf16.msra.mxu0 %v769
      %982 = vmatpush.bf16.msra.mxu0 %v763
      %983 = vmatmul.bf16.gmra.mxu0 %v314
      %v984 = vpop.f32.mrf.mxu0
      %v985 = vadd.f32 %v971, %v984
      %v986 = vpop.f32.mrf.mxu0
      %v987 = vadd.f32 %v973, %v986
      %988 = vdwg.mxu0
      %989 = vmatpush.bf16.msra.mxu0 %v758
      %990 = vmatpush.bf16.msra.mxu0 %v752
      %991 = vmatpush.bf16.msra.mxu0 %v746
      %992 = vmatpush.bf16.msra.mxu0 %v740
      %993 = vmatpush.bf16.msra.mxu0 %v734
      %994 = vmatpush.bf16.msra.mxu0 %v728
      %995 = vmatpush.bf16.msra.mxu0 %v722
      %996 = vmatpush.bf16.msra.mxu0 %v716
      %997 = vmatmul.bf16.gmra.mxu0 %v313
      %v998 = vpop.f32.mrf.mxu0
      %v999 = vadd.f32 %v416, %v998
      %v1000 = vpop.f32.mrf.mxu0
      %v1001 = vadd.f32 %v416, %v1000
      %1002 = vdwg.mxu0
      %1003 = vmatpush.bf16.msra.mxu0 %v806
      %1004 = vmatpush.bf16.msra.mxu0 %v800
      %1005 = vmatpush.bf16.msra.mxu0 %v794
      %1006 = vmatpush.bf16.msra.mxu0 %v788
      %1007 = vmatpush.bf16.msra.mxu0 %v782
      %1008 = vmatpush.bf16.msra.mxu0 %v776
      %1009 = vmatpush.bf16.msra.mxu0 %v770
      %1010 = vmatpush.bf16.msra.mxu0 %v764
      %1011 = vmatmul.bf16.gmra.mxu0 %v314
      %v1012 = vpop.f32.mrf.mxu0
      %v1013 = vadd.f32 %v999, %v1012
      %v1014 = vpop.f32.mrf.mxu0
      %v1015 = vadd.f32 %v1001, %v1014
      %1016 = vdwg.mxu0
      %1017 = vmatpush.bf16.msra.mxu0 %v759
      %1018 = vmatpush.bf16.msra.mxu0 %v753
      %1019 = vmatpush.bf16.msra.mxu0 %v747
      %1020 = vmatpush.bf16.msra.mxu0 %v741
      %1021 = vmatpush.bf16.msra.mxu0 %v735
      %1022 = vmatpush.bf16.msra.mxu0 %v729
      %1023 = vmatpush.bf16.msra.mxu0 %v723
      %1024 = vmatpush.bf16.msra.mxu0 %v717
      %1025 = vmatmul.bf16.gmra.mxu0 %v313
      %v1026 = vpop.f32.mrf.mxu0
      %v1027 = vadd.f32 %v417, %v1026
      %v1028 = vpop.f32.mrf.mxu0
      %v1029 = vadd.f32 %v417, %v1028
      %1030 = vdwg.mxu0
      %1031 = vmatpush.bf16.msra.mxu0 %v807
      %1032 = vmatpush.bf16.msra.mxu0 %v801
      %1033 = vmatpush.bf16.msra.mxu0 %v795
      %1034 = vmatpush.bf16.msra.mxu0 %v789
      %1035 = vmatpush.bf16.msra.mxu0 %v783
      %1036 = vmatpush.bf16.msra.mxu0 %v777
      %1037 = vmatpush.bf16.msra.mxu0 %v771
      %1038 = vmatpush.bf16.msra.mxu0 %v765
      %1039 = vmatmul.bf16.gmra.mxu0 %v314
      %v1040 = vpop.f32.mrf.mxu0
      %v1041 = vadd.f32 %v1027, %v1040
      %v1042 = vpop.f32.mrf.mxu0
      %v1043 = vadd.f32 %v1029, %v1042
      %1044 = vdwg.mxu0
      %1045 = vmatpush.bf16.msra.mxu0 %v760
      %1046 = vmatpush.bf16.msra.mxu0 %v754
      %1047 = vmatpush.bf16.msra.mxu0 %v748
      %1048 = vmatpush.bf16.msra.mxu0 %v742
      %1049 = vmatpush.bf16.msra.mxu0 %v736
      %1050 = vmatpush.bf16.msra.mxu0 %v730
      %1051 = vmatpush.bf16.msra.mxu0 %v724
      %1052 = vmatpush.bf16.msra.mxu0 %v718
      %1053 = vmatmul.bf16.gmra.mxu0 %v313
      %v1054 = vpop.f32.mrf.mxu0
      %v1055 = vadd.f32 %v418, %v1054
      %v1056 = vpop.f32.mrf.mxu0
      %v1057 = vadd.f32 %v418, %v1056
      %1058 = vdwg.mxu0
      %1059 = vmatpush.bf16.msra.mxu0 %v808
      %1060 = vmatpush.bf16.msra.mxu0 %v802
      %1061 = vmatpush.bf16.msra.mxu0 %v796
      %1062 = vmatpush.bf16.msra.mxu0 %v790
      %1063 = vmatpush.bf16.msra.mxu0 %v784
      %1064 = vmatpush.bf16.msra.mxu0 %v778
      %1065 = vmatpush.bf16.msra.mxu0 %v772
      %1066 = vmatpush.bf16.msra.mxu0 %v766
      %1067 = vmatmul.bf16.gmra.mxu0 %v314
      %v1068 = vpop.f32.mrf.mxu0
      %v1069 = vadd.f32 %v1055, %v1068
      %v1070 = vpop.f32.mrf.mxu0
      %v1071 = vadd.f32 %v1057, %v1070
      %1072 = vdwg.mxu0
      %v1073 = vpack.c.bf16 %v931, %v929
      %v1074 = vpack.c.bf16 %v959, %v957
      %v1075 = vpack.c.bf16 %v987, %v985
      %1076 = vmatpush.bf16.xpose.msra.mxu0 0
      %1077 = vmatpush.bf16.xpose.msra.mxu0 0
      %1078 = vmatpush.bf16.xpose.msra.mxu0 0
      %1079 = vmatpush.bf16.xpose.msra.mxu0 0
      %1080 = vmatpush.bf16.xpose.msra.mxu0 0
      %1081 = vmatpush.bf16.xpose.msra.mxu0 0
      %1082 = vmatpush.bf16.xpose.msra.mxu0 0
      %1083 = vmatpush.bf16.xpose.msra.mxu0 %v1074
      %1084 = vmatmul.bf16.gmra.mxu0 %v1073
      %v1085 = vpop.f32.mrf.mxu0
      %v1086 = vadd.f32 0.0, %v1085
      %v1087 = vpop.f32.mrf.mxu0
      %v1088 = vadd.f32 0.0, %v1087
      %1089 = vdwg.mxu0
      %v1090 = vmul.f32 %v1086, 0.088388346
      %v1091 = vmul.f32 %v1088, 0.088388346
      %v1092 = vadd.f32 %v1090, %v307
      %v1093 = vadd.f32 %v1091, %v308
      %vm1094 = vcmask 130048
      %v1095 = vsel %vm1094, %v1092, -inf
      %1096 = vmax.xlane.f32.xlu0 %v1095
      %v1097 = vpop.xlane.xlu0 %1096
      %v1098 = vsel %vm1094, %v1093, -inf
      %1099 = vmax.xlane.f32.xlu0 %v1098
      %v1100 = vpop.xlane.xlu0 %1099
      %v1101 = vsub.f32 %v1092, %v1097
      %v1102 = vsub.f32 %v1093, %v1100
      %v1103 = vmul.f32 %v1101, 1.442695
      %v1104 = vpow.pop %v1103
      %v1105 = vmul.f32 %v1102, 1.442695
      %v1106 = vpow.pop %v1105
      %v1107 = vsel %vm1094, %v1104, 0.0
      %1108 = vadd.xlane.f32.xlu0 %v1107
      %v1109 = vpop.xlane.xlu0 %1108
      %v1110 = vsel %vm1094, %v1106, 0.0
      %1111 = vadd.xlane.f32.xlu0 %v1110
      %v1112 = vpop.xlane.xlu0 %1111
      %v1113 = vrcp.pop %v1109
      %v1114 = vmul.f32 %v1109, %v1113
      %v1115 = vsub.f32 1.0, %v1114
      %v1116 = vmul.f32 %v1113, %v1115
      %v1117 = vadd.f32 %v1113, %v1116
      %vm1118 = vweird.f32 %v1109
      %vm1119 = vweird.f32 %v1113
      %vm1120 = vmor %vm1118, %vm1119
      %v1121 = vsel %vm1120, %v1113, %v1117
      %v1122 = vand.u32 2147483647, %v1109
      %vm1123 = vcmp.eq.f32.partialorder %v1122, 8.507059e+37
      %v1124 = vand.u32 %v1109, 2147483648
      %v1125 = vor.u32 1.1754944e-38, %v1124
      %v1126 = vsel %vm1123, %v1125, %v1121
      %v1127 = vmul.f32 %v1104, %v1126
      %v1128 = vrcp.pop %v1112
      %v1129 = vmul.f32 %v1112, %v1128
      %v1130 = vsub.f32 1.0, %v1129
      %v1131 = vmul.f32 %v1128, %v1130
      %v1132 = vadd.f32 %v1128, %v1131
      %vm1133 = vweird.f32 %v1112
      %vm1134 = vweird.f32 %v1128
      %vm1135 = vmor %vm1133, %vm1134
      %v1136 = vsel %vm1135, %v1128, %v1132
      %v1137 = vand.u32 2147483647, %v1112
      %vm1138 = vcmp.eq.f32.partialorder %v1137, 8.507059e+37
      %v1139 = vand.u32 %v1112, 2147483648
      %v1140 = vor.u32 1.1754944e-38, %v1139
      %v1141 = vsel %vm1138, %v1140, %v1136
      %v1142 = vmul.f32 %v1106, %v1141
      %v1143 = vpack.c.bf16 %v1142, %v1127
      %v1145 = vsel %vm1094, %v1143, 0
      %1147 = vmatpush.bf16.msra.mxu0 0
      %1148 = vmatpush.bf16.msra.mxu0 0
      %1149 = vmatpush.bf16.msra.mxu0 0
      %1150 = vmatpush.bf16.msra.mxu0 0
      %1151 = vmatpush.bf16.msra.mxu0 0
      %1152 = vmatpush.bf16.msra.mxu0 0
      %1153 = vmatpush.bf16.msra.mxu0 0
      %1154 = vmatpush.bf16.msra.mxu0 %v1075
      %1155 = vmatmul.bf16.gmra.mxu0 %v1145
      %v1156 = vpop.f32.mrf.mxu0
      %v1157 = vadd.f32 0.0, %v1156
      %v1158 = vpop.f32.mrf.mxu0
      %v1159 = vadd.f32 0.0, %v1158
      %1160 = vdwg.mxu0
      %v1161 = vld [vmem:[%s4] sm:$0xff]
      %v1162 = vld [vmem:[%s4 + $0x8] sm:$0xff]
      %v1163 = vld [vmem:[%s4 + $0x10] sm:$0xff]
      %v1164 = vld [vmem:[%s4 + $0x18] sm:$0xff]
      %v1165 = vld [vmem:[%s4 + $0x20] sm:$0xff]
      %v1166 = vld [vmem:[%s4 + $0x28] sm:$0xff]
      %v1167 = vld [vmem:[%s4 + $0x30] sm:$0xff]
      %v1168 = vld [vmem:[%s4 + $0x38] sm:$0xff]
      %v1169 = vld [vmem:[%s4 + $0x40] sm:$0xff]
      %v1170 = vld [vmem:[%s4 + $0x48] sm:$0xff]
      %v1171 = vld [vmem:[%s4 + $0x50] sm:$0xff]
      %v1172 = vld [vmem:[%s4 + $0x58] sm:$0xff]
      %v1173 = vld [vmem:[%s4 + $0x60] sm:$0xff]
      %v1174 = vld [vmem:[%s4 + $0x68] sm:$0xff]
      %v1175 = vld [vmem:[%s4 + $0x70] sm:$0xff]
      %v1176 = vld [vmem:[%s4 + $0x78] sm:$0xff]
      %v1177 = vpack.c.bf16 %v1159, %v1157
      %v1178 = vpack.c.bf16 %v1015, %v1013
      %v1179 = vpack.c.bf16 %v1043, %v1041
      %v1180 = vpack.c.bf16 %v1071, %v1069
      %1181 = vmatpush.bf16.xpose.msra.mxu0 0
      %1182 = vmatpush.bf16.xpose.msra.mxu0 0
      %1183 = vmatpush.bf16.xpose.msra.mxu0 0
      %1184 = vmatpush.bf16.xpose.msra.mxu0 0
      %1185 = vmatpush.bf16.xpose.msra.mxu0 0
      %1186 = vmatpush.bf16.xpose.msra.mxu0 0
      %1187 = vmatpush.bf16.xpose.msra.mxu0 0
      %1188 = vmatpush.bf16.xpose.msra.mxu0 %v1179
      %1189 = vmatmul.bf16.gmra.mxu0 %v1178
      %v1190 = vpop.f32.mrf.mxu0
      %v1191 = vadd.f32 0.0, %v1190
      %v1192 = vpop.f32.mrf.mxu0
      %v1193 = vadd.f32 0.0, %v1192
      %1194 = vdwg.mxu0
      %v1195 = vmul.f32 %v1191, 0.088388346
      %v1196 = vmul.f32 %v1193, 0.088388346
      %v1197 = vadd.f32 %v1195, %v307
      %v1198 = vadd.f32 %v1196, %v308
      %v1199 = vsel %vm1094, %v1197, -inf
      %1200 = vmax.xlane.f32.xlu0 %v1199
      %v1201 = vpop.xlane.xlu0 %1200
      %v1202 = vsel %vm1094, %v1198, -inf
      %1203 = vmax.xlane.f32.xlu0 %v1202
      %v1204 = vpop.xlane.xlu0 %1203
      %v1205 = vsub.f32 %v1197, %v1201
      %v1206 = vsub.f32 %v1198, %v1204
      %v1207 = vmul.f32 %v1205, 1.442695
      %v1208 = vpow.pop %v1207
      %v1209 = vmul.f32 %v1206, 1.442695
      %v1210 = vpow.pop %v1209
      %v1211 = vsel %vm1094, %v1208, 0.0
      %1212 = vadd.xlane.f32.xlu0 %v1211
      %v1213 = vpop.xlane.xlu0 %1212
      %v1214 = vsel %vm1094, %v1210, 0.0
      %1215 = vadd.xlane.f32.xlu0 %v1214
      %v1216 = vpop.xlane.xlu0 %1215
      %v1217 = vrcp.pop %v1213
      %v1218 = vmul.f32 %v1213, %v1217
      %v1219 = vsub.f32 1.0, %v1218
      %v1220 = vmul.f32 %v1217, %v1219
      %v1221 = vadd.f32 %v1217, %v1220
      %vm1222 = vweird.f32 %v1213
      %vm1223 = vweird.f32 %v1217
      %vm1224 = vmor %vm1222, %vm1223
      %v1225 = vsel %vm1224, %v1217, %v1221
      %v1226 = vand.u32 2147483647, %v1213
      %vm1227 = vcmp.eq.f32.partialorder %v1226, 8.507059e+37
      %v1228 = vand.u32 %v1213, 2147483648
      %v1229 = vor.u32 1.1754944e-38, %v1228
      %v1230 = vsel %vm1227, %v1229, %v1225
      %v1231 = vmul.f32 %v1208, %v1230
      %v1232 = vrcp.pop %v1216
      %v1233 = vmul.f32 %v1216, %v1232
      %v1234 = vsub.f32 1.0, %v1233
      %v1235 = vmul.f32 %v1232, %v1234
      %v1236 = vadd.f32 %v1232, %v1235
      %vm1237 = vweird.f32 %v1216
      %vm1238 = vweird.f32 %v1232
      %vm1239 = vmor %vm1237, %vm1238
      %v1240 = vsel %vm1239, %v1232, %v1236
      %v1241 = vand.u32 2147483647, %v1216
      %vm1242 = vcmp.eq.f32.partialorder %v1241, 8.507059e+37
      %v1243 = vand.u32 %v1216, 2147483648
      %v1244 = vor.u32 1.1754944e-38, %v1243
      %v1245 = vsel %vm1242, %v1244, %v1240
      %v1246 = vmul.f32 %v1210, %v1245
      %v1247 = vpack.c.bf16 %v1246, %v1231
      %v1249 = vsel %vm1094, %v1247, 0
      %1251 = vmatpush.bf16.msra.mxu0 0
      %1252 = vmatpush.bf16.msra.mxu0 0
      %1253 = vmatpush.bf16.msra.mxu0 0
      %1254 = vmatpush.bf16.msra.mxu0 0
      %1255 = vmatpush.bf16.msra.mxu0 0
      %1256 = vmatpush.bf16.msra.mxu0 0
      %1257 = vmatpush.bf16.msra.mxu0 0
      %1258 = vmatpush.bf16.msra.mxu0 %v1180
      %1259 = vmatmul.bf16.gmra.mxu0 %v1249
      %v1260 = vpop.f32.mrf.mxu0
      %v1261 = vadd.f32 0.0, %v1260
      %v1262 = vpop.f32.mrf.mxu0
      %v1263 = vadd.f32 0.0, %v1262
      %1264 = vdwg.mxu0
      %v1265 = vld [vmem:[%s4 + $0x80] sm:$0xff]
      %v1266 = vld [vmem:[%s4 + $0x88] sm:$0xff]
      %v1267 = vld [vmem:[%s4 + $0x90] sm:$0xff]
      %v1268 = vld [vmem:[%s4 + $0x98] sm:$0xff]
      %v1269 = vld [vmem:[%s4 + $0xa0] sm:$0xff]
      %v1270 = vld [vmem:[%s4 + $0xa8] sm:$0xff]
      %v1271 = vld [vmem:[%s4 + $0xb0] sm:$0xff]
      %v1272 = vld [vmem:[%s4 + $0xb8] sm:$0xff]
      %v1273 = vld [vmem:[%s4 + $0xc0] sm:$0xff]
      %v1274 = vld [vmem:[%s4 + $0xc8] sm:$0xff]
      %v1275 = vld [vmem:[%s4 + $0xd0] sm:$0xff]
      %v1276 = vld [vmem:[%s4 + $0xd8] sm:$0xff]
      %v1277 = vld [vmem:[%s4 + $0xe0] sm:$0xff]
      %v1278 = vld [vmem:[%s4 + $0xe8] sm:$0xff]
      %v1279 = vld [vmem:[%s4 + $0xf0] sm:$0xff]
      %v1280 = vld [vmem:[%s4 + $0xf8] sm:$0xff]
      %v1281 = vpack.c.bf16 %v1263, %v1261
      %v1298 = vunpack.c.l.b16 %v1265
      %v1299 = vunpack.c.h.b16 %v1265
      %v1300 = vunpack.c.l.b16 %v1266
      %v1301 = vunpack.c.h.b16 %v1266
      %v1302 = vunpack.c.l.b16 %v1267
      %v1303 = vunpack.c.h.b16 %v1267
      %v1304 = vunpack.c.l.b16 %v1268
      %v1305 = vunpack.c.h.b16 %v1268
      %v1306 = vunpack.c.l.b16 %v1269
      %v1307 = vunpack.c.h.b16 %v1269
      %v1308 = vunpack.c.l.b16 %v1270
      %v1309 = vunpack.c.h.b16 %v1270
      %v1310 = vunpack.c.l.b16 %v1271
      %v1311 = vunpack.c.h.b16 %v1271
      %v1312 = vunpack.c.l.b16 %v1272
      %v1313 = vunpack.c.h.b16 %v1272
      %v1314 = vunpack.c.l.b16 %v1273
      %v1315 = vunpack.c.h.b16 %v1273
      %v1316 = vunpack.c.l.b16 %v1274
      %v1317 = vunpack.c.h.b16 %v1274
      %v1318 = vunpack.c.l.b16 %v1275
      %v1319 = vunpack.c.h.b16 %v1275
      %v1320 = vunpack.c.l.b16 %v1276
      %v1321 = vunpack.c.h.b16 %v1276
      %v1322 = vunpack.c.l.b16 %v1277
      %v1323 = vunpack.c.h.b16 %v1277
      %v1324 = vunpack.c.l.b16 %v1278
      %v1325 = vunpack.c.h.b16 %v1278
      %v1326 = vunpack.c.l.b16 %v1279
      %v1327 = vunpack.c.h.b16 %v1279
      %v1328 = vunpack.c.l.b16 %v1280
      %v1329 = vunpack.c.h.b16 %v1280
      %v1330 = vpack.c.b16 %v1300, %v1298
      %v1331 = vpack.c.b16 %v1301, %v1299
      %v1332 = vpack.c.b16 %v1304, %v1302
      %v1333 = vpack.c.b16 %v1305, %v1303
      %v1334 = vpack.c.b16 %v1308, %v1306
      %v1335 = vpack.c.b16 %v1309, %v1307
      %v1336 = vpack.c.b16 %v1312, %v1310
      %v1337 = vpack.c.b16 %v1313, %v1311
      %v1338 = vpack.c.b16 %v1316, %v1314
      %v1339 = vpack.c.b16 %v1317, %v1315
      %v1340 = vpack.c.b16 %v1320, %v1318
      %v1341 = vpack.c.b16 %v1321, %v1319
      %v1342 = vpack.c.b16 %v1324, %v1322
      %v1343 = vpack.c.b16 %v1325, %v1323
      %v1344 = vpack.c.b16 %v1328, %v1326
      %v1345 = vpack.c.b16 %v1329, %v1327
      %1362 = vmatpush.bf16.msra.mxu0 %v1344
      %1363 = vmatpush.bf16.msra.mxu0 %v1342
      %1364 = vmatpush.bf16.msra.mxu0 %v1340
      %1365 = vmatpush.bf16.msra.mxu0 %v1338
      %1366 = vmatpush.bf16.msra.mxu0 %v1336
      %1367 = vmatpush.bf16.msra.mxu0 %v1334
      %1368 = vmatpush.bf16.msra.mxu0 %v1332
      %1369 = vmatpush.bf16.msra.mxu0 %v1330
      %1370 = vmatmul.bf16.gmra.mxu0 %v1281
      %v1371 = vpop.f32.mrf.mxu0
      %v1372 = vadd.f32 0.0, %v1371
      %v1373 = vpop.f32.mrf.mxu0
      %v1374 = vadd.f32 0.0, %v1373
      %1375 = vdwg.mxu0
      %1376 = vmatpush.bf16.msra.mxu0 %v1345
      %1377 = vmatpush.bf16.msra.mxu0 %v1343
      %1378 = vmatpush.bf16.msra.mxu0 %v1341
      %1379 = vmatpush.bf16.msra.mxu0 %v1339
      %1380 = vmatpush.bf16.msra.mxu0 %v1337
      %1381 = vmatpush.bf16.msra.mxu0 %v1335
      %1382 = vmatpush.bf16.msra.mxu0 %v1333
      %1383 = vmatpush.bf16.msra.mxu0 %v1331
      %1384 = vmatmul.bf16.gmra.mxu0 %v1281
      %v1385 = vpop.f32.mrf.mxu0
      %v1386 = vadd.f32 0.0, %v1385
      %v1387 = vpop.f32.mrf.mxu0
      %v1388 = vadd.f32 0.0, %v1387
      %1389 = vdwg.mxu0
      %v1406 = vunpack.c.l.b16 %v1161
      %v1407 = vunpack.c.h.b16 %v1161
      %v1408 = vunpack.c.l.b16 %v1162
      %v1409 = vunpack.c.h.b16 %v1162
      %v1410 = vunpack.c.l.b16 %v1163
      %v1411 = vunpack.c.h.b16 %v1163
      %v1412 = vunpack.c.l.b16 %v1164
      %v1413 = vunpack.c.h.b16 %v1164
      %v1414 = vunpack.c.l.b16 %v1165
      %v1415 = vunpack.c.h.b16 %v1165
      %v1416 = vunpack.c.l.b16 %v1166
      %v1417 = vunpack.c.h.b16 %v1166
      %v1418 = vunpack.c.l.b16 %v1167
      %v1419 = vunpack.c.h.b16 %v1167
      %v1420 = vunpack.c.l.b16 %v1168
      %v1421 = vunpack.c.h.b16 %v1168
      %v1422 = vunpack.c.l.b16 %v1169
      %v1423 = vunpack.c.h.b16 %v1169
      %v1424 = vunpack.c.l.b16 %v1170
      %v1425 = vunpack.c.h.b16 %v1170
      %v1426 = vunpack.c.l.b16 %v1171
      %v1427 = vunpack.c.h.b16 %v1171
      %v1428 = vunpack.c.l.b16 %v1172
      %v1429 = vunpack.c.h.b16 %v1172
      %v1430 = vunpack.c.l.b16 %v1173
      %v1431 = vunpack.c.h.b16 %v1173
      %v1432 = vunpack.c.l.b16 %v1174
      %v1433 = vunpack.c.h.b16 %v1174
      %v1434 = vunpack.c.l.b16 %v1175
      %v1435 = vunpack.c.h.b16 %v1175
      %v1436 = vunpack.c.l.b16 %v1176
      %v1437 = vunpack.c.h.b16 %v1176
      %v1438 = vpack.c.b16 %v1408, %v1406
      %v1439 = vpack.c.b16 %v1409, %v1407
      %v1440 = vpack.c.b16 %v1412, %v1410
      %v1441 = vpack.c.b16 %v1413, %v1411
      %v1442 = vpack.c.b16 %v1416, %v1414
      %v1443 = vpack.c.b16 %v1417, %v1415
      %v1444 = vpack.c.b16 %v1420, %v1418
      %v1445 = vpack.c.b16 %v1421, %v1419
      %v1446 = vpack.c.b16 %v1424, %v1422
      %v1447 = vpack.c.b16 %v1425, %v1423
      %v1448 = vpack.c.b16 %v1428, %v1426
      %v1449 = vpack.c.b16 %v1429, %v1427
      %v1450 = vpack.c.b16 %v1432, %v1430
      %v1451 = vpack.c.b16 %v1433, %v1431
      %v1452 = vpack.c.b16 %v1436, %v1434
      %v1453 = vpack.c.b16 %v1437, %v1435
      %1470 = vmatpush.bf16.msra.mxu0 %v1452
      %1471 = vmatpush.bf16.msra.mxu0 %v1450
      %1472 = vmatpush.bf16.msra.mxu0 %v1448
      %1473 = vmatpush.bf16.msra.mxu0 %v1446
      %1474 = vmatpush.bf16.msra.mxu0 %v1444
      %1475 = vmatpush.bf16.msra.mxu0 %v1442
      %1476 = vmatpush.bf16.msra.mxu0 %v1440
      %1477 = vmatpush.bf16.msra.mxu0 %v1438
      %1478 = vmatmul.bf16.gmra.mxu0 %v1177
      %v1479 = vpop.f32.mrf.mxu0
      %v1480 = vadd.f32 %v1372, %v1479
      %v1481 = vpop.f32.mrf.mxu0
      %v1482 = vadd.f32 %v1374, %v1481
      %1483 = vdwg.mxu0
      %1484 = vmatpush.bf16.msra.mxu0 %v1453
      %1485 = vmatpush.bf16.msra.mxu0 %v1451
      %1486 = vmatpush.bf16.msra.mxu0 %v1449
      %1487 = vmatpush.bf16.msra.mxu0 %v1447
      %1488 = vmatpush.bf16.msra.mxu0 %v1445
      %1489 = vmatpush.bf16.msra.mxu0 %v1443
      %1490 = vmatpush.bf16.msra.mxu0 %v1441
      %1491 = vmatpush.bf16.msra.mxu0 %v1439
      %1492 = vmatmul.bf16.gmra.mxu0 %v1177
      %v1493 = vpop.f32.mrf.mxu0
      %v1494 = vadd.f32 %v1386, %v1493
      %v1495 = vpop.f32.mrf.mxu0
      %v1496 = vadd.f32 %v1388, %v1495
      %1497 = vdwg.mxu0
      %v1498 = vld [vmem:[%s5] sm:$0x3]
      %v1500 = vperm.slane %v1498, 0
      %v1501 = vperm.slane %v1498, 1
      %v1504 = vadd.f32 %v1480, %v1500
      %v1505 = vadd.f32 %v1494, %v1501
      %v1506 = vadd.f32 %v1482, %v1500
      %v1507 = vadd.f32 %v1496, %v1501
      %v1508 = vadd.f32 %v1504, %v309
      %v1509 = vadd.f32 %v1505, %v310
      %v1510 = vadd.f32 %v1506, %v311
      %v1511 = vadd.f32 %v1507, %v312
      %v1512 = vld [vmem:[%s6] sm:$0x3]
      %v1513 = vld [vmem:[%s7] sm:$0x3]
      %v1514 = vadd.f32 %v1508, %v1509
      %1515 = vadd.xlane.f32.xlu0 %v1514
      %v1516 = vpop.xlane.xlu0 %1515
      %v1517 = vadd.f32 %v1510, %v1511
      %1518 = vadd.xlane.f32.xlu0 %v1517
      %v1519 = vpop.xlane.xlu0 %1518
      %v1520 = vrcp.pop 256.0
      %v1521 = vmul.f32 256.0, %v1520
      %v1522 = vsub.f32 1.0, %v1521
      %v1523 = vmul.f32 %v1520, %v1522
      %v1524 = vadd.f32 %v1520, %v1523
      %vm1525 = vweird.f32 %v1520
      %v1526 = vsel %vm1525, %v1520, %v1524
      %v1527 = vmul.f32 %v1516, %v1526
      %v1528 = vmul.f32 %v1519, %v1526
      %v1529 = vsub.f32 %v1508, %v1527
      %v1530 = vsub.f32 %v1509, %v1527
      %v1531 = vsub.f32 %v1510, %v1528
      %v1532 = vsub.f32 %v1511, %v1528
      %v1533 = vmul.f32 %v1529, %v1529
      %v1534 = vmul.f32 %v1530, %v1530
      %v1535 = vmul.f32 %v1531, %v1531
      %v1536 = vmul.f32 %v1532, %v1532
      %v1537 = vadd.f32 %v1533, %v1534
      %1538 = vadd.xlane.f32.xlu0 %v1537
      %v1539 = vpop.xlane.xlu0 %1538
      %v1540 = vadd.f32 %v1535, %v1536
      %1541 = vadd.xlane.f32.xlu0 %v1540
      %v1542 = vpop.xlane.xlu0 %1541
      %v1543 = vmul.f32 %v1539, %v1526
      %v1544 = vmul.f32 %v1542, %v1526
      %v1545 = vadd.f32 %v1543, 1e-05
      %v1546 = vadd.f32 %v1544, 1e-05
      %v1547 = vrsqrt.pop %v1545
      %v1548 = vmul.f32 %v1547, %v1545
      %v1549 = vmul.f32 %v1548, %v1547
      %v1550 = vmul.f32 0.5, %v1549
      %v1551 = vsub.f32 1.5, %v1550
      %v1552 = vmul.f32 %v1547, %v1551
      %vm1553 = vweird.f32 %v1545
      %vm1554 = vweird.f32 %v1547
      %vm1555 = vmor %vm1553, %vm1554
      %v1556 = vsel %vm1555, %v1547, %v1552
      %v1557 = vrsqrt.pop %v1546
      %v1558 = vmul.f32 %v1557, %v1546
      %v1559 = vmul.f32 %v1558, %v1557
      %v1560 = vmul.f32 0.5, %v1559
      %v1561 = vsub.f32 1.5, %v1560
      %v1562 = vmul.f32 %v1557, %v1561
      %vm1563 = vweird.f32 %v1546
      %vm1564 = vweird.f32 %v1557
      %vm1565 = vmor %vm1563, %vm1564
      %v1566 = vsel %vm1565, %v1557, %v1562
      %v1567 = vmul.f32 %v1529, %v1556
      %v1568 = vmul.f32 %v1530, %v1556
      %v1569 = vmul.f32 %v1531, %v1566
      %v1570 = vmul.f32 %v1532, %v1566
      %v1572 = vperm.slane %v1512, 0
      %v1573 = vperm.slane %v1512, 1
      %v1576 = vmul.f32 %v1572, %v1567
      %v1577 = vmul.f32 %v1573, %v1568
      %v1578 = vmul.f32 %v1572, %v1569
      %v1579 = vmul.f32 %v1573, %v1570
      %v1581 = vperm.slane %v1513, 0
      %v1582 = vperm.slane %v1513, 1
      %v1585 = vadd.f32 %v1576, %v1581
      %v1586 = vadd.f32 %v1577, %v1582
      %v1587 = vadd.f32 %v1578, %v1581
      %v1588 = vadd.f32 %v1579, %v1582
      %1589 = vst [vmem:[%s305] sm:$0xff] %v1585
      %1590 = vst [vmem:[%s305 + $0x8] sm:$0xff] %v1586
      %1591 = vst [vmem:[%s305 + $0x10] sm:$0xff] %v1587
      %1592 = vst [vmem:[%s305 + $0x18] sm:$0xff] %v1588
      %p1593 = scmp.lt.s32.totalorder %s19, 1
      %s1594 = scalar_select %p1593, %s19, 1
      %s1595 = smul.addr %s1594, 4
      %s1596 = smul.addr %s1595, 8
      %s1597 = scalar_lea.vmem %s8, %s1596
      // Predicated region
      $region53: #{decoder_layer.3} parent=51 // pred_check
        %p1598 = pneg %p210
      $region54: #{decoder_layer.3} parent=51 // pred_check_branch
        %1600 = sbr.rel (%p1598) target = $region56
      $region55: #{decoder_layer.3} parent=51 // pred_region
        _
      $region56: #{decoder_layer.3} parent=51 // pred_fallthru
        _
    $region52: #{decoder_layer.3} parent=5 // pred_fallthru
      _
    %p1601 = scmp.le.s32.totalorder 2, %s14
    // Predicated region
    $region57: #{decoder_layer.3} parent=5 // pred_check
      %p1602 = pneg %p1601
    $region58: #{decoder_layer.3} parent=5 // pred_check_branch
      %1604 = sbr.rel (%p1602) target = $region60
    $region59: #{decoder_layer.3} parent=5 // pred_region
      %s1605 = ssub.s32 %s14, 2
      // Predicated region
      $region61: #{decoder_layer.3} parent=59 // pred_check
        %p1606 = pneg %p216
      $region62: #{decoder_layer.3} parent=59 // pred_check_branch
        %1608 = sbr.rel (%p1606) target = $region64
      $region63: #{decoder_layer.3} parent=59 // pred_region
        %p1609 = scmp.lt.s32.totalorder %s20, 1
        %s1610 = scalar_select %p1609, %s20, 1
        %s1611 = smul.addr %s1610, 4
        %s1612 = smul.addr %s1611, 8
        %s1613 = scalar_lea.vmem %s8, %s1612
      $region64: #{decoder_layer.3} parent=59 // pred_fallthru
        _
    $region60: #{decoder_layer.3} parent=5 // pred_fallthru
      _
  $region6: #{decoder_layer.3} parent=0 // loop_footer
    %s18 = sadd.s32 1, %s14
  $region7: #{decoder_layer.3} parent=0 // loop_footer_branch
    %13 = sbr.rel target = $region3
  $region8: #{decoder_layer.3} parent=0 // loop_exit
    _

// kernel: decoder_layer.4
$region0: #{decoder_layer.4}
  #allocation0 [shape = 'u32[]', space=smem, size = 0x4, offset = 0x4, fixed_abs, tag = 'smem constant byte address 0x4 - core index']
  #allocation1 [shape = 'u32[72,128]{1,0:T(1,128)}', space=vmem, size = 0x9000, scoped, tag = 'internal scratch']
  %s0 = inlined_call_operand.vmem [shape: f32[2,16,256], index: 0, kind: input, shape index: {}]
  %s1 = inlined_call_operand.vmem [shape: f32[2,16,256], index: 1, kind: input, shape index: {}]
  %s2 = inlined_call_operand.vmem [shape: f32[16,16], index: 2, kind: input, shape index: {}]
  %s3 = inlined_call_operand.vmem [shape: bf16[256,512], index: 3, kind: input, shape index: {}]
  %s4 = inlined_call_operand.vmem [shape: f32[1,512], index: 4, kind: input, shape index: {}]
  %s5 = inlined_call_operand.vmem [shape: bf16[256,256], index: 5, kind: input, shape index: {}]
  %s6 = inlined_call_operand.vmem [shape: f32[1,256], index: 6, kind: input, shape index: {}]
  %s7 = inlined_call_operand.vmem [shape: bf16[256,256], index: 7, kind: input, shape index: {}]
  %s8 = inlined_call_operand.vmem [shape: f32[1,256], index: 8, kind: input, shape index: {}]
  %s9 = inlined_call_operand.vmem [shape: f32[1,256], index: 9, kind: input, shape index: {}]
  %s10 = inlined_call_operand.vmem [shape: f32[1,256], index: 10, kind: input, shape index: {}]
  %s11 = inlined_call_operand.vmem [shape: f32[2,16,256], index: 11, kind: output, shape index: {}]
  %s12 = sld [smem:[#allocation0]]
  $region77: #{decoder_layer.4} parent=0
    _
  %s14 = ssub.s32 1, %s12
  %s15 = scalar_select 0, %s14, %s12
  loop: start=0, step=1, limit=4
  $region2: #{decoder_layer.4} parent=0 // loop_pre_header
    _
  $region3: #{decoder_layer.4} parent=0 // loop_header
    %s17 = sphi 0, %s21
    %p18 = scmp.ge.s32.totalorder %s17, 4
    %s27 = sphi 0, %s29
    %s30 = sphi 0, %s27
    %s31 = sphi 0, %s30
    %s47 = sphi 0, %s31
    %s53 = sphi 0, %s55
    %s56 = sphi 0, %s53
    %s57 = sphi 0, %s56
    %s73 = sphi 0, %s57
    %s77 = sphi 0, %s77
    %s79 = sphi 0, %s77
    %s80 = sphi 0, %s79
    %s94 = sphi 0, %s80
    %s98 = sphi 0, %s98
    %s100 = sphi 0, %s98
    %s101 = sphi 0, %s100
    %s115 = sphi 0, %s101
    %s119 = sphi 0, %s119
    %s121 = sphi 0, %s119
    %s122 = sphi 0, %s121
    %s136 = sphi 0, %s122
    %s140 = sphi 0, %s140
    %s142 = sphi 0, %s140
    %s143 = sphi 0, %s142
    %s157 = sphi 0, %s143
    %s161 = sphi 0, %s161
    %s163 = sphi 0, %s161
    %s164 = sphi 0, %s163
    %s178 = sphi 0, %s164
    %s182 = sphi 0, %s182
    %s184 = sphi 0, %s182
    %s185 = sphi 0, %s184
    %s199 = sphi 0, %s185
    %s203 = sphi 0, %s203
    %s205 = sphi 0, %s203
    %s206 = sphi 0, %s205
    %s220 = sphi 0, %s206
    %s224 = sphi 0, %s224
    %s226 = sphi 0, %s224
    %s227 = sphi 0, %s226
    %s241 = sphi 0, %s227
    %s245 = sphi 0, %s245
    %s247 = sphi 0, %s245
    %s248 = sphi 0, %s247
    %s262 = sphi 0, %s248
    %s268 = sphi 0, %s270
    %s271 = sphi 0, %s268
    %s272 = sphi 0, %s271
    %s288 = sphi 0, %s272
  $region4: #{decoder_layer.4} parent=0 // loop_header_branch
    %20 = sbr.rel (%p18) target = $region8
  $region5: #{decoder_layer.4} parent=0 // loop_body
    %s22 = ssub.s32 %s17, 1
    %s23 = ssub.s32 %s17, 2
    %s24 = sadd.s32 %s17, 1
    %s25 = ssub.s32 %s17, %s24
    %p26 = scmp.eq.s32.totalorder %s25, 0
    %s28 = sadd.s32 %s27, 1
    %s29 = scalar_select %p26, %s27, %s28
    %p32 = pneg %p26
    %p33 = scmp.eq.s32.totalorder %s17, 1
    %p34 = por %p32, %p33
    %p35 = scmp.ne.s32.totalorder %s27, %s30
    %p36 = scmp.eq.s32.totalorder %s17, 0
    %p37 = por %p35, %p36
    %p38 = scmp.ne.s32.totalorder %s27, %s30
    %p39 = scmp.eq.s32.totalorder %s22, 1
    %p40 = por %p38, %p39
    %p41 = scmp.ne.s32.totalorder %s30, %s31
    %p42 = scmp.eq.s32.totalorder %s22, 0
    %p43 = por %p41, %p42
    %p44 = scmp.ne.s32.totalorder %s30, %s31
    %p45 = scmp.eq.s32.totalorder %s23, 1
    %p46 = por %p44, %p45
    %p48 = scmp.ne.s32.totalorder %s31, %s47
    %p49 = scmp.eq.s32.totalorder %s23, 0
    %p50 = por %p48, %p49
    %s51 = ssub.s32 %s17, %s24
    %p52 = scmp.eq.s32.totalorder %s51, 0
    %s54 = sadd.s32 %s53, 1
    %s55 = scalar_select %p52, %s53, %s54
    %p58 = pneg %p52
    %p59 = scmp.eq.s32.totalorder %s17, 1
    %p60 = por %p58, %p59
    %p61 = scmp.ne.s32.totalorder %s53, %s56
    %p62 = scmp.eq.s32.totalorder %s17, 0
    %p63 = por %p61, %p62
    %p64 = scmp.ne.s32.totalorder %s53, %s56
    %p65 = scmp.eq.s32.totalorder %s22, 1
    %p66 = por %p64, %p65
    %p67 = scmp.ne.s32.totalorder %s56, %s57
    %p68 = scmp.eq.s32.totalorder %s22, 0
    %p69 = por %p67, %p68
    %p70 = scmp.ne.s32.totalorder %s56, %s57
    %p71 = scmp.eq.s32.totalorder %s23, 1
    %p72 = por %p70, %p71
    %p74 = scmp.ne.s32.totalorder %s57, %s73
    %p75 = scmp.eq.s32.totalorder %s23, 0
    %p76 = por %p74, %p75
    %s78 = sadd.s32 %s77, 1
    %p81 = scmp.eq.s32.totalorder %s17, 1
    %p82 = scmp.ne.s32.totalorder %s77, %s79
    %p83 = scmp.eq.s32.totalorder %s17, 0
    %p84 = por %p82, %p83
    %p85 = scmp.ne.s32.totalorder %s77, %s79
    %p86 = scmp.eq.s32.totalorder %s22, 1
    %p87 = por %p85, %p86
    %p88 = scmp.ne.s32.totalorder %s79, %s80
    %p89 = scmp.eq.s32.totalorder %s22, 0
    %p90 = por %p88, %p89
    %p91 = scmp.ne.s32.totalorder %s79, %s80
    %p92 = scmp.eq.s32.totalorder %s23, 1
    %p93 = por %p91, %p92
    %p95 = scmp.ne.s32.totalorder %s80, %s94
    %p96 = scmp.eq.s32.totalorder %s23, 0
    %p97 = por %p95, %p96
    %s99 = sadd.s32 %s98, 1
    %p102 = scmp.eq.s32.totalorder %s17, 1
    %p103 = scmp.ne.s32.totalorder %s98, %s100
    %p104 = scmp.eq.s32.totalorder %s17, 0
    %p105 = por %p103, %p104
    %p106 = scmp.ne.s32.totalorder %s98, %s100
    %p107 = scmp.eq.s32.totalorder %s22, 1
    %p108 = por %p106, %p107
    %p109 = scmp.ne.s32.totalorder %s100, %s101
    %p110 = scmp.eq.s32.totalorder %s22, 0
    %p111 = por %p109, %p110
    %p112 = scmp.ne.s32.totalorder %s100, %s101
    %p113 = scmp.eq.s32.totalorder %s23, 1
    %p114 = por %p112, %p113
    %p116 = scmp.ne.s32.totalorder %s101, %s115
    %p117 = scmp.eq.s32.totalorder %s23, 0
    %p118 = por %p116, %p117
    %s120 = sadd.s32 %s119, 1
    %p123 = scmp.eq.s32.totalorder %s17, 1
    %p124 = scmp.ne.s32.totalorder %s119, %s121
    %p125 = scmp.eq.s32.totalorder %s17, 0
    %p126 = por %p124, %p125
    %p127 = scmp.ne.s32.totalorder %s119, %s121
    %p128 = scmp.eq.s32.totalorder %s22, 1
    %p129 = por %p127, %p128
    %p130 = scmp.ne.s32.totalorder %s121, %s122
    %p131 = scmp.eq.s32.totalorder %s22, 0
    %p132 = por %p130, %p131
    %p133 = scmp.ne.s32.totalorder %s121, %s122
    %p134 = scmp.eq.s32.totalorder %s23, 1
    %p135 = por %p133, %p134
    %p137 = scmp.ne.s32.totalorder %s122, %s136
    %p138 = scmp.eq.s32.totalorder %s23, 0
    %p139 = por %p137, %p138
    %s141 = sadd.s32 %s140, 1
    %p144 = scmp.eq.s32.totalorder %s17, 1
    %p145 = scmp.ne.s32.totalorder %s140, %s142
    %p146 = scmp.eq.s32.totalorder %s17, 0
    %p147 = por %p145, %p146
    %p148 = scmp.ne.s32.totalorder %s140, %s142
    %p149 = scmp.eq.s32.totalorder %s22, 1
    %p150 = por %p148, %p149
    %p151 = scmp.ne.s32.totalorder %s142, %s143
    %p152 = scmp.eq.s32.totalorder %s22, 0
    %p153 = por %p151, %p152
    %p154 = scmp.ne.s32.totalorder %s142, %s143
    %p155 = scmp.eq.s32.totalorder %s23, 1
    %p156 = por %p154, %p155
    %p158 = scmp.ne.s32.totalorder %s143, %s157
    %p159 = scmp.eq.s32.totalorder %s23, 0
    %p160 = por %p158, %p159
    %s162 = sadd.s32 %s161, 1
    %p165 = scmp.eq.s32.totalorder %s17, 1
    %p166 = scmp.ne.s32.totalorder %s161, %s163
    %p167 = scmp.eq.s32.totalorder %s17, 0
    %p168 = por %p166, %p167
    %p169 = scmp.ne.s32.totalorder %s161, %s163
    %p170 = scmp.eq.s32.totalorder %s22, 1
    %p171 = por %p169, %p170
    %p172 = scmp.ne.s32.totalorder %s163, %s164
    %p173 = scmp.eq.s32.totalorder %s22, 0
    %p174 = por %p172, %p173
    %p175 = scmp.ne.s32.totalorder %s163, %s164
    %p176 = scmp.eq.s32.totalorder %s23, 1
    %p177 = por %p175, %p176
    %p179 = scmp.ne.s32.totalorder %s164, %s178
    %p180 = scmp.eq.s32.totalorder %s23, 0
    %p181 = por %p179, %p180
    %s183 = sadd.s32 %s182, 1
    %p186 = scmp.eq.s32.totalorder %s17, 1
    %p187 = scmp.ne.s32.totalorder %s182, %s184
    %p188 = scmp.eq.s32.totalorder %s17, 0
    %p189 = por %p187, %p188
    %p190 = scmp.ne.s32.totalorder %s182, %s184
    %p191 = scmp.eq.s32.totalorder %s22, 1
    %p192 = por %p190, %p191
    %p193 = scmp.ne.s32.totalorder %s184, %s185
    %p194 = scmp.eq.s32.totalorder %s22, 0
    %p195 = por %p193, %p194
    %p196 = scmp.ne.s32.totalorder %s184, %s185
    %p197 = scmp.eq.s32.totalorder %s23, 1
    %p198 = por %p196, %p197
    %p200 = scmp.ne.s32.totalorder %s185, %s199
    %p201 = scmp.eq.s32.totalorder %s23, 0
    %p202 = por %p200, %p201
    %s204 = sadd.s32 %s203, 1
    %p207 = scmp.eq.s32.totalorder %s17, 1
    %p208 = scmp.ne.s32.totalorder %s203, %s205
    %p209 = scmp.eq.s32.totalorder %s17, 0
    %p210 = por %p208, %p209
    %p211 = scmp.ne.s32.totalorder %s203, %s205
    %p212 = scmp.eq.s32.totalorder %s22, 1
    %p213 = por %p211, %p212
    %p214 = scmp.ne.s32.totalorder %s205, %s206
    %p215 = scmp.eq.s32.totalorder %s22, 0
    %p216 = por %p214, %p215
    %p217 = scmp.ne.s32.totalorder %s205, %s206
    %p218 = scmp.eq.s32.totalorder %s23, 1
    %p219 = por %p217, %p218
    %p221 = scmp.ne.s32.totalorder %s206, %s220
    %p222 = scmp.eq.s32.totalorder %s23, 0
    %p223 = por %p221, %p222
    %s225 = sadd.s32 %s224, 1
    %p228 = scmp.eq.s32.totalorder %s17, 1
    %p229 = scmp.ne.s32.totalorder %s224, %s226
    %p230 = scmp.eq.s32.totalorder %s17, 0
    %p231 = por %p229, %p230
    %p232 = scmp.ne.s32.totalorder %s224, %s226
    %p233 = scmp.eq.s32.totalorder %s22, 1
    %p234 = por %p232, %p233
    %p235 = scmp.ne.s32.totalorder %s226, %s227
    %p236 = scmp.eq.s32.totalorder %s22, 0
    %p237 = por %p235, %p236
    %p238 = scmp.ne.s32.totalorder %s226, %s227
    %p239 = scmp.eq.s32.totalorder %s23, 1
    %p240 = por %p238, %p239
    %p242 = scmp.ne.s32.totalorder %s227, %s241
    %p243 = scmp.eq.s32.totalorder %s23, 0
    %p244 = por %p242, %p243
    %s246 = sadd.s32 %s245, 1
    %p249 = scmp.eq.s32.totalorder %s17, 1
    %p250 = scmp.ne.s32.totalorder %s245, %s247
    %p251 = scmp.eq.s32.totalorder %s17, 0
    %p252 = por %p250, %p251
    %p253 = scmp.ne.s32.totalorder %s245, %s247
    %p254 = scmp.eq.s32.totalorder %s22, 1
    %p255 = por %p253, %p254
    %p256 = scmp.ne.s32.totalorder %s247, %s248
    %p257 = scmp.eq.s32.totalorder %s22, 0
    %p258 = por %p256, %p257
    %p259 = scmp.ne.s32.totalorder %s247, %s248
    %p260 = scmp.eq.s32.totalorder %s23, 1
    %p261 = por %p259, %p260
    %p263 = scmp.ne.s32.totalorder %s248, %s262
    %p264 = scmp.eq.s32.totalorder %s23, 0
    %p265 = por %p263, %p264
    %s266 = ssub.s32 %s17, %s24
    %p267 = scmp.eq.s32.totalorder %s266, 0
    %s269 = sadd.s32 %s268, 1
    %s270 = scalar_select %p267, %s268, %s269
    %p273 = pneg %p267
    %p274 = scmp.eq.s32.totalorder %s17, 1
    %p275 = por %p273, %p274
    %p276 = scmp.ne.s32.totalorder %s268, %s271
    %p277 = scmp.eq.s32.totalorder %s17, 0
    %p278 = por %p276, %p277
    %p279 = scmp.ne.s32.totalorder %s268, %s271
    %p280 = scmp.eq.s32.totalorder %s22, 1
    %p281 = por %p279, %p280
    %p282 = scmp.ne.s32.totalorder %s271, %s272
    %p283 = scmp.eq.s32.totalorder %s22, 0
    %p284 = por %p282, %p283
    %p285 = scmp.ne.s32.totalorder %s271, %s272
    %p286 = scmp.eq.s32.totalorder %s23, 1
    %p287 = por %p285, %p286
    %p289 = scmp.ne.s32.totalorder %s272, %s288
    %p290 = scmp.eq.s32.totalorder %s23, 0
    %p291 = por %p289, %p290
    %p292 = scmp.le.s32.totalorder 1, %s17
    %p293 = scmp.lt.s32.totalorder %s17, 3
    %p294 = pnand %p292, %p293
    %p295 = pneg %p294
    // Predicated region
    $region9: #{decoder_layer.4} parent=5 // pred_check
      _
    $region10: #{decoder_layer.4} parent=5 // pred_check_branch
      %297 = sbr.rel (%p294) target = $region12
    $region11: #{decoder_layer.4} parent=5 // pred_region
      %s298 = ssub.s32 %s17, 1
      // Predicated region
      $region13: #{decoder_layer.4} parent=11 // pred_check
        %p299 = pneg %p90
      $region14: #{decoder_layer.4} parent=11 // pred_check_branch
        %301 = sbr.rel (%p299) target = $region16
      $region15: #{decoder_layer.4} parent=11 // pred_region
        _
      $region16: #{decoder_layer.4} parent=11 // pred_fallthru
        _
      // Predicated region
      $region17: #{decoder_layer.4} parent=11 // pred_check
        %p302 = pneg %p111
      $region18: #{decoder_layer.4} parent=11 // pred_check_branch
        %304 = sbr.rel (%p302) target = $region20
      $region19: #{decoder_layer.4} parent=11 // pred_region
        _
      $region20: #{decoder_layer.4} parent=11 // pred_fallthru
        _
      // Predicated region
      $region21: #{decoder_layer.4} parent=11 // pred_check
        %p305 = pneg %p132
      $region22: #{decoder_layer.4} parent=11 // pred_check_branch
        %307 = sbr.rel (%p305) target = $region24
      $region23: #{decoder_layer.4} parent=11 // pred_region
        _
      $region24: #{decoder_layer.4} parent=11 // pred_fallthru
        _
      // Predicated region
      $region25: #{decoder_layer.4} parent=11 // pred_check
        %p308 = pneg %p153
      $region26: #{decoder_layer.4} parent=11 // pred_check_branch
        %310 = sbr.rel (%p308) target = $region28
      $region27: #{decoder_layer.4} parent=11 // pred_region
        _
      $region28: #{decoder_layer.4} parent=11 // pred_fallthru
        _
      // Predicated region
      $region29: #{decoder_layer.4} parent=11 // pred_check
        %p311 = pneg %p174
      $region30: #{decoder_layer.4} parent=11 // pred_check_branch
        %313 = sbr.rel (%p311) target = $region32
      $region31: #{decoder_layer.4} parent=11 // pred_region
        _
      $region32: #{decoder_layer.4} parent=11 // pred_fallthru
        _
      // Predicated region
      $region33: #{decoder_layer.4} parent=11 // pred_check
        %p314 = pneg %p195
      $region34: #{decoder_layer.4} parent=11 // pred_check_branch
        %316 = sbr.rel (%p314) target = $region36
      $region35: #{decoder_layer.4} parent=11 // pred_region
        _
      $region36: #{decoder_layer.4} parent=11 // pred_fallthru
        _
      // Predicated region
      $region37: #{decoder_layer.4} parent=11 // pred_check
        %p317 = pneg %p216
      $region38: #{decoder_layer.4} parent=11 // pred_check_branch
        %319 = sbr.rel (%p317) target = $region40
      $region39: #{decoder_layer.4} parent=11 // pred_region
        _
      $region40: #{decoder_layer.4} parent=11 // pred_fallthru
        _
      // Predicated region
      $region41: #{decoder_layer.4} parent=11 // pred_check
        %p320 = pneg %p237
      $region42: #{decoder_layer.4} parent=11 // pred_check_branch
        %322 = sbr.rel (%p320) target = $region44
      $region43: #{decoder_layer.4} parent=11 // pred_region
        _
      $region44: #{decoder_layer.4} parent=11 // pred_fallthru
        _
      // Predicated region
      $region45: #{decoder_layer.4} parent=11 // pred_check
        %p323 = pneg %p258
      $region46: #{decoder_layer.4} parent=11 // pred_check_branch
        %325 = sbr.rel (%p323) target = $region48
      $region47: #{decoder_layer.4} parent=11 // pred_region
        _
      $region48: #{decoder_layer.4} parent=11 // pred_fallthru
        _
    $region12: #{decoder_layer.4} parent=5 // pred_fallthru
      _
    %p326 = scmp.lt.s32.totalorder %s17, 2
    // Predicated region
    $region49: #{decoder_layer.4} parent=5 // pred_check
      %p327 = pneg %p326
    $region50: #{decoder_layer.4} parent=5 // pred_check_branch
      %329 = sbr.rel (%p327) target = $region52
    $region51: #{decoder_layer.4} parent=5 // pred_region
      // Predicated region
      $region53: #{decoder_layer.4} parent=51 // pred_check
        %p330 = pneg %p37
      $region54: #{decoder_layer.4} parent=51 // pred_check_branch
        %332 = sbr.rel (%p330) target = $region56
      $region55: #{decoder_layer.4} parent=51 // pred_region
        %p333 = scmp.lt.s32.totalorder %s17, 1
        %s334 = scalar_select %p333, %s17, 1
        %s335 = smul.addr %s334, 4
        %s336 = smul.addr %s335, 8
        %s337 = scalar_lea.vmem %s0, %s336
      $region56: #{decoder_layer.4} parent=51 // pred_fallthru
        _
      // Predicated region
      $region57: #{decoder_layer.4} parent=51 // pred_check
        %p338 = pneg %p63
      $region58: #{decoder_layer.4} parent=51 // pred_check_branch
        %340 = sbr.rel (%p338) target = $region60
      $region59: #{decoder_layer.4} parent=51 // pred_region
        %p341 = scmp.lt.s32.totalorder %s17, 1
        %s342 = scalar_select %p341, %s17, 1
        %s343 = smul.addr %s342, 4
        %s344 = smul.addr %s343, 8
        %s345 = scalar_lea.vmem %s1, %s344
      $region60: #{decoder_layer.4} parent=51 // pred_fallthru
        _
    $region52: #{decoder_layer.4} parent=5 // pred_fallthru
      _
    %p346 = scmp.le.s32.totalorder 1, %s17
    %p347 = scmp.lt.s32.totalorder %s17, 3
    %p348 = pnand %p346, %p347
    %p349 = pneg %p348
    // Predicated region
    $region61: #{decoder_layer.4} parent=5 // pred_check
      _
    $region62: #{decoder_layer.4} parent=5 // pred_check_branch
      %351 = sbr.rel (%p348) target = $region64
    $region63: #{decoder_layer.4} parent=5 // pred_region
      %s352 = ssub.s32 %s17, 1
      %p353 = scmp.lt.s32.totalorder %s22, 1
      %s354 = scalar_select %p353, %s22, 1
      %s355 = smul.addr %s354, 4
      %s356 = smul.addr %s355, 8
      %s357 = scalar_lea.vmem %s0, %s356
      %p358 = pneg %p43
      %p359 = pneg %p40
      %p360 = scmp.lt.s32.totalorder %s22, 1
      %s361 = scalar_select %p360, %s22, 1
      %s362 = smul.addr %s361, 4
      %s363 = smul.addr %s362, 8
      %s364 = scalar_lea.vmem %s1, %s363
      %p365 = pneg %p69
      %p366 = pneg %p66
      %p367 = pneg %p90
      %p368 = pneg %p87
      %p369 = pneg %p111
      %p370 = pneg %p108
      %p371 = pneg %p132
      %p372 = pneg %p129
      %p373 = pneg %p153
      %p374 = pneg %p150
      %p375 = pneg %p174
      %p376 = pneg %p171
      %p377 = pneg %p195
      %p378 = pneg %p192
      %p379 = pneg %p216
      %p380 = pneg %p213
      %p381 = pneg %p237
      %p382 = pneg %p234
      %p383 = pneg %p258
      %p384 = pneg %p255
      %p385 = pneg %p284
      %p386 = pneg %p281
      %p387 = scmp.lt.s32.totalorder %s22, 1
      %s388 = scalar_select %p387, %s22, 1
      %s389 = smul.addr %s388, 4
      %s390 = smul.addr %s389, 8
      %s391 = scalar_lea.vmem %s11, %s390
      %p392 = scmp.lt.s32.totalorder %s22, 1
      %s393 = scalar_select %p392, %s22, 1
      %s394 = smul.addr %s393, 4
      %s395 = smul.addr %s394, 8
      %s396 = scalar_lea.vmem %s0, %s395
      %p397 = scmp.lt.s32.totalorder %s22, 1
      %s398 = scalar_select %p397, %s22, 1
      %s399 = smul.addr %s398, 4
      %s400 = smul.addr %s399, 8
      %s401 = scalar_lea.vmem %s1, %s400
      %p402 = scmp.lt.s32.totalorder %s22, 1
      %s403 = scalar_select %p402, %s22, 1
      %s404 = smul.addr %s403, 4
      %s405 = smul.addr %s404, 8
      %s406 = scalar_lea.vmem %s11, %s405
      %v408 = vld [vmem:[%s2] sm:$0xff]
      %v409 = vld [vmem:[%s2 + $0x8] sm:$0xff]
      %v410 = vld [vmem:[%s396] sm:$0xff]
      %v411 = vld [vmem:[%s396 + $0x8] sm:$0xff]
      %v412 = vld [vmem:[%s396 + $0x10] sm:$0xff]
      %v413 = vld [vmem:[%s396 + $0x18] sm:$0xff]
      %v414 = vpack.c.bf16 %v412, %v410
      %v415 = vpack.c.bf16 %v413, %v411
      %v416 = vld [vmem:[%s3] sm:$0xff]
      %v417 = vld [vmem:[%s3 + $0x8] sm:$0xff]
      %v418 = vld [vmem:[%s3 + $0x10] sm:$0xff]
      %v419 = vld [vmem:[%s3 + $0x18] sm:$0xff]
      %v420 = vld [vmem:[%s3 + $0x20] sm:$0xff]
      %v421 = vld [vmem:[%s3 + $0x28] sm:$0xff]
      %v422 = vld [vmem:[%s3 + $0x30] sm:$0xff]
      %v423 = vld [vmem:[%s3 + $0x38] sm:$0xff]
      %v424 = vld [vmem:[%s3 + $0x40] sm:$0xff]
      %v425 = vld [vmem:[%s3 + $0x48] sm:$0xff]
      %v426 = vld [vmem:[%s3 + $0x50] sm:$0xff]
      %v427 = vld [vmem:[%s3 + $0x58] sm:$0xff]
      %v428 = vld [vmem:[%s3 + $0x60] sm:$0xff]
      %v429 = vld [vmem:[%s3 + $0x68] sm:$0xff]
      %v430 = vld [vmem:[%s3 + $0x70] sm:$0xff]
      %v431 = vld [vmem:[%s3 + $0x78] sm:$0xff]
      %v432 = vld [vmem:[%s3 + $0x80] sm:$0xff]
      %v433 = vld [vmem:[%s3 + $0x88] sm:$0xff]
      %v434 = vld [vmem:[%s3 + $0x90] sm:$0xff]
      %v435 = vld [vmem:[%s3 + $0x98] sm:$0xff]
      %v436 = vld [vmem:[%s3 + $0xa0] sm:$0xff]
      %v437 = vld [vmem:[%s3 + $0xa8] sm:$0xff]
      %v438 = vld [vmem:[%s3 + $0xb0] sm:$0xff]
      %v439 = vld [vmem:[%s3 + $0xb8] sm:$0xff]
      %v440 = vld [vmem:[%s3 + $0xc0] sm:$0xff]
      %v441 = vld [vmem:[%s3 + $0xc8] sm:$0xff]
      %v442 = vld [vmem:[%s3 + $0xd0] sm:$0xff]
      %v443 = vld [vmem:[%s3 + $0xd8] sm:$0xff]
      %v444 = vld [vmem:[%s3 + $0xe0] sm:$0xff]
      %v445 = vld [vmem:[%s3 + $0xe8] sm:$0xff]
      %v446 = vld [vmem:[%s3 + $0xf0] sm:$0xff]
      %v447 = vld [vmem:[%s3 + $0xf8] sm:$0xff]
      %v448 = vld [vmem:[%s3 + $0x100] sm:$0xff]
      %v449 = vld [vmem:[%s3 + $0x108] sm:$0xff]
      %v450 = vld [vmem:[%s3 + $0x110] sm:$0xff]
      %v451 = vld [vmem:[%s3 + $0x118] sm:$0xff]
      %v452 = vld [vmem:[%s3 + $0x120] sm:$0xff]
      %v453 = vld [vmem:[%s3 + $0x128] sm:$0xff]
      %v454 = vld [vmem:[%s3 + $0x130] sm:$0xff]
      %v455 = vld [vmem:[%s3 + $0x138] sm:$0xff]
      %v456 = vld [vmem:[%s3 + $0x140] sm:$0xff]
      %v457 = vld [vmem:[%s3 + $0x148] sm:$0xff]
      %v458 = vld [vmem:[%s3 + $0x150] sm:$0xff]
      %v459 = vld [vmem:[%s3 + $0x158] sm:$0xff]
      %v460 = vld [vmem:[%s3 + $0x160] sm:$0xff]
      %v461 = vld [vmem:[%s3 + $0x168] sm:$0xff]
      %v462 = vld [vmem:[%s3 + $0x170] sm:$0xff]
      %v463 = vld [vmem:[%s3 + $0x178] sm:$0xff]
      %v464 = vld [vmem:[%s3 + $0x180] sm:$0xff]
      %v465 = vld [vmem:[%s3 + $0x188] sm:$0xff]
      %v466 = vld [vmem:[%s3 + $0x190] sm:$0xff]
      %v467 = vld [vmem:[%s3 + $0x198] sm:$0xff]
      %v468 = vld [vmem:[%s3 + $0x1a0] sm:$0xff]
      %v469 = vld [vmem:[%s3 + $0x1a8] sm:$0xff]
      %v470 = vld [vmem:[%s3 + $0x1b0] sm:$0xff]
      %v471 = vld [vmem:[%s3 + $0x1b8] sm:$0xff]
      %v472 = vld [vmem:[%s3 + $0x1c0] sm:$0xff]
      %v473 = vld [vmem:[%s3 + $0x1c8] sm:$0xff]
      %v474 = vld [vmem:[%s3 + $0x1d0] sm:$0xff]
      %v475 = vld [vmem:[%s3 + $0x1d8] sm:$0xff]
      %v476 = vld [vmem:[%s3 + $0x1e0] sm:$0xff]
      %v477 = vld [vmem:[%s3 + $0x1e8] sm:$0xff]
      %v478 = vld [vmem:[%s3 + $0x1f0] sm:$0xff]
      %v479 = vld [vmem:[%s3 + $0x1f8] sm:$0xff]
      %v480 = vld [vmem:[%s4] sm:$0xf]
      %v482 = vperm.slane %v480, 0
      %v483 = vperm.slane %v480, 1
      %v484 = vperm.slane %v480, 2
      %v485 = vperm.slane %v480, 3
      %v554 = vunpack.c.l.b16 %v416
      %v555 = vunpack.c.h.b16 %v416
      %v556 = vunpack.c.l.b16 %v417
      %v557 = vunpack.c.h.b16 %v417
      %v558 = vunpack.c.l.b16 %v418
      %v559 = vunpack.c.h.b16 %v418
      %v560 = vunpack.c.l.b16 %v419
      %v561 = vunpack.c.h.b16 %v419
      %v562 = vunpack.c.l.b16 %v420
      %v563 = vunpack.c.h.b16 %v420
      %v564 = vunpack.c.l.b16 %v421
      %v565 = vunpack.c.h.b16 %v421
      %v566 = vunpack.c.l.b16 %v422
      %v567 = vunpack.c.h.b16 %v422
      %v568 = vunpack.c.l.b16 %v423
      %v569 = vunpack.c.h.b16 %v423
      %v570 = vunpack.c.l.b16 %v424
      %v571 = vunpack.c.h.b16 %v424
      %v572 = vunpack.c.l.b16 %v425
      %v573 = vunpack.c.h.b16 %v425
      %v574 = vunpack.c.l.b16 %v426
      %v575 = vunpack.c.h.b16 %v426
      %v576 = vunpack.c.l.b16 %v427
      %v577 = vunpack.c.h.b16 %v427
      %v578 = vunpack.c.l.b16 %v428
      %v579 = vunpack.c.h.b16 %v428
      %v580 = vunpack.c.l.b16 %v429
      %v581 = vunpack.c.h.b16 %v429
      %v582 = vunpack.c.l.b16 %v430
      %v583 = vunpack.c.h.b16 %v430
      %v584 = vunpack.c.l.b16 %v431
      %v585 = vunpack.c.h.b16 %v431
      %v586 = vunpack.c.l.b16 %v432
      %v587 = vunpack.c.h.b16 %v432
      %v588 = vunpack.c.l.b16 %v433
      %v589 = vunpack.c.h.b16 %v433
      %v590 = vunpack.c.l.b16 %v434
      %v591 = vunpack.c.h.b16 %v434
      %v592 = vunpack.c.l.b16 %v435
      %v593 = vunpack.c.h.b16 %v435
      %v594 = vunpack.c.l.b16 %v436
      %v595 = vunpack.c.h.b16 %v436
      %v596 = vunpack.c.l.b16 %v437
      %v597 = vunpack.c.h.b16 %v437
      %v598 = vunpack.c.l.b16 %v438
      %v599 = vunpack.c.h.b16 %v438
      %v600 = vunpack.c.l.b16 %v439
      %v601 = vunpack.c.h.b16 %v439
      %v602 = vunpack.c.l.b16 %v440
      %v603 = vunpack.c.h.b16 %v440
      %v604 = vunpack.c.l.b16 %v441
      %v605 = vunpack.c.h.b16 %v441
      %v606 = vunpack.c.l.b16 %v442
      %v607 = vunpack.c.h.b16 %v442
      %v608 = vunpack.c.l.b16 %v443
      %v609 = vunpack.c.h.b16 %v443
      %v610 = vunpack.c.l.b16 %v444
      %v611 = vunpack.c.h.b16 %v444
      %v612 = vunpack.c.l.b16 %v445
      %v613 = vunpack.c.h.b16 %v445
      %v614 = vunpack.c.l.b16 %v446
      %v615 = vunpack.c.h.b16 %v446
      %v616 = vunpack.c.l.b16 %v447
      %v617 = vunpack.c.h.b16 %v447
      %v618 = vunpack.c.l.b16 %v448
      %v619 = vunpack.c.h.b16 %v448
      %v620 = vunpack.c.l.b16 %v449
      %v621 = vunpack.c.h.b16 %v449
      %v622 = vunpack.c.l.b16 %v450
      %v623 = vunpack.c.h.b16 %v450
      %v624 = vunpack.c.l.b16 %v451
      %v625 = vunpack.c.h.b16 %v451
      %v626 = vunpack.c.l.b16 %v452
      %v627 = vunpack.c.h.b16 %v452
      %v628 = vunpack.c.l.b16 %v453
      %v629 = vunpack.c.h.b16 %v453
      %v630 = vunpack.c.l.b16 %v454
      %v631 = vunpack.c.h.b16 %v454
      %v632 = vunpack.c.l.b16 %v455
      %v633 = vunpack.c.h.b16 %v455
      %v634 = vunpack.c.l.b16 %v456
      %v635 = vunpack.c.h.b16 %v456
      %v636 = vunpack.c.l.b16 %v457
      %v637 = vunpack.c.h.b16 %v457
      %v638 = vunpack.c.l.b16 %v458
      %v639 = vunpack.c.h.b16 %v458
      %v640 = vunpack.c.l.b16 %v459
      %v641 = vunpack.c.h.b16 %v459
      %v642 = vunpack.c.l.b16 %v460
      %v643 = vunpack.c.h.b16 %v460
      %v644 = vunpack.c.l.b16 %v461
      %v645 = vunpack.c.h.b16 %v461
      %v646 = vunpack.c.l.b16 %v462
      %v647 = vunpack.c.h.b16 %v462
      %v648 = vunpack.c.l.b16 %v463
      %v649 = vunpack.c.h.b16 %v463
      %v650 = vunpack.c.l.b16 %v464
      %v651 = vunpack.c.h.b16 %v464
      %v652 = vunpack.c.l.b16 %v465
      %v653 = vunpack.c.h.b16 %v465
      %v654 = vunpack.c.l.b16 %v466
      %v655 = vunpack.c.h.b16 %v466
      %v656 = vunpack.c.l.b16 %v467
      %v657 = vunpack.c.h.b16 %v467
      %v658 = vunpack.c.l.b16 %v468
      %v659 = vunpack.c.h.b16 %v468
      %v660 = vunpack.c.l.b16 %v469
      %v661 = vunpack.c.h.b16 %v469
      %v662 = vunpack.c.l.b16 %v470
      %v663 = vunpack.c.h.b16 %v470
      %v664 = vunpack.c.l.b16 %v471
      %v665 = vunpack.c.h.b16 %v471
      %v666 = vunpack.c.l.b16 %v472
      %v667 = vunpack.c.h.b16 %v472
      %v668 = vunpack.c.l.b16 %v473
      %v669 = vunpack.c.h.b16 %v473
      %v670 = vunpack.c.l.b16 %v474
      %v671 = vunpack.c.h.b16 %v474
      %v672 = vunpack.c.l.b16 %v475
      %v673 = vunpack.c.h.b16 %v475
      %v674 = vunpack.c.l.b16 %v476
      %v675 = vunpack.c.h.b16 %v476
      %v676 = vunpack.c.l.b16 %v477
      %v677 = vunpack.c.h.b16 %v477
      %v678 = vunpack.c.l.b16 %v478
      %v679 = vunpack.c.h.b16 %v478
      %v680 = vunpack.c.l.b16 %v479
      %v681 = vunpack.c.h.b16 %v479
      %v682 = vpack.c.b16 %v558, %v554
      %v683 = vpack.c.b16 %v559, %v555
      %v684 = vpack.c.b16 %v560, %v556
      %v685 = vpack.c.b16 %v561, %v557
      %v686 = vpack.c.b16 %v566, %v562
      %v687 = vpack.c.b16 %v567, %v563
      %v688 = vpack.c.b16 %v568, %v564
      %v689 = vpack.c.b16 %v569, %v565
      %v690 = vpack.c.b16 %v574, %v570
      %v691 = vpack.c.b16 %v575, %v571
      %v692 = vpack.c.b16 %v576, %v572
      %v693 = vpack.c.b16 %v577, %v573
      %v694 = vpack.c.b16 %v582, %v578
      %v695 = vpack.c.b16 %v583, %v579
      %v696 = vpack.c.b16 %v584, %v580
      %v697 = vpack.c.b16 %v585, %v581
      %v698 = vpack.c.b16 %v590, %v586
      %v699 = vpack.c.b16 %v591, %v587
      %v700 = vpack.c.b16 %v592, %v588
      %v701 = vpack.c.b16 %v593, %v589
      %v702 = vpack.c.b16 %v598, %v594
      %v703 = vpack.c.b16 %v599, %v595
      %v704 = vpack.c.b16 %v600, %v596
      %v705 = vpack.c.b16 %v601, %v597
      %v706 = vpack.c.b16 %v606, %v602
      %v707 = vpack.c.b16 %v607, %v603
      %v708 = vpack.c.b16 %v608, %v604
      %v709 = vpack.c.b16 %v609, %v605
      %v710 = vpack.c.b16 %v614, %v610
      %v711 = vpack.c.b16 %v615, %v611
      %v712 = vpack.c.b16 %v616, %v612
      %v713 = vpack.c.b16 %v617, %v613
      %v714 = vpack.c.b16 %v622, %v618
      %v715 = vpack.c.b16 %v623, %v619
      %v716 = vpack.c.b16 %v624, %v620
      %v717 = vpack.c.b16 %v625, %v621
      %v718 = vpack.c.b16 %v630, %v626
      %v719 = vpack.c.b16 %v631, %v627
      %v720 = vpack.c.b16 %v632, %v628
      %v721 = vpack.c.b16 %v633, %v629
      %v722 = vpack.c.b16 %v638, %v634
      %v723 = vpack.c.b16 %v639, %v635
      %v724 = vpack.c.b16 %v640, %v636
      %v725 = vpack.c.b16 %v641, %v637
      %v726 = vpack.c.b16 %v646, %v642
      %v727 = vpack.c.b16 %v647, %v643
      %v728 = vpack.c.b16 %v648, %v644
      %v729 = vpack.c.b16 %v649, %v645
      %v730 = vpack.c.b16 %v654, %v650
      %v731 = vpack.c.b16 %v655, %v651
      %v732 = vpack.c.b16 %v656, %v652
      %v733 = vpack.c.b16 %v657, %v653
      %v734 = vpack.c.b16 %v662, %v658
      %v735 = vpack.c.b16 %v663, %v659
      %v736 = vpack.c.b16 %v664, %v660
      %v737 = vpack.c.b16 %v665, %v661
      %v738 = vpack.c.b16 %v670, %v666
      %v739 = vpack.c.b16 %v671, %v667
      %v740 = vpack.c.b16 %v672, %v668
      %v741 = vpack.c.b16 %v673, %v669
      %v742 = vpack.c.b16 %v678, %v674
      %v743 = vpack.c.b16 %v679, %v675
      %v744 = vpack.c.b16 %v680, %v676
      %v745 = vpack.c.b16 %v681, %v677
      %810 = vmatpush.bf16.msra.mxu0 %v710
      %811 = vmatpush.bf16.msra.mxu0 %v706
      %812 = vmatpush.bf16.msra.mxu0 %v702
      %813 = vmatpush.bf16.msra.mxu0 %v698
      %814 = vmatpush.bf16.msra.mxu0 %v694
      %815 = vmatpush.bf16.msra.mxu0 %v690
      %816 = vmatpush.bf16.msra.mxu0 %v686
      %817 = vmatpush.bf16.msra.mxu0 %v682
      %818 = vmatmul.bf16.gmra.mxu0 %v414
      %v819 = vpop.f32.mrf.mxu0
      %v820 = vadd.f32 %v482, %v819
      %v821 = vpop.f32.mrf.mxu0
      %v822 = vadd.f32 %v482, %v821
      %823 = vdwg.mxu0
      %824 = vmatpush.bf16.msra.mxu0 %v742
      %825 = vmatpush.bf16.msra.mxu0 %v738
      %826 = vmatpush.bf16.msra.mxu0 %v734
      %827 = vmatpush.bf16.msra.mxu0 %v730
      %828 = vmatpush.bf16.msra.mxu0 %v726
      %829 = vmatpush.bf16.msra.mxu0 %v722
      %830 = vmatpush.bf16.msra.mxu0 %v718
      %831 = vmatpush.bf16.msra.mxu0 %v714
      %832 = vmatmul.bf16.gmra.mxu0 %v415
      %v833 = vpop.f32.mrf.mxu0
      %v834 = vadd.f32 %v820, %v833
      %v835 = vpop.f32.mrf.mxu0
      %v836 = vadd.f32 %v822, %v835
      %837 = vdwg.mxu0
      %838 = vmatpush.bf16.msra.mxu0 %v711
      %839 = vmatpush.bf16.msra.mxu0 %v707
      %840 = vmatpush.bf16.msra.mxu0 %v703
      %841 = vmatpush.bf16.msra.mxu0 %v699
      %842 = vmatpush.bf16.msra.mxu0 %v695
      %843 = vmatpush.bf16.msra.mxu0 %v691
      %844 = vmatpush.bf16.msra.mxu0 %v687
      %845 = vmatpush.bf16.msra.mxu0 %v683
      %846 = vmatmul.bf16.gmra.mxu0 %v414
      %v847 = vpop.f32.mrf.mxu0
      %v848 = vadd.f32 %v483, %v847
      %v849 = vpop.f32.mrf.mxu0
      %v850 = vadd.f32 %v483, %v849
      %851 = vdwg.mxu0
      %852 = vmatpush.bf16.msra.mxu0 %v743
      %853 = vmatpush.bf16.msra.mxu0 %v739
      %854 = vmatpush.bf16.msra.mxu0 %v735
      %855 = vmatpush.bf16.msra.mxu0 %v731
      %856 = vmatpush.bf16.msra.mxu0 %v727
      %857 = vmatpush.bf16.msra.mxu0 %v723
      %858 = vmatpush.bf16.msra.mxu0 %v719
      %859 = vmatpush.bf16.msra.mxu0 %v715
      %860 = vmatmul.bf16.gmra.mxu0 %v415
      %v861 = vpop.f32.mrf.mxu0
      %v862 = vadd.f32 %v848, %v861
      %v863 = vpop.f32.mrf.mxu0
      %v864 = vadd.f32 %v850, %v863
      %865 = vdwg.mxu0
      %866 = vmatpush.bf16.msra.mxu0 %v712
      %867 = vmatpush.bf16.msra.mxu0 %v708
      %868 = vmatpush.bf16.msra.mxu0 %v704
      %869 = vmatpush.bf16.msra.mxu0 %v700
      %870 = vmatpush.bf16.msra.mxu0 %v696
      %871 = vmatpush.bf16.msra.mxu0 %v692
      %872 = vmatpush.bf16.msra.mxu0 %v688
      %873 = vmatpush.bf16.msra.mxu0 %v684
      %874 = vmatmul.bf16.gmra.mxu0 %v414
      %v875 = vpop.f32.mrf.mxu0
      %v876 = vadd.f32 %v484, %v875
      %v877 = vpop.f32.mrf.mxu0
      %v878 = vadd.f32 %v484, %v877
      %879 = vdwg.mxu0
      %880 = vmatpush.bf16.msra.mxu0 %v744
      %881 = vmatpush.bf16.msra.mxu0 %v740
      %882 = vmatpush.bf16.msra.mxu0 %v736
      %883 = vmatpush.bf16.msra.mxu0 %v732
      %884 = vmatpush.bf16.msra.mxu0 %v728
      %885 = vmatpush.bf16.msra.mxu0 %v724
      %886 = vmatpush.bf16.msra.mxu0 %v720
      %887 = vmatpush.bf16.msra.mxu0 %v716
      %888 = vmatmul.bf16.gmra.mxu0 %v415
      %v889 = vpop.f32.mrf.mxu0
      %v890 = vadd.f32 %v876, %v889
      %v891 = vpop.f32.mrf.mxu0
      %v892 = vadd.f32 %v878, %v891
      %893 = vdwg.mxu0
      %894 = vmatpush.bf16.msra.mxu0 %v713
      %895 = vmatpush.bf16.msra.mxu0 %v709
      %896 = vmatpush.bf16.msra.mxu0 %v705
      %897 = vmatpush.bf16.msra.mxu0 %v701
      %898 = vmatpush.bf16.msra.mxu0 %v697
      %899 = vmatpush.bf16.msra.mxu0 %v693
      %900 = vmatpush.bf16.msra.mxu0 %v689
      %901 = vmatpush.bf16.msra.mxu0 %v685
      %902 = vmatmul.bf16.gmra.mxu0 %v414
      %v903 = vpop.f32.mrf.mxu0
      %v904 = vadd.f32 %v485, %v903
      %v905 = vpop.f32.mrf.mxu0
      %v906 = vadd.f32 %v485, %v905
      %907 = vdwg.mxu0
      %908 = vmatpush.bf16.msra.mxu0 %v745
      %909 = vmatpush.bf16.msra.mxu0 %v741
      %910 = vmatpush.bf16.msra.mxu0 %v737
      %911 = vmatpush.bf16.msra.mxu0 %v733
      %912 = vmatpush.bf16.msra.mxu0 %v729
      %913 = vmatpush.bf16.msra.mxu0 %v725
      %914 = vmatpush.bf16.msra.mxu0 %v721
      %915 = vmatpush.bf16.msra.mxu0 %v717
      %916 = vmatmul.bf16.gmra.mxu0 %v415
      %v917 = vpop.f32.mrf.mxu0
      %v918 = vadd.f32 %v904, %v917
      %v919 = vpop.f32.mrf.mxu0
      %v920 = vadd.f32 %v906, %v919
      %921 = vdwg.mxu0
      %v922 = vld [vmem:[%s401] sm:$0xff]
      %v923 = vld [vmem:[%s401 + $0x8] sm:$0xff]
      %v924 = vld [vmem:[%s401 + $0x10] sm:$0xff]
      %v925 = vld [vmem:[%s401 + $0x18] sm:$0xff]
      %v926 = vpack.c.bf16 %v924, %v922
      %v927 = vpack.c.bf16 %v925, %v923
      %v928 = vld [vmem:[%s5] sm:$0xff]
      %v929 = vld [vmem:[%s5 + $0x8] sm:$0xff]
      %v930 = vld [vmem:[%s5 + $0x10] sm:$0xff]
      %v931 = vld [vmem:[%s5 + $0x18] sm:$0xff]
      %v932 = vld [vmem:[%s5 + $0x20] sm:$0xff]
      %v933 = vld [vmem:[%s5 + $0x28] sm:$0xff]
      %v934 = vld [vmem:[%s5 + $0x30] sm:$0xff]
      %v935 = vld [vmem:[%s5 + $0x38] sm:$0xff]
      %v936 = vld [vmem:[%s5 + $0x40] sm:$0xff]
      %v937 = vld [vmem:[%s5 + $0x48] sm:$0xff]
      %v938 = vld [vmem:[%s5 + $0x50] sm:$0xff]
      %v939 = vld [vmem:[%s5 + $0x58] sm:$0xff]
      %v940 = vld [vmem:[%s5 + $0x60] sm:$0xff]
      %v941 = vld [vmem:[%s5 + $0x68] sm:$0xff]
      %v942 = vld [vmem:[%s5 + $0x70] sm:$0xff]
      %v943 = vld [vmem:[%s5 + $0x78] sm:$0xff]
      %v944 = vld [vmem:[%s5 + $0x80] sm:$0xff]
      %v945 = vld [vmem:[%s5 + $0x88] sm:$0xff]
      %v946 = vld [vmem:[%s5 + $0x90] sm:$0xff]
      %v947 = vld [vmem:[%s5 + $0x98] sm:$0xff]
      %v948 = vld [vmem:[%s5 + $0xa0] sm:$0xff]
      %v949 = vld [vmem:[%s5 + $0xa8] sm:$0xff]
      %v950 = vld [vmem:[%s5 + $0xb0] sm:$0xff]
      %v951 = vld [vmem:[%s5 + $0xb8] sm:$0xff]
      %v952 = vld [vmem:[%s5 + $0xc0] sm:$0xff]
      %v953 = vld [vmem:[%s5 + $0xc8] sm:$0xff]
      %v954 = vld [vmem:[%s5 + $0xd0] sm:$0xff]
      %v955 = vld [vmem:[%s5 + $0xd8] sm:$0xff]
      %v956 = vld [vmem:[%s5 + $0xe0] sm:$0xff]
      %v957 = vld [vmem:[%s5 + $0xe8] sm:$0xff]
      %v958 = vld [vmem:[%s5 + $0xf0] sm:$0xff]
      %v959 = vld [vmem:[%s5 + $0xf8] sm:$0xff]
      %v960 = vld [vmem:[%s6] sm:$0x3]
      %v962 = vperm.slane %v960, 0
      %v963 = vperm.slane %v960, 1
      %v998 = vunpack.c.l.b16 %v928
      %v999 = vunpack.c.h.b16 %v928
      %v1000 = vunpack.c.l.b16 %v929
      %v1001 = vunpack.c.h.b16 %v929
      %v1002 = vunpack.c.l.b16 %v930
      %v1003 = vunpack.c.h.b16 %v930
      %v1004 = vunpack.c.l.b16 %v931
      %v1005 = vunpack.c.h.b16 %v931
      %v1006 = vunpack.c.l.b16 %v932
      %v1007 = vunpack.c.h.b16 %v932
      %v1008 = vunpack.c.l.b16 %v933
      %v1009 = vunpack.c.h.b16 %v933
      %v1010 = vunpack.c.l.b16 %v934
      %v1011 = vunpack.c.h.b16 %v934
      %v1012 = vunpack.c.l.b16 %v935
      %v1013 = vunpack.c.h.b16 %v935
      %v1014 = vunpack.c.l.b16 %v936
      %v1015 = vunpack.c.h.b16 %v936
      %v1016 = vunpack.c.l.b16 %v937
      %v1017 = vunpack.c.h.b16 %v937
      %v1018 = vunpack.c.l.b16 %v938
      %v1019 = vunpack.c.h.b16 %v938
      %v1020 = vunpack.c.l.b16 %v939
      %v1021 = vunpack.c.h.b16 %v939
      %v1022 = vunpack.c.l.b16 %v940
      %v1023 = vunpack.c.h.b16 %v940
      %v1024 = vunpack.c.l.b16 %v941
      %v1025 = vunpack.c.h.b16 %v941
      %v1026 = vunpack.c.l.b16 %v942
      %v1027 = vunpack.c.h.b16 %v942
      %v1028 = vunpack.c.l.b16 %v943
      %v1029 = vunpack.c.h.b16 %v943
      %v1030 = vunpack.c.l.b16 %v944
      %v1031 = vunpack.c.h.b16 %v944
      %v1032 = vunpack.c.l.b16 %v945
      %v1033 = vunpack.c.h.b16 %v945
      %v1034 = vunpack.c.l.b16 %v946
      %v1035 = vunpack.c.h.b16 %v946
      %v1036 = vunpack.c.l.b16 %v947
      %v1037 = vunpack.c.h.b16 %v947
      %v1038 = vunpack.c.l.b16 %v948
      %v1039 = vunpack.c.h.b16 %v948
      %v1040 = vunpack.c.l.b16 %v949
      %v1041 = vunpack.c.h.b16 %v949
      %v1042 = vunpack.c.l.b16 %v950
      %v1043 = vunpack.c.h.b16 %v950
      %v1044 = vunpack.c.l.b16 %v951
      %v1045 = vunpack.c.h.b16 %v951
      %v1046 = vunpack.c.l.b16 %v952
      %v1047 = vunpack.c.h.b16 %v952
      %v1048 = vunpack.c.l.b16 %v953
      %v1049 = vunpack.c.h.b16 %v953
      %v1050 = vunpack.c.l.b16 %v954
      %v1051 = vunpack.c.h.b16 %v954
      %v1052 = vunpack.c.l.b16 %v955
      %v1053 = vunpack.c.h.b16 %v955
      %v1054 = vunpack.c.l.b16 %v956
      %v1055 = vunpack.c.h.b16 %v956
      %v1056 = vunpack.c.l.b16 %v957
      %v1057 = vunpack.c.h.b16 %v957
      %v1058 = vunpack.c.l.b16 %v958
      %v1059 = vunpack.c.h.b16 %v958
      %v1060 = vunpack.c.l.b16 %v959
      %v1061 = vunpack.c.h.b16 %v959
      %v1062 = vpack.c.b16 %v1000, %v998
      %v1063 = vpack.c.b16 %v1001, %v999
      %v1064 = vpack.c.b16 %v1004, %v1002
      %v1065 = vpack.c.b16 %v1005, %v1003
      %v1066 = vpack.c.b16 %v1008, %v1006
      %v1067 = vpack.c.b16 %v1009, %v1007
      %v1068 = vpack.c.b16 %v1012, %v1010
      %v1069 = vpack.c.b16 %v1013, %v1011
      %v1070 = vpack.c.b16 %v1016, %v1014
      %v1071 = vpack.c.b16 %v1017, %v1015
      %v1072 = vpack.c.b16 %v1020, %v1018
      %v1073 = vpack.c.b16 %v1021, %v1019
      %v1074 = vpack.c.b16 %v1024, %v1022
      %v1075 = vpack.c.b16 %v1025, %v1023
      %v1076 = vpack.c.b16 %v1028, %v1026
      %v1077 = vpack.c.b16 %v1029, %v1027
      %v1078 = vpack.c.b16 %v1032, %v1030
      %v1079 = vpack.c.b16 %v1033, %v1031
      %v1080 = vpack.c.b16 %v1036, %v1034
      %v1081 = vpack.c.b16 %v1037, %v1035
      %v1082 = vpack.c.b16 %v1040, %v1038
      %v1083 = vpack.c.b16 %v1041, %v1039
      %v1084 = vpack.c.b16 %v1044, %v1042
      %v1085 = vpack.c.b16 %v1045, %v1043
      %v1086 = vpack.c.b16 %v1048, %v1046
      %v1087 = vpack.c.b16 %v1049, %v1047
      %v1088 = vpack.c.b16 %v1052, %v1050
      %v1089 = vpack.c.b16 %v1053, %v1051
      %v1090 = vpack.c.b16 %v1056, %v1054
      %v1091 = vpack.c.b16 %v1057, %v1055
      %v1092 = vpack.c.b16 %v1060, %v1058
      %v1093 = vpack.c.b16 %v1061, %v1059
      %1126 = vmatpush.bf16.msra.mxu0 %v1076
      %1127 = vmatpush.bf16.msra.mxu0 %v1074
      %1128 = vmatpush.bf16.msra.mxu0 %v1072
      %1129 = vmatpush.bf16.msra.mxu0 %v1070
      %1130 = vmatpush.bf16.msra.mxu0 %v1068
      %1131 = vmatpush.bf16.msra.mxu0 %v1066
      %1132 = vmatpush.bf16.msra.mxu0 %v1064
      %1133 = vmatpush.bf16.msra.mxu0 %v1062
      %1134 = vmatmul.bf16.gmra.mxu0 %v926
      %v1135 = vpop.f32.mrf.mxu0
      %v1136 = vadd.f32 %v962, %v1135
      %v1137 = vpop.f32.mrf.mxu0
      %v1138 = vadd.f32 %v962, %v1137
      %1139 = vdwg.mxu0
      %1140 = vmatpush.bf16.msra.mxu0 %v1092
      %1141 = vmatpush.bf16.msra.mxu0 %v1090
      %1142 = vmatpush.bf16.msra.mxu0 %v1088
      %1143 = vmatpush.bf16.msra.mxu0 %v1086
      %1144 = vmatpush.bf16.msra.mxu0 %v1084
      %1145 = vmatpush.bf16.msra.mxu0 %v1082
      %1146 = vmatpush.bf16.msra.mxu0 %v1080
      %1147 = vmatpush.bf16.msra.mxu0 %v1078
      %1148 = vmatmul.bf16.gmra.mxu0 %v927
      %v1149 = vpop.f32.mrf.mxu0
      %v1150 = vadd.f32 %v1136, %v1149
      %v1151 = vpop.f32.mrf.mxu0
      %v1152 = vadd.f32 %v1138, %v1151
      %1153 = vdwg.mxu0
      %1154 = vmatpush.bf16.msra.mxu0 %v1077
      %1155 = vmatpush.bf16.msra.mxu0 %v1075
      %1156 = vmatpush.bf16.msra.mxu0 %v1073
      %1157 = vmatpush.bf16.msra.mxu0 %v1071
      %1158 = vmatpush.bf16.msra.mxu0 %v1069
      %1159 = vmatpush.bf16.msra.mxu0 %v1067
      %1160 = vmatpush.bf16.msra.mxu0 %v1065
      %1161 = vmatpush.bf16.msra.mxu0 %v1063
      %1162 = vmatmul.bf16.gmra.mxu0 %v926
      %v1163 = vpop.f32.mrf.mxu0
      %v1164 = vadd.f32 %v963, %v1163
      %v1165 = vpop.f32.mrf.mxu0
      %v1166 = vadd.f32 %v963, %v1165
      %1167 = vdwg.mxu0
      %1168 = vmatpush.bf16.msra.mxu0 %v1093
      %1169 = vmatpush.bf16.msra.mxu0 %v1091
      %1170 = vmatpush.bf16.msra.mxu0 %v1089
      %1171 = vmatpush.bf16.msra.mxu0 %v1087
      %1172 = vmatpush.bf16.msra.mxu0 %v1085
      %1173 = vmatpush.bf16.msra.mxu0 %v1083
      %1174 = vmatpush.bf16.msra.mxu0 %v1081
      %1175 = vmatpush.bf16.msra.mxu0 %v1079
      %1176 = vmatmul.bf16.gmra.mxu0 %v927
      %v1177 = vpop.f32.mrf.mxu0
      %v1178 = vadd.f32 %v1164, %v1177
      %v1179 = vpop.f32.mrf.mxu0
      %v1180 = vadd.f32 %v1166, %v1179
      %1181 = vdwg.mxu0
      %v1182 = vpack.c.bf16 %v1152, %v1150
      %v1183 = vpack.c.bf16 %v836, %v834
      %v1184 = vpack.c.bf16 %v864, %v862
      %1185 = vmatpush.bf16.xpose.msra.mxu0 0
      %1186 = vmatpush.bf16.xpose.msra.mxu0 0
      %1187 = vmatpush.bf16.xpose.msra.mxu0 0
      %1188 = vmatpush.bf16.xpose.msra.mxu0 0
      %1189 = vmatpush.bf16.xpose.msra.mxu0 0
      %1190 = vmatpush.bf16.xpose.msra.mxu0 0
      %1191 = vmatpush.bf16.xpose.msra.mxu0 0
      %1192 = vmatpush.bf16.xpose.msra.mxu0 %v1183
      %1193 = vmatmul.bf16.gmra.mxu0 %v1182
      %v1194 = vpop.f32.mrf.mxu0
      %v1195 = vadd.f32 0.0, %v1194
      %v1196 = vpop.f32.mrf.mxu0
      %v1197 = vadd.f32 0.0, %v1196
      %1198 = vdwg.mxu0
      %v1199 = vmul.f32 %v1195, 0.088388346
      %v1200 = vmul.f32 %v1197, 0.088388346
      %v1201 = vadd.f32 %v1199, %v408
      %v1202 = vadd.f32 %v1200, %v409
      %vm1203 = vcmask 130048
      %v1204 = vsel %vm1203, %v1201, -inf
      %1205 = vmax.xlane.f32.xlu0 %v1204
      %v1206 = vpop.xlane.xlu0 %1205
      %v1207 = vsel %vm1203, %v1202, -inf
      %1208 = vmax.xlane.f32.xlu0 %v1207
      %v1209 = vpop.xlane.xlu0 %1208
      %v1210 = vsub.f32 %v1201, %v1206
      %v1211 = vsub.f32 %v1202, %v1209
      %v1212 = vmul.f32 %v1210, 1.442695
      %v1213 = vpow.pop %v1212
      %v1214 = vmul.f32 %v1211, 1.442695
      %v1215 = vpow.pop %v1214
      %v1216 = vsel %vm1203, %v1213, 0.0
      %1217 = vadd.xlane.f32.xlu0 %v1216
      %v1218 = vpop.xlane.xlu0 %1217
      %v1219 = vsel %vm1203, %v1215, 0.0
      %1220 = vadd.xlane.f32.xlu0 %v1219
      %v1221 = vpop.xlane.xlu0 %1220
      %v1222 = vrcp.pop %v1218
      %v1223 = vmul.f32 %v1218, %v1222
      %v1224 = vsub.f32 1.0, %v1223
      %v1225 = vmul.f32 %v1222, %v1224
      %v1226 = vadd.f32 %v1222, %v1225
      %vm1227 = vweird.f32 %v1218
      %vm1228 = vweird.f32 %v1222
      %vm1229 = vmor %vm1227, %vm1228
      %v1230 = vsel %vm1229, %v1222, %v1226
      %v1231 = vand.u32 2147483647, %v1218
      %vm1232 = vcmp.eq.f32.partialorder %v1231, 8.507059e+37
      %v1233 = vand.u32 %v1218, 2147483648
      %v1234 = vor.u32 1.1754944e-38, %v1233
      %v1235 = vsel %vm1232, %v1234, %v1230
      %v1236 = vmul.f32 %v1213, %v1235
      %v1237 = vrcp.pop %v1221
      %v1238 = vmul.f32 %v1221, %v1237
      %v1239 = vsub.f32 1.0, %v1238
      %v1240 = vmul.f32 %v1237, %v1239
      %v1241 = vadd.f32 %v1237, %v1240
      %vm1242 = vweird.f32 %v1221
      %vm1243 = vweird.f32 %v1237
      %vm1244 = vmor %vm1242, %vm1243
      %v1245 = vsel %vm1244, %v1237, %v1241
      %v1246 = vand.u32 2147483647, %v1221
      %vm1247 = vcmp.eq.f32.partialorder %v1246, 8.507059e+37
      %v1248 = vand.u32 %v1221, 2147483648
      %v1249 = vor.u32 1.1754944e-38, %v1248
      %v1250 = vsel %vm1247, %v1249, %v1245
      %v1251 = vmul.f32 %v1215, %v1250
      %v1252 = vpack.c.bf16 %v1251, %v1236
      %v1254 = vsel %vm1203, %v1252, 0
      %1256 = vmatpush.bf16.msra.mxu0 0
      %1257 = vmatpush.bf16.msra.mxu0 0
      %1258 = vmatpush.bf16.msra.mxu0 0
      %1259 = vmatpush.bf16.msra.mxu0 0
      %1260 = vmatpush.bf16.msra.mxu0 0
      %1261 = vmatpush.bf16.msra.mxu0 0
      %1262 = vmatpush.bf16.msra.mxu0 0
      %1263 = vmatpush.bf16.msra.mxu0 %v1184
      %1264 = vmatmul.bf16.gmra.mxu0 %v1254
      %v1265 = vpop.f32.mrf.mxu0
      %v1266 = vadd.f32 0.0, %v1265
      %v1267 = vpop.f32.mrf.mxu0
      %v1268 = vadd.f32 0.0, %v1267
      %1269 = vdwg.mxu0
      %v1270 = vld [vmem:[%s7] sm:$0xff]
      %v1271 = vld [vmem:[%s7 + $0x8] sm:$0xff]
      %v1272 = vld [vmem:[%s7 + $0x10] sm:$0xff]
      %v1273 = vld [vmem:[%s7 + $0x18] sm:$0xff]
      %v1274 = vld [vmem:[%s7 + $0x20] sm:$0xff]
      %v1275 = vld [vmem:[%s7 + $0x28] sm:$0xff]
      %v1276 = vld [vmem:[%s7 + $0x30] sm:$0xff]
      %v1277 = vld [vmem:[%s7 + $0x38] sm:$0xff]
      %v1278 = vld [vmem:[%s7 + $0x40] sm:$0xff]
      %v1279 = vld [vmem:[%s7 + $0x48] sm:$0xff]
      %v1280 = vld [vmem:[%s7 + $0x50] sm:$0xff]
      %v1281 = vld [vmem:[%s7 + $0x58] sm:$0xff]
      %v1282 = vld [vmem:[%s7 + $0x60] sm:$0xff]
      %v1283 = vld [vmem:[%s7 + $0x68] sm:$0xff]
      %v1284 = vld [vmem:[%s7 + $0x70] sm:$0xff]
      %v1285 = vld [vmem:[%s7 + $0x78] sm:$0xff]
      %v1286 = vpack.c.bf16 %v1268, %v1266
      %v1287 = vpack.c.bf16 %v1180, %v1178
      %v1288 = vpack.c.bf16 %v892, %v890
      %v1289 = vpack.c.bf16 %v920, %v918
      %1290 = vmatpush.bf16.xpose.msra.mxu0 0
      %1291 = vmatpush.bf16.xpose.msra.mxu0 0
      %1292 = vmatpush.bf16.xpose.msra.mxu0 0
      %1293 = vmatpush.bf16.xpose.msra.mxu0 0
      %1294 = vmatpush.bf16.xpose.msra.mxu0 0
      %1295 = vmatpush.bf16.xpose.msra.mxu0 0
      %1296 = vmatpush.bf16.xpose.msra.mxu0 0
      %1297 = vmatpush.bf16.xpose.msra.mxu0 %v1288
      %1298 = vmatmul.bf16.gmra.mxu0 %v1287
      %v1299 = vpop.f32.mrf.mxu0
      %v1300 = vadd.f32 0.0, %v1299
      %v1301 = vpop.f32.mrf.mxu0
      %v1302 = vadd.f32 0.0, %v1301
      %1303 = vdwg.mxu0
      %v1304 = vmul.f32 %v1300, 0.088388346
      %v1305 = vmul.f32 %v1302, 0.088388346
      %v1306 = vadd.f32 %v1304, %v408
      %v1307 = vadd.f32 %v1305, %v409
      %v1308 = vsel %vm1203, %v1306, -inf
      %1309 = vmax.xlane.f32.xlu0 %v1308
      %v1310 = vpop.xlane.xlu0 %1309
      %v1311 = vsel %vm1203, %v1307, -inf
      %1312 = vmax.xlane.f32.xlu0 %v1311
      %v1313 = vpop.xlane.xlu0 %1312
      %v1314 = vsub.f32 %v1306, %v1310
      %v1315 = vsub.f32 %v1307, %v1313
      %v1316 = vmul.f32 %v1314, 1.442695
      %v1317 = vpow.pop %v1316
      %v1318 = vmul.f32 %v1315, 1.442695
      %v1319 = vpow.pop %v1318
      %v1320 = vsel %vm1203, %v1317, 0.0
      %1321 = vadd.xlane.f32.xlu0 %v1320
      %v1322 = vpop.xlane.xlu0 %1321
      %v1323 = vsel %vm1203, %v1319, 0.0
      %1324 = vadd.xlane.f32.xlu0 %v1323
      %v1325 = vpop.xlane.xlu0 %1324
      %v1326 = vrcp.pop %v1322
      %v1327 = vmul.f32 %v1322, %v1326
      %v1328 = vsub.f32 1.0, %v1327
      %v1329 = vmul.f32 %v1326, %v1328
      %v1330 = vadd.f32 %v1326, %v1329
      %vm1331 = vweird.f32 %v1322
      %vm1332 = vweird.f32 %v1326
      %vm1333 = vmor %vm1331, %vm1332
      %v1334 = vsel %vm1333, %v1326, %v1330
      %v1335 = vand.u32 2147483647, %v1322
      %vm1336 = vcmp.eq.f32.partialorder %v1335, 8.507059e+37
      %v1337 = vand.u32 %v1322, 2147483648
      %v1338 = vor.u32 1.1754944e-38, %v1337
      %v1339 = vsel %vm1336, %v1338, %v1334
      %v1340 = vmul.f32 %v1317, %v1339
      %v1341 = vrcp.pop %v1325
      %v1342 = vmul.f32 %v1325, %v1341
      %v1343 = vsub.f32 1.0, %v1342
      %v1344 = vmul.f32 %v1341, %v1343
      %v1345 = vadd.f32 %v1341, %v1344
      %vm1346 = vweird.f32 %v1325
      %vm1347 = vweird.f32 %v1341
      %vm1348 = vmor %vm1346, %vm1347
      %v1349 = vsel %vm1348, %v1341, %v1345
      %v1350 = vand.u32 2147483647, %v1325
      %vm1351 = vcmp.eq.f32.partialorder %v1350, 8.507059e+37
      %v1352 = vand.u32 %v1325, 2147483648
      %v1353 = vor.u32 1.1754944e-38, %v1352
      %v1354 = vsel %vm1351, %v1353, %v1349
      %v1355 = vmul.f32 %v1319, %v1354
      %v1356 = vpack.c.bf16 %v1355, %v1340
      %v1358 = vsel %vm1203, %v1356, 0
      %1360 = vmatpush.bf16.msra.mxu0 0
      %1361 = vmatpush.bf16.msra.mxu0 0
      %1362 = vmatpush.bf16.msra.mxu0 0
      %1363 = vmatpush.bf16.msra.mxu0 0
      %1364 = vmatpush.bf16.msra.mxu0 0
      %1365 = vmatpush.bf16.msra.mxu0 0
      %1366 = vmatpush.bf16.msra.mxu0 0
      %1367 = vmatpush.bf16.msra.mxu0 %v1289
      %1368 = vmatmul.bf16.gmra.mxu0 %v1358
      %v1369 = vpop.f32.mrf.mxu0
      %v1370 = vadd.f32 0.0, %v1369
      %v1371 = vpop.f32.mrf.mxu0
      %v1372 = vadd.f32 0.0, %v1371
      %1373 = vdwg.mxu0
      %v1374 = vld [vmem:[%s7 + $0x80] sm:$0xff]
      %v1375 = vld [vmem:[%s7 + $0x88] sm:$0xff]
      %v1376 = vld [vmem:[%s7 + $0x90] sm:$0xff]
      %v1377 = vld [vmem:[%s7 + $0x98] sm:$0xff]
      %v1378 = vld [vmem:[%s7 + $0xa0] sm:$0xff]
      %v1379 = vld [vmem:[%s7 + $0xa8] sm:$0xff]
      %v1380 = vld [vmem:[%s7 + $0xb0] sm:$0xff]
      %v1381 = vld [vmem:[%s7 + $0xb8] sm:$0xff]
      %v1382 = vld [vmem:[%s7 + $0xc0] sm:$0xff]
      %v1383 = vld [vmem:[%s7 + $0xc8] sm:$0xff]
      %v1384 = vld [vmem:[%s7 + $0xd0] sm:$0xff]
      %v1385 = vld [vmem:[%s7 + $0xd8] sm:$0xff]
      %v1386 = vld [vmem:[%s7 + $0xe0] sm:$0xff]
      %v1387 = vld [vmem:[%s7 + $0xe8] sm:$0xff]
      %v1388 = vld [vmem:[%s7 + $0xf0] sm:$0xff]
      %v1389 = vld [vmem:[%s7 + $0xf8] sm:$0xff]
      %v1390 = vpack.c.bf16 %v1372, %v1370
      %v1407 = vunpack.c.l.b16 %v1374
      %v1408 = vunpack.c.h.b16 %v1374
      %v1409 = vunpack.c.l.b16 %v1375
      %v1410 = vunpack.c.h.b16 %v1375
      %v1411 = vunpack.c.l.b16 %v1376
      %v1412 = vunpack.c.h.b16 %v1376
      %v1413 = vunpack.c.l.b16 %v1377
      %v1414 = vunpack.c.h.b16 %v1377
      %v1415 = vunpack.c.l.b16 %v1378
      %v1416 = vunpack.c.h.b16 %v1378
      %v1417 = vunpack.c.l.b16 %v1379
      %v1418 = vunpack.c.h.b16 %v1379
      %v1419 = vunpack.c.l.b16 %v1380
      %v1420 = vunpack.c.h.b16 %v1380
      %v1421 = vunpack.c.l.b16 %v1381
      %v1422 = vunpack.c.h.b16 %v1381
      %v1423 = vunpack.c.l.b16 %v1382
      %v1424 = vunpack.c.h.b16 %v1382
      %v1425 = vunpack.c.l.b16 %v1383
      %v1426 = vunpack.c.h.b16 %v1383
      %v1427 = vunpack.c.l.b16 %v1384
      %v1428 = vunpack.c.h.b16 %v1384
      %v1429 = vunpack.c.l.b16 %v1385
      %v1430 = vunpack.c.h.b16 %v1385
      %v1431 = vunpack.c.l.b16 %v1386
      %v1432 = vunpack.c.h.b16 %v1386
      %v1433 = vunpack.c.l.b16 %v1387
      %v1434 = vunpack.c.h.b16 %v1387
      %v1435 = vunpack.c.l.b16 %v1388
      %v1436 = vunpack.c.h.b16 %v1388
      %v1437 = vunpack.c.l.b16 %v1389
      %v1438 = vunpack.c.h.b16 %v1389
      %v1439 = vpack.c.b16 %v1409, %v1407
      %v1440 = vpack.c.b16 %v1410, %v1408
      %v1441 = vpack.c.b16 %v1413, %v1411
      %v1442 = vpack.c.b16 %v1414, %v1412
      %v1443 = vpack.c.b16 %v1417, %v1415
      %v1444 = vpack.c.b16 %v1418, %v1416
      %v1445 = vpack.c.b16 %v1421, %v1419
      %v1446 = vpack.c.b16 %v1422, %v1420
      %v1447 = vpack.c.b16 %v1425, %v1423
      %v1448 = vpack.c.b16 %v1426, %v1424
      %v1449 = vpack.c.b16 %v1429, %v1427
      %v1450 = vpack.c.b16 %v1430, %v1428
      %v1451 = vpack.c.b16 %v1433, %v1431
      %v1452 = vpack.c.b16 %v1434, %v1432
      %v1453 = vpack.c.b16 %v1437, %v1435
      %v1454 = vpack.c.b16 %v1438, %v1436
      %1471 = vmatpush.bf16.msra.mxu0 %v1453
      %1472 = vmatpush.bf16.msra.mxu0 %v1451
      %1473 = vmatpush.bf16.msra.mxu0 %v1449
      %1474 = vmatpush.bf16.msra.mxu0 %v1447
      %1475 = vmatpush.bf16.msra.mxu0 %v1445
      %1476 = vmatpush.bf16.msra.mxu0 %v1443
      %1477 = vmatpush.bf16.msra.mxu0 %v1441
      %1478 = vmatpush.bf16.msra.mxu0 %v1439
      %1479 = vmatmul.bf16.gmra.mxu0 %v1390
      %v1480 = vpop.f32.mrf.mxu0
      %v1481 = vadd.f32 0.0, %v1480
      %v1482 = vpop.f32.mrf.mxu0
      %v1483 = vadd.f32 0.0, %v1482
      %1484 = vdwg.mxu0
      %1485 = vmatpush.bf16.msra.mxu0 %v1454
      %1486 = vmatpush.bf16.msra.mxu0 %v1452
      %1487 = vmatpush.bf16.msra.mxu0 %v1450
      %1488 = vmatpush.bf16.msra.mxu0 %v1448
      %1489 = vmatpush.bf16.msra.mxu0 %v1446
      %1490 = vmatpush.bf16.msra.mxu0 %v1444
      %1491 = vmatpush.bf16.msra.mxu0 %v1442
      %1492 = vmatpush.bf16.msra.mxu0 %v1440
      %1493 = vmatmul.bf16.gmra.mxu0 %v1390
      %v1494 = vpop.f32.mrf.mxu0
      %v1495 = vadd.f32 0.0, %v1494
      %v1496 = vpop.f32.mrf.mxu0
      %v1497 = vadd.f32 0.0, %v1496
      %1498 = vdwg.mxu0
      %v1515 = vunpack.c.l.b16 %v1270
      %v1516 = vunpack.c.h.b16 %v1270
      %v1517 = vunpack.c.l.b16 %v1271
      %v1518 = vunpack.c.h.b16 %v1271
      %v1519 = vunpack.c.l.b16 %v1272
      %v1520 = vunpack.c.h.b16 %v1272
      %v1521 = vunpack.c.l.b16 %v1273
      %v1522 = vunpack.c.h.b16 %v1273
      %v1523 = vunpack.c.l.b16 %v1274
      %v1524 = vunpack.c.h.b16 %v1274
      %v1525 = vunpack.c.l.b16 %v1275
      %v1526 = vunpack.c.h.b16 %v1275
      %v1527 = vunpack.c.l.b16 %v1276
      %v1528 = vunpack.c.h.b16 %v1276
      %v1529 = vunpack.c.l.b16 %v1277
      %v1530 = vunpack.c.h.b16 %v1277
      %v1531 = vunpack.c.l.b16 %v1278
      %v1532 = vunpack.c.h.b16 %v1278
      %v1533 = vunpack.c.l.b16 %v1279
      %v1534 = vunpack.c.h.b16 %v1279
      %v1535 = vunpack.c.l.b16 %v1280
      %v1536 = vunpack.c.h.b16 %v1280
      %v1537 = vunpack.c.l.b16 %v1281
      %v1538 = vunpack.c.h.b16 %v1281
      %v1539 = vunpack.c.l.b16 %v1282
      %v1540 = vunpack.c.h.b16 %v1282
      %v1541 = vunpack.c.l.b16 %v1283
      %v1542 = vunpack.c.h.b16 %v1283
      %v1543 = vunpack.c.l.b16 %v1284
      %v1544 = vunpack.c.h.b16 %v1284
      %v1545 = vunpack.c.l.b16 %v1285
      %v1546 = vunpack.c.h.b16 %v1285
      %v1547 = vpack.c.b16 %v1517, %v1515
      %v1548 = vpack.c.b16 %v1518, %v1516
      %v1549 = vpack.c.b16 %v1521, %v1519
      %v1550 = vpack.c.b16 %v1522, %v1520
      %v1551 = vpack.c.b16 %v1525, %v1523
      %v1552 = vpack.c.b16 %v1526, %v1524
      %v1553 = vpack.c.b16 %v1529, %v1527
      %v1554 = vpack.c.b16 %v1530, %v1528
      %v1555 = vpack.c.b16 %v1533, %v1531
      %v1556 = vpack.c.b16 %v1534, %v1532
      %v1557 = vpack.c.b16 %v1537, %v1535
      %v1558 = vpack.c.b16 %v1538, %v1536
      %v1559 = vpack.c.b16 %v1541, %v1539
      %v1560 = vpack.c.b16 %v1542, %v1540
      %v1561 = vpack.c.b16 %v1545, %v1543
      %v1562 = vpack.c.b16 %v1546, %v1544
      %1579 = vmatpush.bf16.msra.mxu0 %v1561
      %1580 = vmatpush.bf16.msra.mxu0 %v1559
      %1581 = vmatpush.bf16.msra.mxu0 %v1557
      %1582 = vmatpush.bf16.msra.mxu0 %v1555
      %1583 = vmatpush.bf16.msra.mxu0 %v1553
      %1584 = vmatpush.bf16.msra.mxu0 %v1551
      %1585 = vmatpush.bf16.msra.mxu0 %v1549
      %1586 = vmatpush.bf16.msra.mxu0 %v1547
      %1587 = vmatmul.bf16.gmra.mxu0 %v1286
      %v1588 = vpop.f32.mrf.mxu0
      %v1589 = vadd.f32 %v1481, %v1588
      %v1590 = vpop.f32.mrf.mxu0
      %v1591 = vadd.f32 %v1483, %v1590
      %1592 = vdwg.mxu0
      %1593 = vmatpush.bf16.msra.mxu0 %v1562
      %1594 = vmatpush.bf16.msra.mxu0 %v1560
      %1595 = vmatpush.bf16.msra.mxu0 %v1558
      %1596 = vmatpush.bf16.msra.mxu0 %v1556
      %1597 = vmatpush.bf16.msra.mxu0 %v1554
      %1598 = vmatpush.bf16.msra.mxu0 %v1552
      %1599 = vmatpush.bf16.msra.mxu0 %v1550
      %1600 = vmatpush.bf16.msra.mxu0 %v1548
      %1601 = vmatmul.bf16.gmra.mxu0 %v1286
      %v1602 = vpop.f32.mrf.mxu0
      %v1603 = vadd.f32 %v1495, %v1602
      %v1604 = vpop.f32.mrf.mxu0
      %v1605 = vadd.f32 %v1497, %v1604
      %1606 = vdwg.mxu0
      %v1607 = vld [vmem:[%s8] sm:$0x3]
      %v1609 = vperm.slane %v1607, 0
      %v1610 = vperm.slane %v1607, 1
      %v1613 = vadd.f32 %v1589, %v1609
      %v1614 = vadd.f32 %v1603, %v1610
      %v1615 = vadd.f32 %v1591, %v1609
      %v1616 = vadd.f32 %v1605, %v1610
      %v1617 = vld [vmem:[%s9] sm:$0x3]
      %v1618 = vld [vmem:[%s10] sm:$0x3]
      %v1619 = vadd.f32 %v1613, %v1614
      %1620 = vadd.xlane.f32.xlu0 %v1619
      %v1621 = vpop.xlane.xlu0 %1620
      %v1622 = vadd.f32 %v1615, %v1616
      %1623 = vadd.xlane.f32.xlu0 %v1622
      %v1624 = vpop.xlane.xlu0 %1623
      %v1625 = vrcp.pop 256.0
      %v1626 = vmul.f32 256.0, %v1625
      %v1627 = vsub.f32 1.0, %v1626
      %v1628 = vmul.f32 %v1625, %v1627
      %v1629 = vadd.f32 %v1625, %v1628
      %vm1630 = vweird.f32 %v1625
      %v1631 = vsel %vm1630, %v1625, %v1629
      %v1632 = vmul.f32 %v1621, %v1631
      %v1633 = vmul.f32 %v1624, %v1631
      %v1634 = vsub.f32 %v1613, %v1632
      %v1635 = vsub.f32 %v1614, %v1632
      %v1636 = vsub.f32 %v1615, %v1633
      %v1637 = vsub.f32 %v1616, %v1633
      %v1638 = vmul.f32 %v1634, %v1634
      %v1639 = vmul.f32 %v1635, %v1635
      %v1640 = vmul.f32 %v1636, %v1636
      %v1641 = vmul.f32 %v1637, %v1637
      %v1642 = vadd.f32 %v1638, %v1639
      %1643 = vadd.xlane.f32.xlu0 %v1642
      %v1644 = vpop.xlane.xlu0 %1643
      %v1645 = vadd.f32 %v1640, %v1641
      %1646 = vadd.xlane.f32.xlu0 %v1645
      %v1647 = vpop.xlane.xlu0 %1646
      %v1648 = vmul.f32 %v1644, %v1631
      %v1649 = vmul.f32 %v1647, %v1631
      %v1650 = vadd.f32 %v1648, 1e-05
      %v1651 = vadd.f32 %v1649, 1e-05
      %v1652 = vrsqrt.pop %v1650
      %v1653 = vmul.f32 %v1652, %v1650
      %v1654 = vmul.f32 %v1653, %v1652
      %v1655 = vmul.f32 0.5, %v1654
      %v1656 = vsub.f32 1.5, %v1655
      %v1657 = vmul.f32 %v1652, %v1656
      %vm1658 = vweird.f32 %v1650
      %vm1659 = vweird.f32 %v1652
      %vm1660 = vmor %vm1658, %vm1659
      %v1661 = vsel %vm1660, %v1652, %v1657
      %v1662 = vrsqrt.pop %v1651
      %v1663 = vmul.f32 %v1662, %v1651
      %v1664 = vmul.f32 %v1663, %v1662
      %v1665 = vmul.f32 0.5, %v1664
      %v1666 = vsub.f32 1.5, %v1665
      %v1667 = vmul.f32 %v1662, %v1666
      %vm1668 = vweird.f32 %v1651
      %vm1669 = vweird.f32 %v1662
      %vm1670 = vmor %vm1668, %vm1669
      %v1671 = vsel %vm1670, %v1662, %v1667
      %v1672 = vmul.f32 %v1634, %v1661
      %v1673 = vmul.f32 %v1635, %v1661
      %v1674 = vmul.f32 %v1636, %v1671
      %v1675 = vmul.f32 %v1637, %v1671
      %v1677 = vperm.slane %v1617, 0
      %v1678 = vperm.slane %v1617, 1
      %v1681 = vmul.f32 %v1677, %v1672
      %v1682 = vmul.f32 %v1678, %v1673
      %v1683 = vmul.f32 %v1677, %v1674
      %v1684 = vmul.f32 %v1678, %v1675
      %v1686 = vperm.slane %v1618, 0
      %v1687 = vperm.slane %v1618, 1
      %v1690 = vadd.f32 %v1681, %v1686
      %v1691 = vadd.f32 %v1682, %v1687
      %v1692 = vadd.f32 %v1683, %v1686
      %v1693 = vadd.f32 %v1684, %v1687
      %1694 = vst [vmem:[%s406] sm:$0xff] %v1690
      %1695 = vst [vmem:[%s406 + $0x8] sm:$0xff] %v1691
      %1696 = vst [vmem:[%s406 + $0x10] sm:$0xff] %v1692
      %1697 = vst [vmem:[%s406 + $0x18] sm:$0xff] %v1693
      %p1698 = scmp.lt.s32.totalorder %s22, 1
      %s1699 = scalar_select %p1698, %s22, 1
      %s1700 = smul.addr %s1699, 4
      %s1701 = smul.addr %s1700, 8
      %s1702 = scalar_lea.vmem %s11, %s1701
      // Predicated region
      $region65: #{decoder_layer.4} parent=63 // pred_check
        %p1703 = pneg %p281
      $region66: #{decoder_layer.4} parent=63 // pred_check_branch
        %1705 = sbr.rel (%p1703) target = $region68
      $region67: #{decoder_layer.4} parent=63 // pred_region
        _
      $region68: #{decoder_layer.4} parent=63 // pred_fallthru
        _
    $region64: #{decoder_layer.4} parent=5 // pred_fallthru
      _
    %p1706 = scmp.le.s32.totalorder 2, %s17
    // Predicated region
    $region69: #{decoder_layer.4} parent=5 // pred_check
      %p1707 = pneg %p1706
    $region70: #{decoder_layer.4} parent=5 // pred_check_branch
      %1709 = sbr.rel (%p1707) target = $region72
    $region71: #{decoder_layer.4} parent=5 // pred_region
      %s1710 = ssub.s32 %s17, 2
      // Predicated region
      $region73: #{decoder_layer.4} parent=71 // pred_check
        %p1711 = pneg %p287
      $region74: #{decoder_layer.4} parent=71 // pred_check_branch
        %1713 = sbr.rel (%p1711) target = $region76
      $region75: #{decoder_layer.4} parent=71 // pred_region
        %p1714 = scmp.lt.s32.totalorder %s23, 1
        %s1715 = scalar_select %p1714, %s23, 1
        %s1716 = smul.addr %s1715, 4
        %s1717 = smul.addr %s1716, 8
        %s1718 = scalar_lea.vmem %s11, %s1717
      $region76: #{decoder_layer.4} parent=71 // pred_fallthru
        _
    $region72: #{decoder_layer.4} parent=5 // pred_fallthru
      _
  $region6: #{decoder_layer.4} parent=0 // loop_footer
    %s21 = sadd.s32 1, %s17
  $region7: #{decoder_layer.4} parent=0 // loop_footer_branch
    %16 = sbr.rel target = $region3
  $region8: #{decoder_layer.4} parent=0 // loop_exit
    _

</llo_original>
